<compile_context>
chip_gen: v7x
topology: tpu7x:2x2x1
jax: 0.10.0
libtpu: 0.0.40
codegen_flags: <defaults>
</compile_context>

<pallas_src>
import jax
import jax.numpy as jnp
from jax.experimental import pallas as pl
from jax.experimental.pallas import tpu as pltpu  # noqa: F401  (TPU backend assumed)

EPS = 1e-5  # BatchNorm2d default eps


# ---------------------------------------------------------------------------
# Fully fused mask-head kernel:
#   x (M1, Cin) bf16                        pixels (n,i,j) x input channels
#   w1 (Cin, 4*C1) bf16                     deconv1, columns grouped by d1=2*d1i+d1j
#   g1/be1 (1, C1) f32                      BatchNorm2d(C1) affine
#   w2 (C1, 4*C2) bf16                      deconv2, columns grouped by d2=2*d2i+d2j
#   g2/be2 (1, C2) f32
#   wc (4*C2, 4) f32                        1x1 conv as block-diagonal matrix
#   bc (1, 1) f32
#   t  (4*M1, 4) f32                        targets permuted to kernel pixel order
# outputs:
#   logits (4*M1, 4) f32  (pixel order (d1i,d1j,n,i,j) x (d2i,d2j))
#   loss   (1, 1)   f32   (already divided by the element count = BCE mean)
# ---------------------------------------------------------------------------
def fused_mask_head_kernel(x_ref, w1_ref, g1_ref, be1_ref,
                           w2_ref, g2_ref, be2_ref,
                           wc_ref, bc_ref, t_ref,
                           logits_ref, loss_ref):
    M1 = x_ref.shape[0]
    C1 = g1_ref.shape[-1]
    C2 = g2_ref.shape[-1]

    # ---- deconv1: one wide bf16 MXU matmul, f32 accumulate -----------------
    y1 = jnp.dot(x_ref[...], w1_ref[...],
                 preferred_element_type=jnp.float32)            # (M1, 4*C1) f32

    # ---- train-mode BatchNorm2d(C1) + ReLU (two-pass / shifted variance) ---
    inv_n1 = 1.0 / (4.0 * M1)
    s1 = jnp.sum(y1, axis=0, keepdims=True)                     # (1, 4*C1)
    mean1 = (s1[:, 0:C1] + s1[:, C1:2 * C1]
             + s1[:, 2 * C1:3 * C1] + s1[:, 3 * C1:4 * C1]) * inv_n1
    mean1_4 = jnp.concatenate([mean1] * 4, axis=1)              # (1, 4*C1)
    yc1 = y1 - mean1_4                                          # centered
    q1 = jnp.sum(yc1 * yc1, axis=0, keepdims=True)
    var1 = (q1[:, 0:C1] + q1[:, C1:2 * C1]
            + q1[:, 2 * C1:3 * C1] + q1[:, 3 * C1:4 * C1]) * inv_n1   # biased var
    scale1 = g1_ref[...] * jax.lax.rsqrt(var1 + EPS)            # (1, C1)
    scale1_4 = jnp.concatenate([scale1] * 4, axis=1)
    beta1_4 = jnp.concatenate([be1_ref[...]] * 4, axis=1)
    h1 = jnp.maximum(yc1 * scale1_4 + beta1_4, 0.0)             # (M1, 4*C1) f32

    # repack (M1, 4*C1) -> (4*M1, C1): 128-aligned lane slices + sublane concat.
    # Row order becomes (d1, n, i, j); BN/BCE are order-invariant, wrapper tracks it.
    h1_rows = jnp.concatenate([h1[:, d * C1:(d + 1) * C1] for d in range(4)],
                              axis=0).astype(jnp.bfloat16)      # (4*M1, C1) bf16

    # ---- deconv2: wide bf16 MXU matmul --------------------------------------
    y2 = jnp.dot(h1_rows, w2_ref[...],
                 preferred_element_type=jnp.float32)            # (4*M1, 4*C2) f32

    M2r = 4 * M1
    inv_n2 = 1.0 / (4.0 * M2r)
    s2 = jnp.sum(y2, axis=0, keepdims=True)
    mean2 = (s2[:, 0:C2] + s2[:, C2:2 * C2]
             + s2[:, 2 * C2:3 * C2] + s2[:, 3 * C2:4 * C2]) * inv_n2
    mean2_4 = jnp.concatenate([mean2] * 4, axis=1)
    yc2 = y2 - mean2_4
    q2 = jnp.sum(yc2 * yc2, axis=0, keepdims=True)
    var2 = (q2[:, 0:C2] + q2[:, C2:2 * C2]
            + q2[:, 2 * C2:3 * C2] + q2[:, 3 * C2:4 * C2]) * inv_n2
    scale2 = g2_ref[...] * jax.lax.rsqrt(var2 + EPS)
    scale2_4 = jnp.concatenate([scale2] * 4, axis=1)
    beta2_4 = jnp.concatenate([be2_ref[...]] * 4, axis=1)
    h2 = jnp.maximum(yc2 * scale2_4 + beta2_4, 0.0)             # (4*M1, 4*C2) f32

    # ---- 1x1 conv (64 -> 1) as block-diagonal MXU contraction + bias -------
    logits = jnp.dot(h2, wc_ref[...],
                     preferred_element_type=jnp.float32) + bc_ref[...]   # (4*M1, 4)

    # ---- BCEWithLogits (mean reduction), numerically stable ----------------
    t = t_ref[...]
    a = jnp.abs(logits)
    ea = jnp.exp(-a)
    # softplus(-a) = log(1 + exp(-a)); for large a use exp(-a) directly to avoid
    # the f32 1+eps cancellation (equivalent to log1p).
    sp = jnp.where(a > 15.0, ea, jnp.log(1.0 + ea))
    elem = jnp.maximum(logits, 0.0) - logits * t + sp

    logits_ref[...] = logits
    loss_ref[...] = jnp.sum(jnp.sum(elem, axis=1, keepdims=True),
                            axis=0, keepdims=True) * (1.0 / (4.0 * M2r))


# ---------------------------------------------------------------------------
# img_to_mask + mask loss (the custom path FasterRCNNModel defines itself)
# ---------------------------------------------------------------------------
def mask_head_forward(feat0_nhwc, target_masks, prep):
    # TODO(synk): fasterrcnn_resnet50_fpn backbone/RPN/ROI losses, eval-mode
    # detections and the get_*_threat_score metrics have no Pallas equivalent;
    # only the mask head + BCEWithLogitsLoss path is implemented here.
    N, H, W, Cin = feat0_nhwc.shape
    M1 = N * H * W

    x = feat0_nhwc.reshape(M1, Cin).astype(jnp.bfloat16)

    # targets permuted to the kernel's pixel order (d1i,d1j,n,i,j,d2i,d2j) -> (4*M1, 4)
    t = target_masks.astype(jnp.float32).reshape(N, H, 2, 2, W, 2, 2)
    t = t.transpose(2, 5, 0, 1, 4, 3, 6).reshape(4 * M1, 4)

    logits, loss = pl.pallas_call(
        fused_mask_head_kernel,
        out_shape=(jax.ShapeDtypeStruct((4 * M1, 4), jnp.float32),
                   jax.ShapeDtypeStruct((1, 1), jnp.float32)),
    )(x, prep["w1c"], prep["g1"], prep["be1"],
      prep["w2c"], prep["g2"], prep["be2"],
      prep["wc_blk"], prep["bc"], t)

    mask_loss = loss[0, 0]

    # materialize the interleaved (N, 1, 4H, 4W) layout exactly once, at the end
    masks = (logits.reshape(2, 2, N, H, W, 2, 2)       # (d1i,d1j,n,i,j,d2i,d2j)
                   .transpose(2, 3, 0, 5, 4, 1, 6)     # (n,i,d1i,d2i,j,d1j,d2j)
                   .reshape(N, 1, 4 * H, 4 * W))
    return mask_loss, masks


forward = jax.jit(mask_head_forward)


# ---------------------------------------------------------------------------
def init_params(key):
    """Mask-head parameters in the PyTorch-native layouts."""
    k1, k2, k3 = jax.random.split(key, 3)
    return {
        # ConvTranspose2d(256, 128, 2, 2): weight (in, out, kH, kW)
        "w1": 0.05 * jax.random.normal(k1, (256, 128, 2, 2), jnp.float32),
        "b1": jnp.zeros((128,), jnp.float32),   # inert under train-mode BN (unused)
        "g1": jnp.ones((128,), jnp.float32),
        "be1": jnp.zeros((128,), jnp.float32),
        # ConvTranspose2d(128, 64, 2, 2)
        "w2": 0.05 * jax.random.normal(k2, (128, 64, 2, 2), jnp.float32),
        "b2": jnp.zeros((64,), jnp.float32),    # inert under train-mode BN (unused)
        "g2": jnp.ones((64,), jnp.float32),
        "be2": jnp.zeros((64,), jnp.float32),
        # Conv2d(64, 1, 1): weight (out, in, kH, kW), bias (out,)
        "wc": 0.05 * jax.random.normal(k3, (1, 64, 1, 1), jnp.float32),
        "bc": jnp.zeros((1,), jnp.float32),
    }


def preprocess_params(p):
    """One-time, hoisted weight re-layout + bf16 cast (static across forward calls).

    NOTE: deconv biases b1/b2 are dropped: a constant per-channel bias is exactly
    canceled by TRAIN-mode BatchNorm mean subtraction (batch statistics).  This is
    not valid for an eval-mode / running-stats variant of this head.
    """
    Cin, C1 = p["w1"].shape[0], p["w1"].shape[1]
    C2 = p["w2"].shape[1]
    # ConvTranspose2d weights -> (Cin, 4*Cout), columns grouped by 2x2 sub-position
    w1c = p["w1"].transpose(0, 2, 3, 1).reshape(Cin, 4 * C1).astype(jnp.bfloat16)
    w2c = p["w2"].transpose(0, 2, 3, 1).reshape(C1, 4 * C2).astype(jnp.bfloat16)
    # 1x1 conv as a block-diagonal (4*C2, 4): one diagonal block per 2x2 sub-position
    wc_col = p["wc"].reshape(1, C2).T                                  # (C2, 1)
    wc_blk = jnp.kron(jnp.eye(4, dtype=jnp.float32), wc_col)           # (4*C2, 4)
    return {
        "w1c": w1c, "g1": p["g1"].reshape(1, C1), "be1": p["be1"].reshape(1, C1),
        "w2c": w2c, "g2": p["g2"].reshape(1, C2), "be2": p["be2"].reshape(1, C2),
        "wc_blk": wc_blk, "bc": p["bc"].reshape(1, 1),
    }


if __name__ == "__main__":
    key = jax.random.PRNGKey(0)
    kp, kf, kt = jax.random.split(key, 3)

    params = init_params(kp)
    prep = preprocess_params(params)   # hoisted one-time weight re-layout / bf16 cast

    # Synthetic FPN level-'0' feature map (256 channels), NCHW as the backbone emits.
    N, Cin, H, W = 2, 256, 8, 8
    feat0_nchw = jax.random.normal(kf, (N, Cin, H, W), jnp.float32)
    # Layout conversion done ONCE upstream, not per call inside forward().
    feat0_nhwc = jnp.transpose(feat0_nchw, (0, 2, 3, 1))

    # Binary target masks at the upsampled resolution (8 -> 16 -> 32).
    target_masks = jax.random.bernoulli(kt, 0.3, (N, 1, 4 * H, 4 * W)).astype(jnp.float32)

    mask_loss, masks = forward(feat0_nhwc, target_masks, prep)
    jax.block_until_ready((mask_loss, masks))

    assert masks.shape == (N, 1, 4 * H, 4 * W)
    assert mask_loss.shape == ()
    assert bool(jnp.isfinite(mask_loss))
    print("KERNEL_OK")
</pallas_src>

<mosaic_0001>
module attributes {stable_mosaic.version = 11 : i64} {
  func.func @fused_mask_head_kernel(%arg0: memref<128x256xbf16, #tpu.memory_space<vmem>>, %arg1: memref<256x512xbf16, #tpu.memory_space<vmem>>, %arg2: memref<1x128xf32, #tpu.memory_space<vmem>>, %arg3: memref<1x128xf32, #tpu.memory_space<vmem>>, %arg4: memref<128x256xbf16, #tpu.memory_space<vmem>>, %arg5: memref<1x64xf32, #tpu.memory_space<vmem>>, %arg6: memref<1x64xf32, #tpu.memory_space<vmem>>, %arg7: memref<256x4xf32, #tpu.memory_space<vmem>>, %arg8: memref<1x1xf32, #tpu.memory_space<vmem>>, %arg9: memref<512x4xf32, #tpu.memory_space<vmem>>, %arg10: memref<512x4xf32, #tpu.memory_space<vmem>>, %arg11: memref<1x1xf32, #tpu.memory_space<vmem>>) attributes {dimension_semantics = [], scalar_prefetch = 0 : i64, scratch_operands = 0 : i64, tpu.core_type = #tpu.core_type<tc>} {
    %c0 = arith.constant 0 : index
    %c0_0 = arith.constant 0 : index
    %0 = vector.load %arg0[%c0, %c0_0] : memref<128x256xbf16, #tpu.memory_space<vmem>>, vector<128x256xbf16>
    %c0_1 = arith.constant 0 : index
    %c0_2 = arith.constant 0 : index
    %1 = vector.load %arg1[%c0_1, %c0_2] : memref<256x512xbf16, #tpu.memory_space<vmem>>, vector<256x512xbf16>
    %cst = arith.constant dense<0.000000e+00> : vector<128x512xf32>
    %2 = tpu.matmul %0, %1, %cst {dimension_numbers = #tpu.dot_dimension_numbers<[1], [0], [0], [1], [0, 0, 1, 1], [], []>} : vector<128x256xbf16>, vector<256x512xbf16>, vector<128x512xf32> -> vector<128x512xf32>
    %cst_3 = arith.constant dense<0.000000e+00> : vector<512xf32>
    %3 = vector.multi_reduction <add>, %2, %cst_3 [0] : vector<128x512xf32> to vector<512xf32>
    %4 = vector.shape_cast %3 : vector<512xf32> to vector<1x512xf32>
    %5 = vector.extract_strided_slice %4 {offsets = [0, 0], sizes = [1, 128], strides = [1, 1]} : vector<1x512xf32> to vector<1x128xf32>
    %6 = vector.extract_strided_slice %4 {offsets = [0, 128], sizes = [1, 128], strides = [1, 1]} : vector<1x512xf32> to vector<1x128xf32>
    %7 = arith.addf %5, %6 : vector<1x128xf32>
    %8 = vector.extract_strided_slice %4 {offsets = [0, 256], sizes = [1, 128], strides = [1, 1]} : vector<1x512xf32> to vector<1x128xf32>
    %9 = arith.addf %7, %8 : vector<1x128xf32>
    %10 = vector.extract_strided_slice %4 {offsets = [0, 384], sizes = [1, 128], strides = [1, 1]} : vector<1x512xf32> to vector<1x128xf32>
    %11 = arith.addf %9, %10 : vector<1x128xf32>
    %cst_4 = arith.constant 0.001953125 : f32
    %12 = vector.broadcast %cst_4 : f32 to vector<1x128xf32>
    %13 = arith.mulf %11, %12 : vector<1x128xf32>
    %14 = tpu.concatenate %13, %13, %13, %13 in 1 : vector<1x128xf32>, vector<1x128xf32>, vector<1x128xf32>, vector<1x128xf32> -> vector<1x512xf32>
    %15 = vector.broadcast %14 : vector<1x512xf32> to vector<128x512xf32>
    %16 = arith.subf %2, %15 : vector<128x512xf32>
    %17 = arith.mulf %16, %16 : vector<128x512xf32>
    %cst_5 = arith.constant dense<0.000000e+00> : vector<512xf32>
    %18 = vector.multi_reduction <add>, %17, %cst_5 [0] : vector<128x512xf32> to vector<512xf32>
    %19 = vector.shape_cast %18 : vector<512xf32> to vector<1x512xf32>
    %20 = vector.extract_strided_slice %19 {offsets = [0, 0], sizes = [1, 128], strides = [1, 1]} : vector<1x512xf32> to vector<1x128xf32>
    %21 = vector.extract_strided_slice %19 {offsets = [0, 128], sizes = [1, 128], strides = [1, 1]} : vector<1x512xf32> to vector<1x128xf32>
    %22 = arith.addf %20, %21 : vector<1x128xf32>
    %23 = vector.extract_strided_slice %19 {offsets = [0, 256], sizes = [1, 128], strides = [1, 1]} : vector<1x512xf32> to vector<1x128xf32>
    %24 = arith.addf %22, %23 : vector<1x128xf32>
    %25 = vector.extract_strided_slice %19 {offsets = [0, 384], sizes = [1, 128], strides = [1, 1]} : vector<1x512xf32> to vector<1x128xf32>
    %26 = arith.addf %24, %25 : vector<1x128xf32>
    %cst_6 = arith.constant 0.001953125 : f32
    %27 = vector.broadcast %cst_6 : f32 to vector<1x128xf32>
    %28 = arith.mulf %26, %27 : vector<1x128xf32>
    %c0_7 = arith.constant 0 : index
    %c0_8 = arith.constant 0 : index
    %29 = vector.load %arg2[%c0_7, %c0_8] : memref<1x128xf32, #tpu.memory_space<vmem>>, vector<1x128xf32>
    %cst_9 = arith.constant 9.99999974E-6 : f32
    %30 = vector.broadcast %cst_9 : f32 to vector<1x128xf32>
    %31 = arith.addf %28, %30 : vector<1x128xf32>
    %32 = math.rsqrt %31 : vector<1x128xf32>
    %33 = arith.mulf %29, %32 : vector<1x128xf32>
    %34 = tpu.concatenate %33, %33, %33, %33 in 1 : vector<1x128xf32>, vector<1x128xf32>, vector<1x128xf32>, vector<1x128xf32> -> vector<1x512xf32>
    %c0_10 = arith.constant 0 : index
    %c0_11 = arith.constant 0 : index
    %35 = vector.load %arg3[%c0_10, %c0_11] : memref<1x128xf32, #tpu.memory_space<vmem>>, vector<1x128xf32>
    %36 = tpu.concatenate %35, %35, %35, %35 in 1 : vector<1x128xf32>, vector<1x128xf32>, vector<1x128xf32>, vector<1x128xf32> -> vector<1x512xf32>
    %37 = vector.broadcast %34 : vector<1x512xf32> to vector<128x512xf32>
    %38 = arith.mulf %16, %37 : vector<128x512xf32>
    %39 = vector.broadcast %36 : vector<1x512xf32> to vector<128x512xf32>
    %40 = arith.addf %38, %39 : vector<128x512xf32>
    %cst_12 = arith.constant 0.000000e+00 : f32
    %41 = vector.broadcast %cst_12 : f32 to vector<128x512xf32>
    %42 = arith.maximumf %40, %41 : vector<128x512xf32>
    %43 = vector.extract_strided_slice %42 {offsets = [0, 0], sizes = [128, 128], strides = [1, 1]} : vector<128x512xf32> to vector<128x128xf32>
    %44 = vector.extract_strided_slice %42 {offsets = [0, 128], sizes = [128, 128], strides = [1, 1]} : vector<128x512xf32> to vector<128x128xf32>
    %45 = vector.extract_strided_slice %42 {offsets = [0, 256], sizes = [128, 128], strides = [1, 1]} : vector<128x512xf32> to vector<128x128xf32>
    %46 = vector.extract_strided_slice %42 {offsets = [0, 384], sizes = [128, 128], strides = [1, 1]} : vector<128x512xf32> to vector<128x128xf32>
    %47 = tpu.concatenate %43, %44, %45, %46 in 0 : vector<128x128xf32>, vector<128x128xf32>, vector<128x128xf32>, vector<128x128xf32> -> vector<512x128xf32>
    %48 = arith.truncf %47 : vector<512x128xf32> to vector<512x128xbf16>
    %c0_13 = arith.constant 0 : index
    %c0_14 = arith.constant 0 : index
    %49 = vector.load %arg4[%c0_13, %c0_14] : memref<128x256xbf16, #tpu.memory_space<vmem>>, vector<128x256xbf16>
    %cst_15 = arith.constant dense<0.000000e+00> : vector<512x256xf32>
    %50 = tpu.matmul %48, %49, %cst_15 {dimension_numbers = #tpu.dot_dimension_numbers<[1], [0], [0], [1], [0, 0, 1, 1], [], []>} : vector<512x128xbf16>, vector<128x256xbf16>, vector<512x256xf32> -> vector<512x256xf32>
    %cst_16 = arith.constant dense<0.000000e+00> : vector<256xf32>
    %51 = vector.multi_reduction <add>, %50, %cst_16 [0] : vector<512x256xf32> to vector<256xf32>
    %52 = vector.shape_cast %51 : vector<256xf32> to vector<1x256xf32>
    %53 = vector.extract_strided_slice %52 {offsets = [0, 0], sizes = [1, 64], strides = [1, 1]} : vector<1x256xf32> to vector<1x64xf32>
    %54 = vector.extract_strided_slice %52 {offsets = [0, 64], sizes = [1, 64], strides = [1, 1]} : vector<1x256xf32> to vector<1x64xf32>
    %55 = arith.addf %53, %54 : vector<1x64xf32>
    %56 = vector.extract_strided_slice %52 {offsets = [0, 128], sizes = [1, 64], strides = [1, 1]} : vector<1x256xf32> to vector<1x64xf32>
    %57 = arith.addf %55, %56 : vector<1x64xf32>
    %58 = vector.extract_strided_slice %52 {offsets = [0, 192], sizes = [1, 64], strides = [1, 1]} : vector<1x256xf32> to vector<1x64xf32>
    %59 = arith.addf %57, %58 : vector<1x64xf32>
    %cst_17 = arith.constant 4.8828125E-4 : f32
    %60 = vector.broadcast %cst_17 : f32 to vector<1x64xf32>
    %61 = arith.mulf %59, %60 : vector<1x64xf32>
    %62 = tpu.concatenate %61, %61, %61, %61 in 1 : vector<1x64xf32>, vector<1x64xf32>, vector<1x64xf32>, vector<1x64xf32> -> vector<1x256xf32>
    %63 = vector.broadcast %62 : vector<1x256xf32> to vector<512x256xf32>
    %64 = arith.subf %50, %63 : vector<512x256xf32>
    %65 = arith.mulf %64, %64 : vector<512x256xf32>
    %cst_18 = arith.constant dense<0.000000e+00> : vector<256xf32>
    %66 = vector.multi_reduction <add>, %65, %cst_18 [0] : vector<512x256xf32> to vector<256xf32>
    %67 = vector.shape_cast %66 : vector<256xf32> to vector<1x256xf32>
    %68 = vector.extract_strided_slice %67 {offsets = [0, 0], sizes = [1, 64], strides = [1, 1]} : vector<1x256xf32> to vector<1x64xf32>
    %69 = vector.extract_strided_slice %67 {offsets = [0, 64], sizes = [1, 64], strides = [1, 1]} : vector<1x256xf32> to vector<1x64xf32>
    %70 = arith.addf %68, %69 : vector<1x64xf32>
    %71 = vector.extract_strided_slice %67 {offsets = [0, 128], sizes = [1, 64], strides = [1, 1]} : vector<1x256xf32> to vector<1x64xf32>
    %72 = arith.addf %70, %71 : vector<1x64xf32>
    %73 = vector.extract_strided_slice %67 {offsets = [0, 192], sizes = [1, 64], strides = [1, 1]} : vector<1x256xf32> to vector<1x64xf32>
    %74 = arith.addf %72, %73 : vector<1x64xf32>
    %cst_19 = arith.constant 4.8828125E-4 : f32
    %75 = vector.broadcast %cst_19 : f32 to vector<1x64xf32>
    %76 = arith.mulf %74, %75 : vector<1x64xf32>
    %c0_20 = arith.constant 0 : index
    %c0_21 = arith.constant 0 : index
    %77 = vector.load %arg5[%c0_20, %c0_21] : memref<1x64xf32, #tpu.memory_space<vmem>>, vector<1x64xf32>
    %cst_22 = arith.constant 9.99999974E-6 : f32
    %78 = vector.broadcast %cst_22 : f32 to vector<1x64xf32>
    %79 = arith.addf %76, %78 : vector<1x64xf32>
    %80 = math.rsqrt %79 : vector<1x64xf32>
    %81 = arith.mulf %77, %80 : vector<1x64xf32>
    %82 = tpu.concatenate %81, %81, %81, %81 in 1 : vector<1x64xf32>, vector<1x64xf32>, vector<1x64xf32>, vector<1x64xf32> -> vector<1x256xf32>
    %c0_23 = arith.constant 0 : index
    %c0_24 = arith.constant 0 : index
    %83 = vector.load %arg6[%c0_23, %c0_24] : memref<1x64xf32, #tpu.memory_space<vmem>>, vector<1x64xf32>
    %84 = tpu.concatenate %83, %83, %83, %83 in 1 : vector<1x64xf32>, vector<1x64xf32>, vector<1x64xf32>, vector<1x64xf32> -> vector<1x256xf32>
    %85 = vector.broadcast %82 : vector<1x256xf32> to vector<512x256xf32>
    %86 = arith.mulf %64, %85 : vector<512x256xf32>
    %87 = vector.broadcast %84 : vector<1x256xf32> to vector<512x256xf32>
    %88 = arith.addf %86, %87 : vector<512x256xf32>
    %cst_25 = arith.constant 0.000000e+00 : f32
    %89 = vector.broadcast %cst_25 : f32 to vector<512x256xf32>
    %90 = arith.maximumf %88, %89 : vector<512x256xf32>
    %c0_26 = arith.constant 0 : index
    %c0_27 = arith.constant 0 : index
    %91 = vector.load %arg7[%c0_26, %c0_27] : memref<256x4xf32, #tpu.memory_space<vmem>>, vector<256x4xf32>
    %cst_28 = arith.constant dense<0.000000e+00> : vector<512x4xf32>
    %92 = tpu.matmul %90, %91, %cst_28 {dimension_numbers = #tpu.dot_dimension_numbers<[1], [0], [0], [1], [0, 0, 1, 1], [], []>} : vector<512x256xf32>, vector<256x4xf32>, vector<512x4xf32> -> vector<512x4xf32>
    %c0_29 = arith.constant 0 : index
    %c0_30 = arith.constant 0 : index
    %93 = vector.load %arg8[%c0_29, %c0_30] : memref<1x1xf32, #tpu.memory_space<vmem>>, vector<1x1xf32>
    %94 = vector.broadcast %93 : vector<1x1xf32> to vector<512x4xf32>
    %95 = arith.addf %92, %94 : vector<512x4xf32>
    %c0_31 = arith.constant 0 : index
    %c0_32 = arith.constant 0 : index
    %96 = vector.load %arg9[%c0_31, %c0_32] : memref<512x4xf32, #tpu.memory_space<vmem>>, vector<512x4xf32>
    %97 = math.absf %95 : vector<512x4xf32>
    %cst_33 = arith.constant 0.000000e+00 : f32
    %98 = vector.broadcast %cst_33 : f32 to vector<512x4xf32>
    %99 = arith.subf %98, %97 : vector<512x4xf32>
    %100 = math.exp %99 : vector<512x4xf32>
    %cst_34 = arith.constant 1.500000e+01 : f32
    %101 = vector.broadcast %cst_34 : f32 to vector<512x4xf32>
    %102 = arith.cmpf ogt, %97, %101 : vector<512x4xf32>
    %cst_35 = arith.constant 1.000000e+00 : f32
    %103 = vector.broadcast %cst_35 : f32 to vector<512x4xf32>
    %104 = arith.addf %103, %100 : vector<512x4xf32>
    %105 = math.log %104 : vector<512x4xf32>
    %106 = arith.select %102, %100, %105 : vector<512x4xi1>, vector<512x4xf32>
    %cst_36 = arith.constant 0.000000e+00 : f32
    %107 = vector.broadcast %cst_36 : f32 to vector<512x4xf32>
    %108 = arith.maximumf %95, %107 : vector<512x4xf32>
    %109 = arith.mulf %95, %96 : vector<512x4xf32>
    %110 = arith.subf %108, %109 : vector<512x4xf32>
    %111 = arith.addf %110, %106 : vector<512x4xf32>
    %c0_37 = arith.constant 0 : index
    %c0_38 = arith.constant 0 : index
    %112 = vector.load %arg10[%c0_37, %c0_38] : memref<512x4xf32, #tpu.memory_space<vmem>>, vector<512x4xf32>
    tpu.vector_store %arg10[%c0_37, %c0_38], %95 {strides = array<i32>} : memref<512x4xf32, #tpu.memory_space<vmem>>, vector<512x4xf32>,
    %cst_39 = arith.constant dense<0.000000e+00> : vector<512xf32>
    %113 = vector.multi_reduction <add>, %111, %cst_39 [1] : vector<512x4xf32> to vector<512xf32>
    %114 = vector.shape_cast %113 : vector<512xf32> to vector<512x1xf32>
    %cst_40 = arith.constant dense<0.000000e+00> : vector<1xf32>
    %115 = vector.multi_reduction <add>, %114, %cst_40 [0] : vector<512x1xf32> to vector<1xf32>
    %116 = vector.shape_cast %115 : vector<1xf32> to vector<1x1xf32>
    %cst_41 = arith.constant 4.8828125E-4 : f32
    %117 = vector.broadcast %cst_41 : f32 to vector<1x1xf32>
    %118 = arith.mulf %116, %117 : vector<1x1xf32>
    %c0_42 = arith.constant 0 : index
    %c0_43 = arith.constant 0 : index
    %119 = vector.load %arg11[%c0_42, %c0_43] : memref<1x1xf32, #tpu.memory_space<vmem>>, vector<1x1xf32>
    tpu.vector_store %arg11[%c0_42, %c0_43], %118 {strides = array<i32>} : memref<1x1xf32, #tpu.memory_space<vmem>>, vector<1x1xf32>,
    return
  }
}

</mosaic_0001>

<llo_original>
// kernel: mask_head_forward.1
$region0: #{mask_head_forward.1}
  #allocation0 [shape = 'u32[]', space=smem, size = 0x4, offset = 0x4, fixed_abs, tag = 'smem constant byte address 0x4 - core index']
  #allocation1 [shape = 'u32[144,128]{1,0:T(1,128)}', space=vmem, size = 0x12000, scoped, tag = 'internal scratch']
  #allocation2 [shape = 'f32[1,1]{1,0:T(1,128)S(1)}', space=vmem, size = 0x200, scoped, tag = 'scoped memory for mask_head_forward.1']
  %s0 = inlined_call_operand.vmem [shape: bf16[128,256], index: 0, kind: input, shape index: {}]
  %s1 = inlined_call_operand.vmem [shape: bf16[256,512], index: 1, kind: input, shape index: {}]
  %s2 = inlined_call_operand.vmem [shape: f32[1,128], index: 2, kind: input, shape index: {}]
  %s3 = inlined_call_operand.vmem [shape: f32[1,128], index: 3, kind: input, shape index: {}]
  %s4 = inlined_call_operand.vmem [shape: bf16[128,256], index: 4, kind: input, shape index: {}]
  %s5 = inlined_call_operand.vmem [shape: f32[1,64], index: 5, kind: input, shape index: {}]
  %s6 = inlined_call_operand.vmem [shape: f32[1,64], index: 6, kind: input, shape index: {}]
  %s7 = inlined_call_operand.vmem [shape: f32[256,4], index: 7, kind: input, shape index: {}]
  %s8 = inlined_call_operand.<no memory space> [shape: f32[1,1], index: 8, kind: input, shape index: {}]
  %s9 = inlined_call_operand.vmem [shape: f32[512,4], index: 9, kind: input, shape index: {}]
  %s10 = inlined_call_operand.vmem [shape: f32[512,4], index: 10, kind: output, shape index: {0}]
  %s11 = inlined_call_operand.hbm [shape: f32[1,1], index: 11, kind: output, shape index: {1}]
  %12 = xla_tuple %s10, %s11
  %s13 = sld [smem:[#allocation0]]
  $region58: #{mask_head_forward.1} parent=0
    _
  %s15 = ssub.s32 1, %s13
  %s16 = scalar_select 0, %s15, %s13
  %v17 = vstv %s8
  %18 = vst [vmem:[#allocation2] sm:$0x1] %v17
  $region1: #{mask_head_forward.1} parent=0
    #allocation3 [shape = 'u8[512]{0}', space=vmem, size = 0x400, scoped, tag = 'output window, operand 1, single buffered']
    #allocation4 [shape = 's32[1]{0}', space=sflag, size = 0x4, scoped, tag = 'scoped memory for mask_head_forward.1']
    %19 = vsyncpa [#allocation4], 0
    // Predicated region
    $region2: #{mask_head_forward.1} parent=1 // pred_check
      _
    $region3: #{mask_head_forward.1} parent=1 // pred_check_branch
      %21 = sbr.rel (0) target = $region5
    $region4: #{mask_head_forward.1} parent=1 // pred_region
      _
    $region5: #{mask_head_forward.1} parent=1 // pred_fallthru
      _
    // Predicated region
    $region6: #{mask_head_forward.1} parent=1 // pred_check
      _
    $region7: #{mask_head_forward.1} parent=1 // pred_check_branch
      %23 = sbr.rel (0) target = $region9
    $region8: #{mask_head_forward.1} parent=1 // pred_region
      _
    $region9: #{mask_head_forward.1} parent=1 // pred_fallthru
      _
    // Predicated region
    $region10: #{mask_head_forward.1} parent=1 // pred_check
      _
    $region11: #{mask_head_forward.1} parent=1 // pred_check_branch
      %25 = sbr.rel (0) target = $region13
    $region12: #{mask_head_forward.1} parent=1 // pred_region
      _
    $region13: #{mask_head_forward.1} parent=1 // pred_fallthru
      _
    // Predicated region
    $region14: #{mask_head_forward.1} parent=1 // pred_check
      _
    $region15: #{mask_head_forward.1} parent=1 // pred_check_branch
      %27 = sbr.rel (0) target = $region17
    $region16: #{mask_head_forward.1} parent=1 // pred_region
      _
    $region17: #{mask_head_forward.1} parent=1 // pred_fallthru
      _
    // Predicated region
    $region18: #{mask_head_forward.1} parent=1 // pred_check
      _
    $region19: #{mask_head_forward.1} parent=1 // pred_check_branch
      %29 = sbr.rel (0) target = $region21
    $region20: #{mask_head_forward.1} parent=1 // pred_region
      _
    $region21: #{mask_head_forward.1} parent=1 // pred_fallthru
      _
    // Predicated region
    $region22: #{mask_head_forward.1} parent=1 // pred_check
      _
    $region23: #{mask_head_forward.1} parent=1 // pred_check_branch
      %31 = sbr.rel (0) target = $region25
    $region24: #{mask_head_forward.1} parent=1 // pred_region
      _
    $region25: #{mask_head_forward.1} parent=1 // pred_fallthru
      _
    // Predicated region
    $region26: #{mask_head_forward.1} parent=1 // pred_check
      _
    $region27: #{mask_head_forward.1} parent=1 // pred_check_branch
      %33 = sbr.rel (0) target = $region29
    $region28: #{mask_head_forward.1} parent=1 // pred_region
      _
    $region29: #{mask_head_forward.1} parent=1 // pred_fallthru
      _
    // Predicated region
    $region30: #{mask_head_forward.1} parent=1 // pred_check
      _
    $region31: #{mask_head_forward.1} parent=1 // pred_check_branch
      %35 = sbr.rel (0) target = $region33
    $region32: #{mask_head_forward.1} parent=1 // pred_region
      _
    $region33: #{mask_head_forward.1} parent=1 // pred_fallthru
      _
    // Predicated region
    $region34: #{mask_head_forward.1} parent=1 // pred_check
      _
    $region35: #{mask_head_forward.1} parent=1 // pred_check_branch
      %37 = sbr.rel (0) target = $region37
    $region36: #{mask_head_forward.1} parent=1 // pred_region
      _
    $region37: #{mask_head_forward.1} parent=1 // pred_fallthru
      _
    // Predicated region
    $region38: #{mask_head_forward.1} parent=1 // pred_check
      _
    $region39: #{mask_head_forward.1} parent=1 // pred_check_branch
      %39 = sbr.rel (0) target = $region41
    $region40: #{mask_head_forward.1} parent=1 // pred_region
      _
    $region41: #{mask_head_forward.1} parent=1 // pred_fallthru
      _
    %v41 = vld [vmem:[%s0] sm:$0xff]
    %v42 = vld [vmem:[%s0 + $0x8] sm:$0xff]
    %v43 = vld [vmem:[%s0 + $0x10] sm:$0xff]
    %v44 = vld [vmem:[%s0 + $0x18] sm:$0xff]
    %v45 = vld [vmem:[%s0 + $0x20] sm:$0xff]
    %v46 = vld [vmem:[%s0 + $0x28] sm:$0xff]
    %v47 = vld [vmem:[%s0 + $0x30] sm:$0xff]
    %v48 = vld [vmem:[%s0 + $0x38] sm:$0xff]
    %v49 = vld [vmem:[%s0 + $0x40] sm:$0xff]
    %v50 = vld [vmem:[%s0 + $0x48] sm:$0xff]
    %v51 = vld [vmem:[%s0 + $0x50] sm:$0xff]
    %v52 = vld [vmem:[%s0 + $0x58] sm:$0xff]
    %v53 = vld [vmem:[%s0 + $0x60] sm:$0xff]
    %v54 = vld [vmem:[%s0 + $0x68] sm:$0xff]
    %v55 = vld [vmem:[%s0 + $0x70] sm:$0xff]
    %v56 = vld [vmem:[%s0 + $0x78] sm:$0xff]
    %v57 = vld [vmem:[%s1] sm:$0xff]
    %v58 = vld [vmem:[%s1 + $0x8] sm:$0xff]
    %v59 = vld [vmem:[%s1 + $0x10] sm:$0xff]
    %v60 = vld [vmem:[%s1 + $0x18] sm:$0xff]
    %v61 = vld [vmem:[%s1 + $0x20] sm:$0xff]
    %v62 = vld [vmem:[%s1 + $0x28] sm:$0xff]
    %v63 = vld [vmem:[%s1 + $0x30] sm:$0xff]
    %v64 = vld [vmem:[%s1 + $0x38] sm:$0xff]
    %v65 = vld [vmem:[%s1 + $0x40] sm:$0xff]
    %v66 = vld [vmem:[%s1 + $0x48] sm:$0xff]
    %v67 = vld [vmem:[%s1 + $0x50] sm:$0xff]
    %v68 = vld [vmem:[%s1 + $0x58] sm:$0xff]
    %v69 = vld [vmem:[%s1 + $0x60] sm:$0xff]
    %v70 = vld [vmem:[%s1 + $0x68] sm:$0xff]
    %v71 = vld [vmem:[%s1 + $0x70] sm:$0xff]
    %v72 = vld [vmem:[%s1 + $0x78] sm:$0xff]
    %v73 = vld [vmem:[%s1 + $0x80] sm:$0xff]
    %v74 = vld [vmem:[%s1 + $0x88] sm:$0xff]
    %v75 = vld [vmem:[%s1 + $0x90] sm:$0xff]
    %v76 = vld [vmem:[%s1 + $0x98] sm:$0xff]
    %v77 = vld [vmem:[%s1 + $0xa0] sm:$0xff]
    %v78 = vld [vmem:[%s1 + $0xa8] sm:$0xff]
    %v79 = vld [vmem:[%s1 + $0xb0] sm:$0xff]
    %v80 = vld [vmem:[%s1 + $0xb8] sm:$0xff]
    %v81 = vld [vmem:[%s1 + $0xc0] sm:$0xff]
    %v82 = vld [vmem:[%s1 + $0xc8] sm:$0xff]
    %v83 = vld [vmem:[%s1 + $0xd0] sm:$0xff]
    %v84 = vld [vmem:[%s1 + $0xd8] sm:$0xff]
    %v85 = vld [vmem:[%s1 + $0xe0] sm:$0xff]
    %v86 = vld [vmem:[%s1 + $0xe8] sm:$0xff]
    %v87 = vld [vmem:[%s1 + $0xf0] sm:$0xff]
    %v88 = vld [vmem:[%s1 + $0xf8] sm:$0xff]
    %v89 = vld [vmem:[%s1 + $0x100] sm:$0xff]
    %v90 = vld [vmem:[%s1 + $0x108] sm:$0xff]
    %v91 = vld [vmem:[%s1 + $0x110] sm:$0xff]
    %v92 = vld [vmem:[%s1 + $0x118] sm:$0xff]
    %v93 = vld [vmem:[%s1 + $0x120] sm:$0xff]
    %v94 = vld [vmem:[%s1 + $0x128] sm:$0xff]
    %v95 = vld [vmem:[%s1 + $0x130] sm:$0xff]
    %v96 = vld [vmem:[%s1 + $0x138] sm:$0xff]
    %v97 = vld [vmem:[%s1 + $0x140] sm:$0xff]
    %v98 = vld [vmem:[%s1 + $0x148] sm:$0xff]
    %v99 = vld [vmem:[%s1 + $0x150] sm:$0xff]
    %v100 = vld [vmem:[%s1 + $0x158] sm:$0xff]
    %v101 = vld [vmem:[%s1 + $0x160] sm:$0xff]
    %v102 = vld [vmem:[%s1 + $0x168] sm:$0xff]
    %v103 = vld [vmem:[%s1 + $0x170] sm:$0xff]
    %v104 = vld [vmem:[%s1 + $0x178] sm:$0xff]
    %v105 = vld [vmem:[%s1 + $0x180] sm:$0xff]
    %v106 = vld [vmem:[%s1 + $0x188] sm:$0xff]
    %v107 = vld [vmem:[%s1 + $0x190] sm:$0xff]
    %v108 = vld [vmem:[%s1 + $0x198] sm:$0xff]
    %v109 = vld [vmem:[%s1 + $0x1a0] sm:$0xff]
    %v110 = vld [vmem:[%s1 + $0x1a8] sm:$0xff]
    %v111 = vld [vmem:[%s1 + $0x1b0] sm:$0xff]
    %v112 = vld [vmem:[%s1 + $0x1b8] sm:$0xff]
    %v113 = vld [vmem:[%s1 + $0x1c0] sm:$0xff]
    %v114 = vld [vmem:[%s1 + $0x1c8] sm:$0xff]
    %v115 = vld [vmem:[%s1 + $0x1d0] sm:$0xff]
    %v116 = vld [vmem:[%s1 + $0x1d8] sm:$0xff]
    %v117 = vld [vmem:[%s1 + $0x1e0] sm:$0xff]
    %v118 = vld [vmem:[%s1 + $0x1e8] sm:$0xff]
    %v119 = vld [vmem:[%s1 + $0x1f0] sm:$0xff]
    %v120 = vld [vmem:[%s1 + $0x1f8] sm:$0xff]
    %v137 = vunpack.c.l.b16 %v41
    %v138 = vunpack.c.h.b16 %v41
    %v139 = vunpack.c.l.b16 %v42
    %v140 = vunpack.c.h.b16 %v42
    %v141 = vunpack.c.l.b16 %v43
    %v142 = vunpack.c.h.b16 %v43
    %v143 = vunpack.c.l.b16 %v44
    %v144 = vunpack.c.h.b16 %v44
    %v145 = vunpack.c.l.b16 %v45
    %v146 = vunpack.c.h.b16 %v45
    %v147 = vunpack.c.l.b16 %v46
    %v148 = vunpack.c.h.b16 %v46
    %v149 = vunpack.c.l.b16 %v47
    %v150 = vunpack.c.h.b16 %v47
    %v151 = vunpack.c.l.b16 %v48
    %v152 = vunpack.c.h.b16 %v48
    %v153 = vunpack.c.l.b16 %v49
    %v154 = vunpack.c.h.b16 %v49
    %v155 = vunpack.c.l.b16 %v50
    %v156 = vunpack.c.h.b16 %v50
    %v157 = vunpack.c.l.b16 %v51
    %v158 = vunpack.c.h.b16 %v51
    %v159 = vunpack.c.l.b16 %v52
    %v160 = vunpack.c.h.b16 %v52
    %v161 = vunpack.c.l.b16 %v53
    %v162 = vunpack.c.h.b16 %v53
    %v163 = vunpack.c.l.b16 %v54
    %v164 = vunpack.c.h.b16 %v54
    %v165 = vunpack.c.l.b16 %v55
    %v166 = vunpack.c.h.b16 %v55
    %v167 = vunpack.c.l.b16 %v56
    %v168 = vunpack.c.h.b16 %v56
    %v169 = vpack.c.b16 %v139, %v137
    %v170 = vpack.c.b16 %v140, %v138
    %v171 = vpack.c.b16 %v143, %v141
    %v172 = vpack.c.b16 %v144, %v142
    %v173 = vpack.c.b16 %v147, %v145
    %v174 = vpack.c.b16 %v148, %v146
    %v175 = vpack.c.b16 %v151, %v149
    %v176 = vpack.c.b16 %v152, %v150
    %v177 = vpack.c.b16 %v155, %v153
    %v178 = vpack.c.b16 %v156, %v154
    %v179 = vpack.c.b16 %v159, %v157
    %v180 = vpack.c.b16 %v160, %v158
    %v181 = vpack.c.b16 %v163, %v161
    %v182 = vpack.c.b16 %v164, %v162
    %v183 = vpack.c.b16 %v167, %v165
    %v184 = vpack.c.b16 %v168, %v166
    %v265 = vunpack.c.l.b16 %v57
    %v266 = vunpack.c.h.b16 %v57
    %v267 = vunpack.c.l.b16 %v58
    %v268 = vunpack.c.h.b16 %v58
    %v269 = vunpack.c.l.b16 %v59
    %v270 = vunpack.c.h.b16 %v59
    %v271 = vunpack.c.l.b16 %v60
    %v272 = vunpack.c.h.b16 %v60
    %v273 = vunpack.c.l.b16 %v61
    %v274 = vunpack.c.h.b16 %v61
    %v275 = vunpack.c.l.b16 %v62
    %v276 = vunpack.c.h.b16 %v62
    %v277 = vunpack.c.l.b16 %v63
    %v278 = vunpack.c.h.b16 %v63
    %v279 = vunpack.c.l.b16 %v64
    %v280 = vunpack.c.h.b16 %v64
    %v281 = vunpack.c.l.b16 %v65
    %v282 = vunpack.c.h.b16 %v65
    %v283 = vunpack.c.l.b16 %v66
    %v284 = vunpack.c.h.b16 %v66
    %v285 = vunpack.c.l.b16 %v67
    %v286 = vunpack.c.h.b16 %v67
    %v287 = vunpack.c.l.b16 %v68
    %v288 = vunpack.c.h.b16 %v68
    %v289 = vunpack.c.l.b16 %v69
    %v290 = vunpack.c.h.b16 %v69
    %v291 = vunpack.c.l.b16 %v70
    %v292 = vunpack.c.h.b16 %v70
    %v293 = vunpack.c.l.b16 %v71
    %v294 = vunpack.c.h.b16 %v71
    %v295 = vunpack.c.l.b16 %v72
    %v296 = vunpack.c.h.b16 %v72
    %v297 = vunpack.c.l.b16 %v73
    %v298 = vunpack.c.h.b16 %v73
    %v299 = vunpack.c.l.b16 %v74
    %v300 = vunpack.c.h.b16 %v74
    %v301 = vunpack.c.l.b16 %v75
    %v302 = vunpack.c.h.b16 %v75
    %v303 = vunpack.c.l.b16 %v76
    %v304 = vunpack.c.h.b16 %v76
    %v305 = vunpack.c.l.b16 %v77
    %v306 = vunpack.c.h.b16 %v77
    %v307 = vunpack.c.l.b16 %v78
    %v308 = vunpack.c.h.b16 %v78
    %v309 = vunpack.c.l.b16 %v79
    %v310 = vunpack.c.h.b16 %v79
    %v311 = vunpack.c.l.b16 %v80
    %v312 = vunpack.c.h.b16 %v80
    %v313 = vunpack.c.l.b16 %v81
    %v314 = vunpack.c.h.b16 %v81
    %v315 = vunpack.c.l.b16 %v82
    %v316 = vunpack.c.h.b16 %v82
    %v317 = vunpack.c.l.b16 %v83
    %v318 = vunpack.c.h.b16 %v83
    %v319 = vunpack.c.l.b16 %v84
    %v320 = vunpack.c.h.b16 %v84
    %v321 = vunpack.c.l.b16 %v85
    %v322 = vunpack.c.h.b16 %v85
    %v323 = vunpack.c.l.b16 %v86
    %v324 = vunpack.c.h.b16 %v86
    %v325 = vunpack.c.l.b16 %v87
    %v326 = vunpack.c.h.b16 %v87
    %v327 = vunpack.c.l.b16 %v88
    %v328 = vunpack.c.h.b16 %v88
    %v329 = vunpack.c.l.b16 %v89
    %v330 = vunpack.c.h.b16 %v89
    %v331 = vunpack.c.l.b16 %v90
    %v332 = vunpack.c.h.b16 %v90
    %v333 = vunpack.c.l.b16 %v91
    %v334 = vunpack.c.h.b16 %v91
    %v335 = vunpack.c.l.b16 %v92
    %v336 = vunpack.c.h.b16 %v92
    %v337 = vunpack.c.l.b16 %v93
    %v338 = vunpack.c.h.b16 %v93
    %v339 = vunpack.c.l.b16 %v94
    %v340 = vunpack.c.h.b16 %v94
    %v341 = vunpack.c.l.b16 %v95
    %v342 = vunpack.c.h.b16 %v95
    %v343 = vunpack.c.l.b16 %v96
    %v344 = vunpack.c.h.b16 %v96
    %v345 = vunpack.c.l.b16 %v97
    %v346 = vunpack.c.h.b16 %v97
    %v347 = vunpack.c.l.b16 %v98
    %v348 = vunpack.c.h.b16 %v98
    %v349 = vunpack.c.l.b16 %v99
    %v350 = vunpack.c.h.b16 %v99
    %v351 = vunpack.c.l.b16 %v100
    %v352 = vunpack.c.h.b16 %v100
    %v353 = vunpack.c.l.b16 %v101
    %v354 = vunpack.c.h.b16 %v101
    %v355 = vunpack.c.l.b16 %v102
    %v356 = vunpack.c.h.b16 %v102
    %v357 = vunpack.c.l.b16 %v103
    %v358 = vunpack.c.h.b16 %v103
    %v359 = vunpack.c.l.b16 %v104
    %v360 = vunpack.c.h.b16 %v104
    %v361 = vunpack.c.l.b16 %v105
    %v362 = vunpack.c.h.b16 %v105
    %v363 = vunpack.c.l.b16 %v106
    %v364 = vunpack.c.h.b16 %v106
    %v365 = vunpack.c.l.b16 %v107
    %v366 = vunpack.c.h.b16 %v107
    %v367 = vunpack.c.l.b16 %v108
    %v368 = vunpack.c.h.b16 %v108
    %v369 = vunpack.c.l.b16 %v109
    %v370 = vunpack.c.h.b16 %v109
    %v371 = vunpack.c.l.b16 %v110
    %v372 = vunpack.c.h.b16 %v110
    %v373 = vunpack.c.l.b16 %v111
    %v374 = vunpack.c.h.b16 %v111
    %v375 = vunpack.c.l.b16 %v112
    %v376 = vunpack.c.h.b16 %v112
    %v377 = vunpack.c.l.b16 %v113
    %v378 = vunpack.c.h.b16 %v113
    %v379 = vunpack.c.l.b16 %v114
    %v380 = vunpack.c.h.b16 %v114
    %v381 = vunpack.c.l.b16 %v115
    %v382 = vunpack.c.h.b16 %v115
    %v383 = vunpack.c.l.b16 %v116
    %v384 = vunpack.c.h.b16 %v116
    %v385 = vunpack.c.l.b16 %v117
    %v386 = vunpack.c.h.b16 %v117
    %v387 = vunpack.c.l.b16 %v118
    %v388 = vunpack.c.h.b16 %v118
    %v389 = vunpack.c.l.b16 %v119
    %v390 = vunpack.c.h.b16 %v119
    %v391 = vunpack.c.l.b16 %v120
    %v392 = vunpack.c.h.b16 %v120
    %v393 = vpack.c.b16 %v269, %v265
    %v394 = vpack.c.b16 %v270, %v266
    %v395 = vpack.c.b16 %v271, %v267
    %v396 = vpack.c.b16 %v272, %v268
    %v397 = vpack.c.b16 %v277, %v273
    %v398 = vpack.c.b16 %v278, %v274
    %v399 = vpack.c.b16 %v279, %v275
    %v400 = vpack.c.b16 %v280, %v276
    %v401 = vpack.c.b16 %v285, %v281
    %v402 = vpack.c.b16 %v286, %v282
    %v403 = vpack.c.b16 %v287, %v283
    %v404 = vpack.c.b16 %v288, %v284
    %v405 = vpack.c.b16 %v293, %v289
    %v406 = vpack.c.b16 %v294, %v290
    %v407 = vpack.c.b16 %v295, %v291
    %v408 = vpack.c.b16 %v296, %v292
    %v409 = vpack.c.b16 %v301, %v297
    %v410 = vpack.c.b16 %v302, %v298
    %v411 = vpack.c.b16 %v303, %v299
    %v412 = vpack.c.b16 %v304, %v300
    %v413 = vpack.c.b16 %v309, %v305
    %v414 = vpack.c.b16 %v310, %v306
    %v415 = vpack.c.b16 %v311, %v307
    %v416 = vpack.c.b16 %v312, %v308
    %v417 = vpack.c.b16 %v317, %v313
    %v418 = vpack.c.b16 %v318, %v314
    %v419 = vpack.c.b16 %v319, %v315
    %v420 = vpack.c.b16 %v320, %v316
    %v421 = vpack.c.b16 %v325, %v321
    %v422 = vpack.c.b16 %v326, %v322
    %v423 = vpack.c.b16 %v327, %v323
    %v424 = vpack.c.b16 %v328, %v324
    %v425 = vpack.c.b16 %v333, %v329
    %v426 = vpack.c.b16 %v334, %v330
    %v427 = vpack.c.b16 %v335, %v331
    %v428 = vpack.c.b16 %v336, %v332
    %v429 = vpack.c.b16 %v341, %v337
    %v430 = vpack.c.b16 %v342, %v338
    %v431 = vpack.c.b16 %v343, %v339
    %v432 = vpack.c.b16 %v344, %v340
    %v433 = vpack.c.b16 %v349, %v345
    %v434 = vpack.c.b16 %v350, %v346
    %v435 = vpack.c.b16 %v351, %v347
    %v436 = vpack.c.b16 %v352, %v348
    %v437 = vpack.c.b16 %v357, %v353
    %v438 = vpack.c.b16 %v358, %v354
    %v439 = vpack.c.b16 %v359, %v355
    %v440 = vpack.c.b16 %v360, %v356
    %v441 = vpack.c.b16 %v365, %v361
    %v442 = vpack.c.b16 %v366, %v362
    %v443 = vpack.c.b16 %v367, %v363
    %v444 = vpack.c.b16 %v368, %v364
    %v445 = vpack.c.b16 %v373, %v369
    %v446 = vpack.c.b16 %v374, %v370
    %v447 = vpack.c.b16 %v375, %v371
    %v448 = vpack.c.b16 %v376, %v372
    %v449 = vpack.c.b16 %v381, %v377
    %v450 = vpack.c.b16 %v382, %v378
    %v451 = vpack.c.b16 %v383, %v379
    %v452 = vpack.c.b16 %v384, %v380
    %v453 = vpack.c.b16 %v389, %v385
    %v454 = vpack.c.b16 %v390, %v386
    %v455 = vpack.c.b16 %v391, %v387
    %v456 = vpack.c.b16 %v392, %v388
    %521 = vmatprep.subr.bf16.mxu0 %v394
    %522 = vmatpush1.bf16.msra.mxu0 %v393
    %523 = vmatprep.subr.bf16.mxu0 %v398
    %524 = vmatpush1.bf16.msra.mxu0 %v397
    %525 = vmatprep.subr.bf16.mxu0 %v402
    %526 = vmatpush1.bf16.msra.mxu0 %v401
    %527 = vmatprep.subr.bf16.mxu0 %v406
    %528 = vmatpush1.bf16.msra.mxu0 %v405
    %529 = vmatprep.subr.bf16.mxu0 %v410
    %530 = vmatpush1.bf16.msra.mxu0 %v409
    %531 = vmatprep.subr.bf16.mxu0 %v414
    %532 = vmatpush1.bf16.msra.mxu0 %v413
    %533 = vmatprep.subr.bf16.mxu0 %v418
    %534 = vmatpush1.bf16.msra.mxu0 %v417
    %535 = vmatprep.subr.bf16.mxu0 %v422
    %536 = vmatpush1.bf16.msra.mxu0 %v421
    %537 = vmatprep.subr.bf16.mxu0 %v426
    %538 = vmatpush1.bf16.msra.mxu0 %v425
    %539 = vmatprep.subr.bf16.mxu0 %v430
    %540 = vmatpush1.bf16.msra.mxu0 %v429
    %541 = vmatprep.subr.bf16.mxu0 %v434
    %542 = vmatpush1.bf16.msra.mxu0 %v433
    %543 = vmatprep.subr.bf16.mxu0 %v438
    %544 = vmatpush1.bf16.msra.mxu0 %v437
    %545 = vmatprep.subr.bf16.mxu0 %v442
    %546 = vmatpush1.bf16.msra.mxu0 %v441
    %547 = vmatprep.subr.bf16.mxu0 %v446
    %548 = vmatpush1.bf16.msra.mxu0 %v445
    %549 = vmatprep.subr.bf16.mxu0 %v450
    %550 = vmatpush1.bf16.msra.mxu0 %v449
    %551 = vmatprep.subr.bf16.mxu0 %v454
    %552 = vmatpush1.bf16.msra.mxu0 %v453
    %553 = vmatprep.mubr.bf16.mxu0 %v170
    %554 = vmatmul.mubr.bf16.gmra.mrb[0].mxu0 %v169
    %v555 = vpop.f32.mrb[0].mxu0
    %v556 = vadd.f32 0.0, %v555
    %v557 = vpop.f32.mrb[0].mxu0
    %v558 = vadd.f32 0.0, %v557
    %v559 = vpop.f32.mrb[0].mxu0
    %v560 = vadd.f32 0.0, %v559
    %v561 = vpop.f32.mrb[0].mxu0
    %v562 = vadd.f32 0.0, %v561
    %563 = vmatprep.mubr.bf16.mxu0 %v172
    %564 = vmatmul.mubr.bf16.gmra.mrb[0].mxu0 %v171
    %v565 = vpop.f32.mrb[0].mxu0
    %v566 = vadd.f32 0.0, %v565
    %v567 = vpop.f32.mrb[0].mxu0
    %v568 = vadd.f32 0.0, %v567
    %v569 = vpop.f32.mrb[0].mxu0
    %v570 = vadd.f32 0.0, %v569
    %v571 = vpop.f32.mrb[0].mxu0
    %v572 = vadd.f32 0.0, %v571
    %573 = vmatprep.mubr.bf16.mxu0 %v174
    %574 = vmatmul.mubr.bf16.gmra.mrb[0].mxu0 %v173
    %v575 = vpop.f32.mrb[0].mxu0
    %v576 = vadd.f32 0.0, %v575
    %v577 = vpop.f32.mrb[0].mxu0
    %v578 = vadd.f32 0.0, %v577
    %v579 = vpop.f32.mrb[0].mxu0
    %v580 = vadd.f32 0.0, %v579
    %v581 = vpop.f32.mrb[0].mxu0
    %v582 = vadd.f32 0.0, %v581
    %583 = vmatprep.mubr.bf16.mxu0 %v176
    %584 = vmatmul.mubr.bf16.gmra.mrb[0].mxu0 %v175
    %v585 = vpop.f32.mrb[0].mxu0
    %v586 = vadd.f32 0.0, %v585
    %v587 = vpop.f32.mrb[0].mxu0
    %v588 = vadd.f32 0.0, %v587
    %v589 = vpop.f32.mrb[0].mxu0
    %v590 = vadd.f32 0.0, %v589
    %v591 = vpop.f32.mrb[0].mxu0
    %v592 = vadd.f32 0.0, %v591
    %593 = vmatprep.mubr.bf16.mxu0 %v178
    %594 = vmatmul.mubr.bf16.gmra.mrb[0].mxu0 %v177
    %v595 = vpop.f32.mrb[0].mxu0
    %v596 = vadd.f32 0.0, %v595
    %v597 = vpop.f32.mrb[0].mxu0
    %v598 = vadd.f32 0.0, %v597
    %v599 = vpop.f32.mrb[0].mxu0
    %v600 = vadd.f32 0.0, %v599
    %v601 = vpop.f32.mrb[0].mxu0
    %v602 = vadd.f32 0.0, %v601
    %603 = vmatprep.mubr.bf16.mxu0 %v180
    %604 = vmatmul.mubr.bf16.gmra.mrb[0].mxu0 %v179
    %v605 = vpop.f32.mrb[0].mxu0
    %v606 = vadd.f32 0.0, %v605
    %v607 = vpop.f32.mrb[0].mxu0
    %v608 = vadd.f32 0.0, %v607
    %v609 = vpop.f32.mrb[0].mxu0
    %v610 = vadd.f32 0.0, %v609
    %v611 = vpop.f32.mrb[0].mxu0
    %v612 = vadd.f32 0.0, %v611
    %613 = vmatprep.mubr.bf16.mxu0 %v182
    %614 = vmatmul.mubr.bf16.gmra.mrb[0].mxu0 %v181
    %v615 = vpop.f32.mrb[0].mxu0
    %v616 = vadd.f32 0.0, %v615
    %v617 = vpop.f32.mrb[0].mxu0
    %v618 = vadd.f32 0.0, %v617
    %v619 = vpop.f32.mrb[0].mxu0
    %v620 = vadd.f32 0.0, %v619
    %v621 = vpop.f32.mrb[0].mxu0
    %v622 = vadd.f32 0.0, %v621
    %623 = vmatprep.mubr.bf16.mxu0 %v184
    %624 = vmatmul.mubr.bf16.gmra.mrb[0].mxu0 %v183
    %v625 = vpop.f32.mrb[0].mxu0
    %v626 = vadd.f32 0.0, %v625
    %v627 = vpop.f32.mrb[0].mxu0
    %v628 = vadd.f32 0.0, %v627
    %v629 = vpop.f32.mrb[0].mxu0
    %v630 = vadd.f32 0.0, %v629
    %v631 = vpop.f32.mrb[0].mxu0
    %v632 = vadd.f32 0.0, %v631
    %633 = vdwg.mxu0
    %634 = vmatprep.subr.bf16.mxu0 %v396
    %635 = vmatpush1.bf16.msra.mxu0 %v395
    %636 = vmatprep.subr.bf16.mxu0 %v400
    %637 = vmatpush1.bf16.msra.mxu0 %v399
    %638 = vmatprep.subr.bf16.mxu0 %v404
    %639 = vmatpush1.bf16.msra.mxu0 %v403
    %640 = vmatprep.subr.bf16.mxu0 %v408
    %641 = vmatpush1.bf16.msra.mxu0 %v407
    %642 = vmatprep.subr.bf16.mxu0 %v412
    %643 = vmatpush1.bf16.msra.mxu0 %v411
    %644 = vmatprep.subr.bf16.mxu0 %v416
    %645 = vmatpush1.bf16.msra.mxu0 %v415
    %646 = vmatprep.subr.bf16.mxu0 %v420
    %647 = vmatpush1.bf16.msra.mxu0 %v419
    %648 = vmatprep.subr.bf16.mxu0 %v424
    %649 = vmatpush1.bf16.msra.mxu0 %v423
    %650 = vmatprep.subr.bf16.mxu0 %v428
    %651 = vmatpush1.bf16.msra.mxu0 %v427
    %652 = vmatprep.subr.bf16.mxu0 %v432
    %653 = vmatpush1.bf16.msra.mxu0 %v431
    %654 = vmatprep.subr.bf16.mxu0 %v436
    %655 = vmatpush1.bf16.msra.mxu0 %v435
    %656 = vmatprep.subr.bf16.mxu0 %v440
    %657 = vmatpush1.bf16.msra.mxu0 %v439
    %658 = vmatprep.subr.bf16.mxu0 %v444
    %659 = vmatpush1.bf16.msra.mxu0 %v443
    %660 = vmatprep.subr.bf16.mxu0 %v448
    %661 = vmatpush1.bf16.msra.mxu0 %v447
    %662 = vmatprep.subr.bf16.mxu0 %v452
    %663 = vmatpush1.bf16.msra.mxu0 %v451
    %664 = vmatprep.subr.bf16.mxu0 %v456
    %665 = vmatpush1.bf16.msra.mxu0 %v455
    %666 = vmatprep.mubr.bf16.mxu0 %v170
    %667 = vmatmul.mubr.bf16.gmra.mrb[0].mxu0 %v169
    %v668 = vpop.f32.mrb[0].mxu0
    %v669 = vadd.f32 0.0, %v668
    %v670 = vpop.f32.mrb[0].mxu0
    %v671 = vadd.f32 0.0, %v670
    %v672 = vpop.f32.mrb[0].mxu0
    %v673 = vadd.f32 0.0, %v672
    %v674 = vpop.f32.mrb[0].mxu0
    %v675 = vadd.f32 0.0, %v674
    %676 = vmatprep.mubr.bf16.mxu0 %v172
    %677 = vmatmul.mubr.bf16.gmra.mrb[0].mxu0 %v171
    %v678 = vpop.f32.mrb[0].mxu0
    %v679 = vadd.f32 0.0, %v678
    %v680 = vpop.f32.mrb[0].mxu0
    %v681 = vadd.f32 0.0, %v680
    %v682 = vpop.f32.mrb[0].mxu0
    %v683 = vadd.f32 0.0, %v682
    %v684 = vpop.f32.mrb[0].mxu0
    %v685 = vadd.f32 0.0, %v684
    %686 = vmatprep.mubr.bf16.mxu0 %v174
    %687 = vmatmul.mubr.bf16.gmra.mrb[0].mxu0 %v173
    %v688 = vpop.f32.mrb[0].mxu0
    %v689 = vadd.f32 0.0, %v688
    %v690 = vpop.f32.mrb[0].mxu0
    %v691 = vadd.f32 0.0, %v690
    %v692 = vpop.f32.mrb[0].mxu0
    %v693 = vadd.f32 0.0, %v692
    %v694 = vpop.f32.mrb[0].mxu0
    %v695 = vadd.f32 0.0, %v694
    %696 = vmatprep.mubr.bf16.mxu0 %v176
    %697 = vmatmul.mubr.bf16.gmra.mrb[0].mxu0 %v175
    %v698 = vpop.f32.mrb[0].mxu0
    %v699 = vadd.f32 0.0, %v698
    %v700 = vpop.f32.mrb[0].mxu0
    %v701 = vadd.f32 0.0, %v700
    %v702 = vpop.f32.mrb[0].mxu0
    %v703 = vadd.f32 0.0, %v702
    %v704 = vpop.f32.mrb[0].mxu0
    %v705 = vadd.f32 0.0, %v704
    %706 = vmatprep.mubr.bf16.mxu0 %v178
    %707 = vmatmul.mubr.bf16.gmra.mrb[0].mxu0 %v177
    %v708 = vpop.f32.mrb[0].mxu0
    %v709 = vadd.f32 0.0, %v708
    %v710 = vpop.f32.mrb[0].mxu0
    %v711 = vadd.f32 0.0, %v710
    %v712 = vpop.f32.mrb[0].mxu0
    %v713 = vadd.f32 0.0, %v712
    %v714 = vpop.f32.mrb[0].mxu0
    %v715 = vadd.f32 0.0, %v714
    %716 = vmatprep.mubr.bf16.mxu0 %v180
    %717 = vmatmul.mubr.bf16.gmra.mrb[0].mxu0 %v179
    %v718 = vpop.f32.mrb[0].mxu0
    %v719 = vadd.f32 0.0, %v718
    %v720 = vpop.f32.mrb[0].mxu0
    %v721 = vadd.f32 0.0, %v720
    %v722 = vpop.f32.mrb[0].mxu0
    %v723 = vadd.f32 0.0, %v722
    %v724 = vpop.f32.mrb[0].mxu0
    %v725 = vadd.f32 0.0, %v724
    %726 = vmatprep.mubr.bf16.mxu0 %v182
    %727 = vmatmul.mubr.bf16.gmra.mrb[0].mxu0 %v181
    %v728 = vpop.f32.mrb[0].mxu0
    %v729 = vadd.f32 0.0, %v728
    %v730 = vpop.f32.mrb[0].mxu0
    %v731 = vadd.f32 0.0, %v730
    %v732 = vpop.f32.mrb[0].mxu0
    %v733 = vadd.f32 0.0, %v732
    %v734 = vpop.f32.mrb[0].mxu0
    %v735 = vadd.f32 0.0, %v734
    %736 = vmatprep.mubr.bf16.mxu0 %v184
    %737 = vmatmul.mubr.bf16.gmra.mrb[0].mxu0 %v183
    %v738 = vpop.f32.mrb[0].mxu0
    %v739 = vadd.f32 0.0, %v738
    %v740 = vpop.f32.mrb[0].mxu0
    %v741 = vadd.f32 0.0, %v740
    %v742 = vpop.f32.mrb[0].mxu0
    %v743 = vadd.f32 0.0, %v742
    %v744 = vpop.f32.mrb[0].mxu0
    %v745 = vadd.f32 0.0, %v744
    %746 = vdwg.mxu0
    %v747 = vadd.f32 %v556, %v560
    %v748 = vadd.f32 %v747, %v566
    %v749 = vadd.f32 %v748, %v570
    %v750 = vadd.f32 %v749, %v576
    %v751 = vadd.f32 %v750, %v580
    %v752 = vadd.f32 %v751, %v586
    %v753 = vadd.f32 %v752, %v590
    %v754 = vadd.f32 %v753, %v596
    %v755 = vadd.f32 %v754, %v600
    %v756 = vadd.f32 %v755, %v606
    %v757 = vadd.f32 %v756, %v610
    %v758 = vadd.f32 %v757, %v616
    %v759 = vadd.f32 %v758, %v620
    %v760 = vadd.f32 %v759, %v626
    %v761 = vadd.f32 %v760, %v630
    %v762 = vrot.slane %v761, 4
    %v763 = vadd.f32 %v761, %v762
    %v764 = vrot.slane %v763, 2
    %v765 = vadd.f32 %v763, %v764
    %v766 = vrot.slane %v765, 1
    %v767 = vadd.f32 %v765, %v766
    %v768 = vadd.f32 %v558, %v562
    %v769 = vadd.f32 %v768, %v568
    %v770 = vadd.f32 %v769, %v572
    %v771 = vadd.f32 %v770, %v578
    %v772 = vadd.f32 %v771, %v582
    %v773 = vadd.f32 %v772, %v588
    %v774 = vadd.f32 %v773, %v592
    %v775 = vadd.f32 %v774, %v598
    %v776 = vadd.f32 %v775, %v602
    %v777 = vadd.f32 %v776, %v608
    %v778 = vadd.f32 %v777, %v612
    %v779 = vadd.f32 %v778, %v618
    %v780 = vadd.f32 %v779, %v622
    %v781 = vadd.f32 %v780, %v628
    %v782 = vadd.f32 %v781, %v632
    %v783 = vrot.slane %v782, 4
    %v784 = vadd.f32 %v782, %v783
    %v785 = vrot.slane %v784, 2
    %v786 = vadd.f32 %v784, %v785
    %v787 = vrot.slane %v786, 1
    %v788 = vadd.f32 %v786, %v787
    %v789 = vadd.f32 %v669, %v673
    %v790 = vadd.f32 %v789, %v679
    %v791 = vadd.f32 %v790, %v683
    %v792 = vadd.f32 %v791, %v689
    %v793 = vadd.f32 %v792, %v693
    %v794 = vadd.f32 %v793, %v699
    %v795 = vadd.f32 %v794, %v703
    %v796 = vadd.f32 %v795, %v709
    %v797 = vadd.f32 %v796, %v713
    %v798 = vadd.f32 %v797, %v719
    %v799 = vadd.f32 %v798, %v723
    %v800 = vadd.f32 %v799, %v729
    %v801 = vadd.f32 %v800, %v733
    %v802 = vadd.f32 %v801, %v739
    %v803 = vadd.f32 %v802, %v743
    %v804 = vrot.slane %v803, 4
    %v805 = vadd.f32 %v803, %v804
    %v806 = vrot.slane %v805, 2
    %v807 = vadd.f32 %v805, %v806
    %v808 = vrot.slane %v807, 1
    %v809 = vadd.f32 %v807, %v808
    %v810 = vadd.f32 %v671, %v675
    %v811 = vadd.f32 %v810, %v681
    %v812 = vadd.f32 %v811, %v685
    %v813 = vadd.f32 %v812, %v691
    %v814 = vadd.f32 %v813, %v695
    %v815 = vadd.f32 %v814, %v701
    %v816 = vadd.f32 %v815, %v705
    %v817 = vadd.f32 %v816, %v711
    %v818 = vadd.f32 %v817, %v715
    %v819 = vadd.f32 %v818, %v721
    %v820 = vadd.f32 %v819, %v725
    %v821 = vadd.f32 %v820, %v731
    %v822 = vadd.f32 %v821, %v735
    %v823 = vadd.f32 %v822, %v741
    %v824 = vadd.f32 %v823, %v745
    %v825 = vrot.slane %v824, 4
    %v826 = vadd.f32 %v824, %v825
    %v827 = vrot.slane %v826, 2
    %v828 = vadd.f32 %v826, %v827
    %v829 = vrot.slane %v828, 1
    %v830 = vadd.f32 %v828, %v829
    %v831 = vadd.f32 %v767, %v788
    %v832 = vadd.f32 %v831, %v809
    %v833 = vadd.f32 %v832, %v830
    %v834 = vmul.f32 %v833, 0.001953125
    %v835 = vlaneseq
    %v836 = vshrl.u32 %v835, 7
    %v837 = vsub.s32 0, %v836
    %v838 = vrot.slane %v834, %v837
    %v839 = vsub.f32 %v556, %v838
    %v840 = vsub.f32 %v558, %v838
    %v841 = vsub.f32 %v669, %v838
    %v842 = vsub.f32 %v671, %v838
    %v843 = vsub.f32 %v560, %v838
    %v844 = vsub.f32 %v562, %v838
    %v845 = vsub.f32 %v673, %v838
    %v846 = vsub.f32 %v675, %v838
    %v847 = vsub.f32 %v566, %v838
    %v848 = vsub.f32 %v568, %v838
    %v849 = vsub.f32 %v679, %v838
    %v850 = vsub.f32 %v681, %v838
    %v851 = vsub.f32 %v570, %v838
    %v852 = vsub.f32 %v572, %v838
    %v853 = vsub.f32 %v683, %v838
    %v854 = vsub.f32 %v685, %v838
    %v855 = vsub.f32 %v576, %v838
    %v856 = vsub.f32 %v578, %v838
    %v857 = vsub.f32 %v689, %v838
    %v858 = vsub.f32 %v691, %v838
    %v859 = vsub.f32 %v580, %v838
    %v860 = vsub.f32 %v582, %v838
    %v861 = vsub.f32 %v693, %v838
    %v862 = vsub.f32 %v695, %v838
    %v863 = vsub.f32 %v586, %v838
    %v864 = vsub.f32 %v588, %v838
    %v865 = vsub.f32 %v699, %v838
    %v866 = vsub.f32 %v701, %v838
    %v867 = vsub.f32 %v590, %v838
    %v868 = vsub.f32 %v592, %v838
    %v869 = vsub.f32 %v703, %v838
    %v870 = vsub.f32 %v705, %v838
    %v871 = vsub.f32 %v596, %v838
    %v872 = vsub.f32 %v598, %v838
    %v873 = vsub.f32 %v709, %v838
    %v874 = vsub.f32 %v711, %v838
    %v875 = vsub.f32 %v600, %v838
    %v876 = vsub.f32 %v602, %v838
    %v877 = vsub.f32 %v713, %v838
    %v878 = vsub.f32 %v715, %v838
    %v879 = vsub.f32 %v606, %v838
    %v880 = vsub.f32 %v608, %v838
    %v881 = vsub.f32 %v719, %v838
    %v882 = vsub.f32 %v721, %v838
    %v883 = vsub.f32 %v610, %v838
    %v884 = vsub.f32 %v612, %v838
    %v885 = vsub.f32 %v723, %v838
    %v886 = vsub.f32 %v725, %v838
    %v887 = vsub.f32 %v616, %v838
    %v888 = vsub.f32 %v618, %v838
    %v889 = vsub.f32 %v729, %v838
    %v890 = vsub.f32 %v731, %v838
    %v891 = vsub.f32 %v620, %v838
    %v892 = vsub.f32 %v622, %v838
    %v893 = vsub.f32 %v733, %v838
    %v894 = vsub.f32 %v735, %v838
    %v895 = vsub.f32 %v626, %v838
    %v896 = vsub.f32 %v628, %v838
    %v897 = vsub.f32 %v739, %v838
    %v898 = vsub.f32 %v741, %v838
    %v899 = vsub.f32 %v630, %v838
    %v900 = vsub.f32 %v632, %v838
    %v901 = vsub.f32 %v743, %v838
    %v902 = vsub.f32 %v745, %v838
    %v903 = vmul.f32 %v839, %v839
    %v904 = vmul.f32 %v840, %v840
    %v905 = vmul.f32 %v841, %v841
    %v906 = vmul.f32 %v842, %v842
    %v907 = vmul.f32 %v843, %v843
    %v908 = vmul.f32 %v844, %v844
    %v909 = vmul.f32 %v845, %v845
    %v910 = vmul.f32 %v846, %v846
    %v911 = vmul.f32 %v847, %v847
    %v912 = vmul.f32 %v848, %v848
    %v913 = vmul.f32 %v849, %v849
    %v914 = vmul.f32 %v850, %v850
    %v915 = vmul.f32 %v851, %v851
    %v916 = vmul.f32 %v852, %v852
    %v917 = vmul.f32 %v853, %v853
    %v918 = vmul.f32 %v854, %v854
    %v919 = vmul.f32 %v855, %v855
    %v920 = vmul.f32 %v856, %v856
    %v921 = vmul.f32 %v857, %v857
    %v922 = vmul.f32 %v858, %v858
    %v923 = vmul.f32 %v859, %v859
    %v924 = vmul.f32 %v860, %v860
    %v925 = vmul.f32 %v861, %v861
    %v926 = vmul.f32 %v862, %v862
    %v927 = vmul.f32 %v863, %v863
    %v928 = vmul.f32 %v864, %v864
    %v929 = vmul.f32 %v865, %v865
    %v930 = vmul.f32 %v866, %v866
    %v931 = vmul.f32 %v867, %v867
    %v932 = vmul.f32 %v868, %v868
    %v933 = vmul.f32 %v869, %v869
    %v934 = vmul.f32 %v870, %v870
    %v935 = vmul.f32 %v871, %v871
    %v936 = vmul.f32 %v872, %v872
    %v937 = vmul.f32 %v873, %v873
    %v938 = vmul.f32 %v874, %v874
    %v939 = vmul.f32 %v875, %v875
    %v940 = vmul.f32 %v876, %v876
    %v941 = vmul.f32 %v877, %v877
    %v942 = vmul.f32 %v878, %v878
    %v943 = vmul.f32 %v879, %v879
    %v944 = vmul.f32 %v880, %v880
    %v945 = vmul.f32 %v881, %v881
    %v946 = vmul.f32 %v882, %v882
    %v947 = vmul.f32 %v883, %v883
    %v948 = vmul.f32 %v884, %v884
    %v949 = vmul.f32 %v885, %v885
    %v950 = vmul.f32 %v886, %v886
    %v951 = vmul.f32 %v887, %v887
    %v952 = vmul.f32 %v888, %v888
    %v953 = vmul.f32 %v889, %v889
    %v954 = vmul.f32 %v890, %v890
    %v955 = vmul.f32 %v891, %v891
    %v956 = vmul.f32 %v892, %v892
    %v957 = vmul.f32 %v893, %v893
    %v958 = vmul.f32 %v894, %v894
    %v959 = vmul.f32 %v895, %v895
    %v960 = vmul.f32 %v896, %v896
    %v961 = vmul.f32 %v897, %v897
    %v962 = vmul.f32 %v898, %v898
    %v963 = vmul.f32 %v899, %v899
    %v964 = vmul.f32 %v900, %v900
    %v965 = vmul.f32 %v901, %v901
    %v966 = vmul.f32 %v902, %v902
    %v967 = vadd.f32 %v903, %v907
    %v968 = vadd.f32 %v967, %v911
    %v969 = vadd.f32 %v968, %v915
    %v970 = vadd.f32 %v969, %v919
    %v971 = vadd.f32 %v970, %v923
    %v972 = vadd.f32 %v971, %v927
    %v973 = vadd.f32 %v972, %v931
    %v974 = vadd.f32 %v973, %v935
    %v975 = vadd.f32 %v974, %v939
    %v976 = vadd.f32 %v975, %v943
    %v977 = vadd.f32 %v976, %v947
    %v978 = vadd.f32 %v977, %v951
    %v979 = vadd.f32 %v978, %v955
    %v980 = vadd.f32 %v979, %v959
    %v981 = vadd.f32 %v980, %v963
    %v982 = vrot.slane %v981, 4
    %v983 = vadd.f32 %v981, %v982
    %v984 = vrot.slane %v983, 2
    %v985 = vadd.f32 %v983, %v984
    %v986 = vrot.slane %v985, 1
    %v987 = vadd.f32 %v985, %v986
    %v988 = vadd.f32 %v904, %v908
    %v989 = vadd.f32 %v988, %v912
    %v990 = vadd.f32 %v989, %v916
    %v991 = vadd.f32 %v990, %v920
    %v992 = vadd.f32 %v991, %v924
    %v993 = vadd.f32 %v992, %v928
    %v994 = vadd.f32 %v993, %v932
    %v995 = vadd.f32 %v994, %v936
    %v996 = vadd.f32 %v995, %v940
    %v997 = vadd.f32 %v996, %v944
    %v998 = vadd.f32 %v997, %v948
    %v999 = vadd.f32 %v998, %v952
    %v1000 = vadd.f32 %v999, %v956
    %v1001 = vadd.f32 %v1000, %v960
    %v1002 = vadd.f32 %v1001, %v964
    %v1003 = vrot.slane %v1002, 4
    %v1004 = vadd.f32 %v1002, %v1003
    %v1005 = vrot.slane %v1004, 2
    %v1006 = vadd.f32 %v1004, %v1005
    %v1007 = vrot.slane %v1006, 1
    %v1008 = vadd.f32 %v1006, %v1007
    %v1009 = vadd.f32 %v905, %v909
    %v1010 = vadd.f32 %v1009, %v913
    %v1011 = vadd.f32 %v1010, %v917
    %v1012 = vadd.f32 %v1011, %v921
    %v1013 = vadd.f32 %v1012, %v925
    %v1014 = vadd.f32 %v1013, %v929
    %v1015 = vadd.f32 %v1014, %v933
    %v1016 = vadd.f32 %v1015, %v937
    %v1017 = vadd.f32 %v1016, %v941
    %v1018 = vadd.f32 %v1017, %v945
    %v1019 = vadd.f32 %v1018, %v949
    %v1020 = vadd.f32 %v1019, %v953
    %v1021 = vadd.f32 %v1020, %v957
    %v1022 = vadd.f32 %v1021, %v961
    %v1023 = vadd.f32 %v1022, %v965
    %v1024 = vrot.slane %v1023, 4
    %v1025 = vadd.f32 %v1023, %v1024
    %v1026 = vrot.slane %v1025, 2
    %v1027 = vadd.f32 %v1025, %v1026
    %v1028 = vrot.slane %v1027, 1
    %v1029 = vadd.f32 %v1027, %v1028
    %v1030 = vadd.f32 %v906, %v910
    %v1031 = vadd.f32 %v1030, %v914
    %v1032 = vadd.f32 %v1031, %v918
    %v1033 = vadd.f32 %v1032, %v922
    %v1034 = vadd.f32 %v1033, %v926
    %v1035 = vadd.f32 %v1034, %v930
    %v1036 = vadd.f32 %v1035, %v934
    %v1037 = vadd.f32 %v1036, %v938
    %v1038 = vadd.f32 %v1037, %v942
    %v1039 = vadd.f32 %v1038, %v946
    %v1040 = vadd.f32 %v1039, %v950
    %v1041 = vadd.f32 %v1040, %v954
    %v1042 = vadd.f32 %v1041, %v958
    %v1043 = vadd.f32 %v1042, %v962
    %v1044 = vadd.f32 %v1043, %v966
    %v1045 = vrot.slane %v1044, 4
    %v1046 = vadd.f32 %v1044, %v1045
    %v1047 = vrot.slane %v1046, 2
    %v1048 = vadd.f32 %v1046, %v1047
    %v1049 = vrot.slane %v1048, 1
    %v1050 = vadd.f32 %v1048, %v1049
    %v1051 = vadd.f32 %v987, %v1008
    %v1052 = vadd.f32 %v1051, %v1029
    %v1053 = vadd.f32 %v1052, %v1050
    %v1054 = vmul.f32 %v1053, 0.001953125
    %v1055 = vld [vmem:[%s2] sm:$0x1]
    %v1056 = vadd.f32 %v1054, 1e-05
    %v1057 = vrsqrt.pop %v1056
    %v1058 = vmul.f32 %v1055, %v1057
    %v1059 = vld [vmem:[%s3] sm:$0x1]
    %v1060 = vlaneseq
    %v1061 = vshrl.u32 %v1060, 7
    %v1062 = vsub.s32 0, %v1061
    %v1063 = vrot.slane %v1058, %v1062
    %v1064 = vmul.f32 %v839, %v1063
    %v1065 = vmul.f32 %v840, %v1063
    %v1066 = vmul.f32 %v841, %v1063
    %v1067 = vmul.f32 %v842, %v1063
    %v1068 = vmul.f32 %v843, %v1063
    %v1069 = vmul.f32 %v844, %v1063
    %v1070 = vmul.f32 %v845, %v1063
    %v1071 = vmul.f32 %v846, %v1063
    %v1072 = vmul.f32 %v847, %v1063
    %v1073 = vmul.f32 %v848, %v1063
    %v1074 = vmul.f32 %v849, %v1063
    %v1075 = vmul.f32 %v850, %v1063
    %v1076 = vmul.f32 %v851, %v1063
    %v1077 = vmul.f32 %v852, %v1063
    %v1078 = vmul.f32 %v853, %v1063
    %v1079 = vmul.f32 %v854, %v1063
    %v1080 = vmul.f32 %v855, %v1063
    %v1081 = vmul.f32 %v856, %v1063
    %v1082 = vmul.f32 %v857, %v1063
    %v1083 = vmul.f32 %v858, %v1063
    %v1084 = vmul.f32 %v859, %v1063
    %v1085 = vmul.f32 %v860, %v1063
    %v1086 = vmul.f32 %v861, %v1063
    %v1087 = vmul.f32 %v862, %v1063
    %v1088 = vmul.f32 %v863, %v1063
    %v1089 = vmul.f32 %v864, %v1063
    %v1090 = vmul.f32 %v865, %v1063
    %v1091 = vmul.f32 %v866, %v1063
    %v1092 = vmul.f32 %v867, %v1063
    %v1093 = vmul.f32 %v868, %v1063
    %v1094 = vmul.f32 %v869, %v1063
    %v1095 = vmul.f32 %v870, %v1063
    %v1096 = vmul.f32 %v871, %v1063
    %v1097 = vmul.f32 %v872, %v1063
    %v1098 = vmul.f32 %v873, %v1063
    %v1099 = vmul.f32 %v874, %v1063
    %v1100 = vmul.f32 %v875, %v1063
    %v1101 = vmul.f32 %v876, %v1063
    %v1102 = vmul.f32 %v877, %v1063
    %v1103 = vmul.f32 %v878, %v1063
    %v1104 = vmul.f32 %v879, %v1063
    %v1105 = vmul.f32 %v880, %v1063
    %v1106 = vmul.f32 %v881, %v1063
    %v1107 = vmul.f32 %v882, %v1063
    %v1108 = vmul.f32 %v883, %v1063
    %v1109 = vmul.f32 %v884, %v1063
    %v1110 = vmul.f32 %v885, %v1063
    %v1111 = vmul.f32 %v886, %v1063
    %v1112 = vmul.f32 %v887, %v1063
    %v1113 = vmul.f32 %v888, %v1063
    %v1114 = vmul.f32 %v889, %v1063
    %v1115 = vmul.f32 %v890, %v1063
    %v1116 = vmul.f32 %v891, %v1063
    %v1117 = vmul.f32 %v892, %v1063
    %v1118 = vmul.f32 %v893, %v1063
    %v1119 = vmul.f32 %v894, %v1063
    %v1120 = vmul.f32 %v895, %v1063
    %v1121 = vmul.f32 %v896, %v1063
    %v1122 = vmul.f32 %v897, %v1063
    %v1123 = vmul.f32 %v898, %v1063
    %v1124 = vmul.f32 %v899, %v1063
    %v1125 = vmul.f32 %v900, %v1063
    %v1126 = vmul.f32 %v901, %v1063
    %v1127 = vmul.f32 %v902, %v1063
    %v1128 = vlaneseq
    %v1129 = vshrl.u32 %v1128, 7
    %v1130 = vsub.s32 0, %v1129
    %v1131 = vrot.slane %v1059, %v1130
    %v1132 = vadd.f32 %v1064, %v1131
    %v1133 = vadd.f32 %v1065, %v1131
    %v1134 = vadd.f32 %v1066, %v1131
    %v1135 = vadd.f32 %v1067, %v1131
    %v1136 = vadd.f32 %v1068, %v1131
    %v1137 = vadd.f32 %v1069, %v1131
    %v1138 = vadd.f32 %v1070, %v1131
    %v1139 = vadd.f32 %v1071, %v1131
    %v1140 = vadd.f32 %v1072, %v1131
    %v1141 = vadd.f32 %v1073, %v1131
    %v1142 = vadd.f32 %v1074, %v1131
    %v1143 = vadd.f32 %v1075, %v1131
    %v1144 = vadd.f32 %v1076, %v1131
    %v1145 = vadd.f32 %v1077, %v1131
    %v1146 = vadd.f32 %v1078, %v1131
    %v1147 = vadd.f32 %v1079, %v1131
    %v1148 = vadd.f32 %v1080, %v1131
    %v1149 = vadd.f32 %v1081, %v1131
    %v1150 = vadd.f32 %v1082, %v1131
    %v1151 = vadd.f32 %v1083, %v1131
    %v1152 = vadd.f32 %v1084, %v1131
    %v1153 = vadd.f32 %v1085, %v1131
    %v1154 = vadd.f32 %v1086, %v1131
    %v1155 = vadd.f32 %v1087, %v1131
    %v1156 = vadd.f32 %v1088, %v1131
    %v1157 = vadd.f32 %v1089, %v1131
    %v1158 = vadd.f32 %v1090, %v1131
    %v1159 = vadd.f32 %v1091, %v1131
    %v1160 = vadd.f32 %v1092, %v1131
    %v1161 = vadd.f32 %v1093, %v1131
    %v1162 = vadd.f32 %v1094, %v1131
    %v1163 = vadd.f32 %v1095, %v1131
    %v1164 = vadd.f32 %v1096, %v1131
    %v1165 = vadd.f32 %v1097, %v1131
    %v1166 = vadd.f32 %v1098, %v1131
    %v1167 = vadd.f32 %v1099, %v1131
    %v1168 = vadd.f32 %v1100, %v1131
    %v1169 = vadd.f32 %v1101, %v1131
    %v1170 = vadd.f32 %v1102, %v1131
    %v1171 = vadd.f32 %v1103, %v1131
    %v1172 = vadd.f32 %v1104, %v1131
    %v1173 = vadd.f32 %v1105, %v1131
    %v1174 = vadd.f32 %v1106, %v1131
    %v1175 = vadd.f32 %v1107, %v1131
    %v1176 = vadd.f32 %v1108, %v1131
    %v1177 = vadd.f32 %v1109, %v1131
    %v1178 = vadd.f32 %v1110, %v1131
    %v1179 = vadd.f32 %v1111, %v1131
    %v1180 = vadd.f32 %v1112, %v1131
    %v1181 = vadd.f32 %v1113, %v1131
    %v1182 = vadd.f32 %v1114, %v1131
    %v1183 = vadd.f32 %v1115, %v1131
    %v1184 = vadd.f32 %v1116, %v1131
    %v1185 = vadd.f32 %v1117, %v1131
    %v1186 = vadd.f32 %v1118, %v1131
    %v1187 = vadd.f32 %v1119, %v1131
    %v1188 = vadd.f32 %v1120, %v1131
    %v1189 = vadd.f32 %v1121, %v1131
    %v1190 = vadd.f32 %v1122, %v1131
    %v1191 = vadd.f32 %v1123, %v1131
    %v1192 = vadd.f32 %v1124, %v1131
    %v1193 = vadd.f32 %v1125, %v1131
    %v1194 = vadd.f32 %v1126, %v1131
    %v1195 = vadd.f32 %v1127, %v1131
    %v1196 = vmax.f32 %v1132, 0.0
    %v1197 = vmax.f32 %v1133, 0.0
    %v1198 = vmax.f32 %v1134, 0.0
    %v1199 = vmax.f32 %v1135, 0.0
    %v1200 = vmax.f32 %v1136, 0.0
    %v1201 = vmax.f32 %v1137, 0.0
    %v1202 = vmax.f32 %v1138, 0.0
    %v1203 = vmax.f32 %v1139, 0.0
    %v1204 = vmax.f32 %v1140, 0.0
    %v1205 = vmax.f32 %v1141, 0.0
    %v1206 = vmax.f32 %v1142, 0.0
    %v1207 = vmax.f32 %v1143, 0.0
    %v1208 = vmax.f32 %v1144, 0.0
    %v1209 = vmax.f32 %v1145, 0.0
    %v1210 = vmax.f32 %v1146, 0.0
    %v1211 = vmax.f32 %v1147, 0.0
    %v1212 = vmax.f32 %v1148, 0.0
    %v1213 = vmax.f32 %v1149, 0.0
    %v1214 = vmax.f32 %v1150, 0.0
    %v1215 = vmax.f32 %v1151, 0.0
    %v1216 = vmax.f32 %v1152, 0.0
    %v1217 = vmax.f32 %v1153, 0.0
    %v1218 = vmax.f32 %v1154, 0.0
    %v1219 = vmax.f32 %v1155, 0.0
    %v1220 = vmax.f32 %v1156, 0.0
    %v1221 = vmax.f32 %v1157, 0.0
    %v1222 = vmax.f32 %v1158, 0.0
    %v1223 = vmax.f32 %v1159, 0.0
    %v1224 = vmax.f32 %v1160, 0.0
    %v1225 = vmax.f32 %v1161, 0.0
    %v1226 = vmax.f32 %v1162, 0.0
    %v1227 = vmax.f32 %v1163, 0.0
    %v1228 = vmax.f32 %v1164, 0.0
    %v1229 = vmax.f32 %v1165, 0.0
    %v1230 = vmax.f32 %v1166, 0.0
    %v1231 = vmax.f32 %v1167, 0.0
    %v1232 = vmax.f32 %v1168, 0.0
    %v1233 = vmax.f32 %v1169, 0.0
    %v1234 = vmax.f32 %v1170, 0.0
    %v1235 = vmax.f32 %v1171, 0.0
    %v1236 = vmax.f32 %v1172, 0.0
    %v1237 = vmax.f32 %v1173, 0.0
    %v1238 = vmax.f32 %v1174, 0.0
    %v1239 = vmax.f32 %v1175, 0.0
    %v1240 = vmax.f32 %v1176, 0.0
    %v1241 = vmax.f32 %v1177, 0.0
    %v1242 = vmax.f32 %v1178, 0.0
    %v1243 = vmax.f32 %v1179, 0.0
    %v1244 = vmax.f32 %v1180, 0.0
    %v1245 = vmax.f32 %v1181, 0.0
    %v1246 = vmax.f32 %v1182, 0.0
    %v1247 = vmax.f32 %v1183, 0.0
    %v1248 = vmax.f32 %v1184, 0.0
    %v1249 = vmax.f32 %v1185, 0.0
    %v1250 = vmax.f32 %v1186, 0.0
    %v1251 = vmax.f32 %v1187, 0.0
    %v1252 = vmax.f32 %v1188, 0.0
    %v1253 = vmax.f32 %v1189, 0.0
    %v1254 = vmax.f32 %v1190, 0.0
    %v1255 = vmax.f32 %v1191, 0.0
    %v1256 = vmax.f32 %v1192, 0.0
    %v1257 = vmax.f32 %v1193, 0.0
    %v1258 = vmax.f32 %v1194, 0.0
    %v1259 = vmax.f32 %v1195, 0.0
    %v1260 = vpack.c.bf16 %v1200, %v1196
    %v1261 = vpack.c.bf16 %v1208, %v1204
    %v1262 = vpack.c.bf16 %v1216, %v1212
    %v1263 = vpack.c.bf16 %v1224, %v1220
    %v1264 = vpack.c.bf16 %v1232, %v1228
    %v1265 = vpack.c.bf16 %v1240, %v1236
    %v1266 = vpack.c.bf16 %v1248, %v1244
    %v1267 = vpack.c.bf16 %v1256, %v1252
    %v1268 = vpack.c.bf16 %v1201, %v1197
    %v1269 = vpack.c.bf16 %v1209, %v1205
    %v1270 = vpack.c.bf16 %v1217, %v1213
    %v1271 = vpack.c.bf16 %v1225, %v1221
    %v1272 = vpack.c.bf16 %v1233, %v1229
    %v1273 = vpack.c.bf16 %v1241, %v1237
    %v1274 = vpack.c.bf16 %v1249, %v1245
    %v1275 = vpack.c.bf16 %v1257, %v1253
    %v1276 = vpack.c.bf16 %v1202, %v1198
    %v1277 = vpack.c.bf16 %v1210, %v1206
    %v1278 = vpack.c.bf16 %v1218, %v1214
    %v1279 = vpack.c.bf16 %v1226, %v1222
    %v1280 = vpack.c.bf16 %v1234, %v1230
    %v1281 = vpack.c.bf16 %v1242, %v1238
    %v1282 = vpack.c.bf16 %v1250, %v1246
    %v1283 = vpack.c.bf16 %v1258, %v1254
    %v1284 = vpack.c.bf16 %v1203, %v1199
    %v1285 = vpack.c.bf16 %v1211, %v1207
    %v1286 = vpack.c.bf16 %v1219, %v1215
    %v1287 = vpack.c.bf16 %v1227, %v1223
    %v1288 = vpack.c.bf16 %v1235, %v1231
    %v1289 = vpack.c.bf16 %v1243, %v1239
    %v1290 = vpack.c.bf16 %v1251, %v1247
    %v1291 = vpack.c.bf16 %v1259, %v1255
    %v1292 = vld [vmem:[%s4] sm:$0xff]
    %v1293 = vld [vmem:[%s4 + $0x8] sm:$0xff]
    %v1294 = vld [vmem:[%s4 + $0x10] sm:$0xff]
    %v1295 = vld [vmem:[%s4 + $0x18] sm:$0xff]
    %v1296 = vld [vmem:[%s4 + $0x20] sm:$0xff]
    %v1297 = vld [vmem:[%s4 + $0x28] sm:$0xff]
    %v1298 = vld [vmem:[%s4 + $0x30] sm:$0xff]
    %v1299 = vld [vmem:[%s4 + $0x38] sm:$0xff]
    %v1300 = vld [vmem:[%s4 + $0x40] sm:$0xff]
    %v1301 = vld [vmem:[%s4 + $0x48] sm:$0xff]
    %v1302 = vld [vmem:[%s4 + $0x50] sm:$0xff]
    %v1303 = vld [vmem:[%s4 + $0x58] sm:$0xff]
    %v1304 = vld [vmem:[%s4 + $0x60] sm:$0xff]
    %v1305 = vld [vmem:[%s4 + $0x68] sm:$0xff]
    %v1306 = vld [vmem:[%s4 + $0x70] sm:$0xff]
    %v1307 = vld [vmem:[%s4 + $0x78] sm:$0xff]
    %v1324 = vunpack.c.l.b16 %v1292
    %v1325 = vunpack.c.h.b16 %v1292
    %v1326 = vunpack.c.l.b16 %v1293
    %v1327 = vunpack.c.h.b16 %v1293
    %v1328 = vunpack.c.l.b16 %v1294
    %v1329 = vunpack.c.h.b16 %v1294
    %v1330 = vunpack.c.l.b16 %v1295
    %v1331 = vunpack.c.h.b16 %v1295
    %v1332 = vunpack.c.l.b16 %v1296
    %v1333 = vunpack.c.h.b16 %v1296
    %v1334 = vunpack.c.l.b16 %v1297
    %v1335 = vunpack.c.h.b16 %v1297
    %v1336 = vunpack.c.l.b16 %v1298
    %v1337 = vunpack.c.h.b16 %v1298
    %v1338 = vunpack.c.l.b16 %v1299
    %v1339 = vunpack.c.h.b16 %v1299
    %v1340 = vunpack.c.l.b16 %v1300
    %v1341 = vunpack.c.h.b16 %v1300
    %v1342 = vunpack.c.l.b16 %v1301
    %v1343 = vunpack.c.h.b16 %v1301
    %v1344 = vunpack.c.l.b16 %v1302
    %v1345 = vunpack.c.h.b16 %v1302
    %v1346 = vunpack.c.l.b16 %v1303
    %v1347 = vunpack.c.h.b16 %v1303
    %v1348 = vunpack.c.l.b16 %v1304
    %v1349 = vunpack.c.h.b16 %v1304
    %v1350 = vunpack.c.l.b16 %v1305
    %v1351 = vunpack.c.h.b16 %v1305
    %v1352 = vunpack.c.l.b16 %v1306
    %v1353 = vunpack.c.h.b16 %v1306
    %v1354 = vunpack.c.l.b16 %v1307
    %v1355 = vunpack.c.h.b16 %v1307
    %v1356 = vpack.c.b16 %v1326, %v1324
    %v1357 = vpack.c.b16 %v1327, %v1325
    %v1358 = vpack.c.b16 %v1330, %v1328
    %v1359 = vpack.c.b16 %v1331, %v1329
    %v1360 = vpack.c.b16 %v1334, %v1332
    %v1361 = vpack.c.b16 %v1335, %v1333
    %v1362 = vpack.c.b16 %v1338, %v1336
    %v1363 = vpack.c.b16 %v1339, %v1337
    %v1364 = vpack.c.b16 %v1342, %v1340
    %v1365 = vpack.c.b16 %v1343, %v1341
    %v1366 = vpack.c.b16 %v1346, %v1344
    %v1367 = vpack.c.b16 %v1347, %v1345
    %v1368 = vpack.c.b16 %v1350, %v1348
    %v1369 = vpack.c.b16 %v1351, %v1349
    %v1370 = vpack.c.b16 %v1354, %v1352
    %v1371 = vpack.c.b16 %v1355, %v1353
    %1388 = vmatprep.subr.bf16.mxu0 %v1357
    %1389 = vmatpush1.bf16.msra.mxu0 %v1356
    %1390 = vmatprep.subr.bf16.mxu0 %v1359
    %1391 = vmatpush1.bf16.msra.mxu0 %v1358
    %1392 = vmatprep.subr.bf16.mxu0 %v1361
    %1393 = vmatpush1.bf16.msra.mxu0 %v1360
    %1394 = vmatprep.subr.bf16.mxu0 %v1363
    %1395 = vmatpush1.bf16.msra.mxu0 %v1362
    %1396 = vmatprep.subr.bf16.mxu0 %v1365
    %1397 = vmatpush1.bf16.msra.mxu0 %v1364
    %1398 = vmatprep.subr.bf16.mxu0 %v1367
    %1399 = vmatpush1.bf16.msra.mxu0 %v1366
    %1400 = vmatprep.subr.bf16.mxu0 %v1369
    %1401 = vmatpush1.bf16.msra.mxu0 %v1368
    %1402 = vmatprep.subr.bf16.mxu0 %v1371
    %1403 = vmatpush1.bf16.msra.mxu0 %v1370
    %1404 = vmatprep.subr.bf16.mxu0 0
    %1405 = vmatpush1.bf16.msra.mxu0 0
    %1406 = vmatprep.subr.bf16.mxu0 0
    %1407 = vmatpush1.bf16.msra.mxu0 0
    %1408 = vmatprep.subr.bf16.mxu0 0
    %1409 = vmatpush1.bf16.msra.mxu0 0
    %1410 = vmatprep.subr.bf16.mxu0 0
    %1411 = vmatpush1.bf16.msra.mxu0 0
    %1412 = vmatprep.subr.bf16.mxu0 0
    %1413 = vmatpush1.bf16.msra.mxu0 0
    %1414 = vmatprep.subr.bf16.mxu0 0
    %1415 = vmatpush1.bf16.msra.mxu0 0
    %1416 = vmatprep.subr.bf16.mxu0 0
    %1417 = vmatpush1.bf16.msra.mxu0 0
    %1418 = vmatprep.subr.bf16.mxu0 0
    %1419 = vmatpush1.bf16.msra.mxu0 0
    %1420 = vmatprep.mubr.bf16.mxu0 0
    %1421 = vmatmul.mubr.bf16.gmra.mrb[0].mxu0 %v1260
    %v1422 = vpop.f32.mrb[0].mxu0
    %v1423 = vadd.f32 0.0, %v1422
    %v1424 = vpop.f32.mrb[0].mxu0
    %v1425 = vadd.f32 0.0, %v1424
    %v1426 = vpop.f32.mrb[0].mxu0
    %v1427 = vadd.f32 0.0, %v1426
    %v1428 = vpop.f32.mrb[0].mxu0
    %v1429 = vadd.f32 0.0, %v1428
    %1430 = vmatprep.mubr.bf16.mxu0 0
    %1431 = vmatmul.mubr.bf16.gmra.mrb[0].mxu0 %v1261
    %v1432 = vpop.f32.mrb[0].mxu0
    %v1433 = vadd.f32 0.0, %v1432
    %v1434 = vpop.f32.mrb[0].mxu0
    %v1435 = vadd.f32 0.0, %v1434
    %v1436 = vpop.f32.mrb[0].mxu0
    %v1437 = vadd.f32 0.0, %v1436
    %v1438 = vpop.f32.mrb[0].mxu0
    %v1439 = vadd.f32 0.0, %v1438
    %1440 = vmatprep.mubr.bf16.mxu0 0
    %1441 = vmatmul.mubr.bf16.gmra.mrb[0].mxu0 %v1262
    %v1442 = vpop.f32.mrb[0].mxu0
    %v1443 = vadd.f32 0.0, %v1442
    %v1444 = vpop.f32.mrb[0].mxu0
    %v1445 = vadd.f32 0.0, %v1444
    %v1446 = vpop.f32.mrb[0].mxu0
    %v1447 = vadd.f32 0.0, %v1446
    %v1448 = vpop.f32.mrb[0].mxu0
    %v1449 = vadd.f32 0.0, %v1448
    %1450 = vmatprep.mubr.bf16.mxu0 0
    %1451 = vmatmul.mubr.bf16.gmra.mrb[0].mxu0 %v1263
    %v1452 = vpop.f32.mrb[0].mxu0
    %v1453 = vadd.f32 0.0, %v1452
    %v1454 = vpop.f32.mrb[0].mxu0
    %v1455 = vadd.f32 0.0, %v1454
    %v1456 = vpop.f32.mrb[0].mxu0
    %v1457 = vadd.f32 0.0, %v1456
    %v1458 = vpop.f32.mrb[0].mxu0
    %v1459 = vadd.f32 0.0, %v1458
    %1460 = vmatprep.mubr.bf16.mxu0 0
    %1461 = vmatmul.mubr.bf16.gmra.mrb[0].mxu0 %v1264
    %v1462 = vpop.f32.mrb[0].mxu0
    %v1463 = vadd.f32 0.0, %v1462
    %v1464 = vpop.f32.mrb[0].mxu0
    %v1465 = vadd.f32 0.0, %v1464
    %v1466 = vpop.f32.mrb[0].mxu0
    %v1467 = vadd.f32 0.0, %v1466
    %v1468 = vpop.f32.mrb[0].mxu0
    %v1469 = vadd.f32 0.0, %v1468
    %1470 = vmatprep.mubr.bf16.mxu0 0
    %1471 = vmatmul.mubr.bf16.gmra.mrb[0].mxu0 %v1265
    %v1472 = vpop.f32.mrb[0].mxu0
    %v1473 = vadd.f32 0.0, %v1472
    %v1474 = vpop.f32.mrb[0].mxu0
    %v1475 = vadd.f32 0.0, %v1474
    %v1476 = vpop.f32.mrb[0].mxu0
    %v1477 = vadd.f32 0.0, %v1476
    %v1478 = vpop.f32.mrb[0].mxu0
    %v1479 = vadd.f32 0.0, %v1478
    %1480 = vmatprep.mubr.bf16.mxu0 0
    %1481 = vmatmul.mubr.bf16.gmra.mrb[0].mxu0 %v1266
    %v1482 = vpop.f32.mrb[0].mxu0
    %v1483 = vadd.f32 0.0, %v1482
    %v1484 = vpop.f32.mrb[0].mxu0
    %v1485 = vadd.f32 0.0, %v1484
    %v1486 = vpop.f32.mrb[0].mxu0
    %v1487 = vadd.f32 0.0, %v1486
    %v1488 = vpop.f32.mrb[0].mxu0
    %v1489 = vadd.f32 0.0, %v1488
    %1490 = vmatprep.mubr.bf16.mxu0 0
    %1491 = vmatmul.mubr.bf16.gmra.mrb[0].mxu0 %v1267
    %v1492 = vpop.f32.mrb[0].mxu0
    %v1493 = vadd.f32 0.0, %v1492
    %v1494 = vpop.f32.mrb[0].mxu0
    %v1495 = vadd.f32 0.0, %v1494
    %v1496 = vpop.f32.mrb[0].mxu0
    %v1497 = vadd.f32 0.0, %v1496
    %v1498 = vpop.f32.mrb[0].mxu0
    %v1499 = vadd.f32 0.0, %v1498
    %1500 = vmatprep.mubr.bf16.mxu0 0
    %1501 = vmatmul.mubr.bf16.gmra.mrb[0].mxu0 %v1268
    %v1502 = vpop.f32.mrb[0].mxu0
    %v1503 = vadd.f32 0.0, %v1502
    %v1504 = vpop.f32.mrb[0].mxu0
    %v1505 = vadd.f32 0.0, %v1504
    %v1506 = vpop.f32.mrb[0].mxu0
    %v1507 = vadd.f32 0.0, %v1506
    %v1508 = vpop.f32.mrb[0].mxu0
    %v1509 = vadd.f32 0.0, %v1508
    %1510 = vmatprep.mubr.bf16.mxu0 0
    %1511 = vmatmul.mubr.bf16.gmra.mrb[0].mxu0 %v1269
    %v1512 = vpop.f32.mrb[0].mxu0
    %v1513 = vadd.f32 0.0, %v1512
    %v1514 = vpop.f32.mrb[0].mxu0
    %v1515 = vadd.f32 0.0, %v1514
    %v1516 = vpop.f32.mrb[0].mxu0
    %v1517 = vadd.f32 0.0, %v1516
    %v1518 = vpop.f32.mrb[0].mxu0
    %v1519 = vadd.f32 0.0, %v1518
    %1520 = vmatprep.mubr.bf16.mxu0 0
    %1521 = vmatmul.mubr.bf16.gmra.mrb[0].mxu0 %v1270
    %v1522 = vpop.f32.mrb[0].mxu0
    %v1523 = vadd.f32 0.0, %v1522
    %v1524 = vpop.f32.mrb[0].mxu0
    %v1525 = vadd.f32 0.0, %v1524
    %v1526 = vpop.f32.mrb[0].mxu0
    %v1527 = vadd.f32 0.0, %v1526
    %v1528 = vpop.f32.mrb[0].mxu0
    %v1529 = vadd.f32 0.0, %v1528
    %1530 = vmatprep.mubr.bf16.mxu0 0
    %1531 = vmatmul.mubr.bf16.gmra.mrb[0].mxu0 %v1271
    %v1532 = vpop.f32.mrb[0].mxu0
    %v1533 = vadd.f32 0.0, %v1532
    %v1534 = vpop.f32.mrb[0].mxu0
    %v1535 = vadd.f32 0.0, %v1534
    %v1536 = vpop.f32.mrb[0].mxu0
    %v1537 = vadd.f32 0.0, %v1536
    %v1538 = vpop.f32.mrb[0].mxu0
    %v1539 = vadd.f32 0.0, %v1538
    %1540 = vmatprep.mubr.bf16.mxu0 0
    %1541 = vmatmul.mubr.bf16.gmra.mrb[0].mxu0 %v1272
    %v1542 = vpop.f32.mrb[0].mxu0
    %v1543 = vadd.f32 0.0, %v1542
    %v1544 = vpop.f32.mrb[0].mxu0
    %v1545 = vadd.f32 0.0, %v1544
    %v1546 = vpop.f32.mrb[0].mxu0
    %v1547 = vadd.f32 0.0, %v1546
    %v1548 = vpop.f32.mrb[0].mxu0
    %v1549 = vadd.f32 0.0, %v1548
    %1550 = vmatprep.mubr.bf16.mxu0 0
    %1551 = vmatmul.mubr.bf16.gmra.mrb[0].mxu0 %v1273
    %v1552 = vpop.f32.mrb[0].mxu0
    %v1553 = vadd.f32 0.0, %v1552
    %v1554 = vpop.f32.mrb[0].mxu0
    %v1555 = vadd.f32 0.0, %v1554
    %v1556 = vpop.f32.mrb[0].mxu0
    %v1557 = vadd.f32 0.0, %v1556
    %v1558 = vpop.f32.mrb[0].mxu0
    %v1559 = vadd.f32 0.0, %v1558
    %1560 = vmatprep.mubr.bf16.mxu0 0
    %1561 = vmatmul.mubr.bf16.gmra.mrb[0].mxu0 %v1274
    %v1562 = vpop.f32.mrb[0].mxu0
    %v1563 = vadd.f32 0.0, %v1562
    %v1564 = vpop.f32.mrb[0].mxu0
    %v1565 = vadd.f32 0.0, %v1564
    %v1566 = vpop.f32.mrb[0].mxu0
    %v1567 = vadd.f32 0.0, %v1566
    %v1568 = vpop.f32.mrb[0].mxu0
    %v1569 = vadd.f32 0.0, %v1568
    %1570 = vmatprep.mubr.bf16.mxu0 0
    %1571 = vmatmul.mubr.bf16.gmra.mrb[0].mxu0 %v1275
    %v1572 = vpop.f32.mrb[0].mxu0
    %v1573 = vadd.f32 0.0, %v1572
    %v1574 = vpop.f32.mrb[0].mxu0
    %v1575 = vadd.f32 0.0, %v1574
    %v1576 = vpop.f32.mrb[0].mxu0
    %v1577 = vadd.f32 0.0, %v1576
    %v1578 = vpop.f32.mrb[0].mxu0
    %v1579 = vadd.f32 0.0, %v1578
    %1580 = vmatprep.mubr.bf16.mxu0 0
    %1581 = vmatmul.mubr.bf16.gmra.mrb[0].mxu0 %v1276
    %v1582 = vpop.f32.mrb[0].mxu0
    %v1583 = vadd.f32 0.0, %v1582
    %v1584 = vpop.f32.mrb[0].mxu0
    %v1585 = vadd.f32 0.0, %v1584
    %v1586 = vpop.f32.mrb[0].mxu0
    %v1587 = vadd.f32 0.0, %v1586
    %v1588 = vpop.f32.mrb[0].mxu0
    %v1589 = vadd.f32 0.0, %v1588
    %1590 = vmatprep.mubr.bf16.mxu0 0
    %1591 = vmatmul.mubr.bf16.gmra.mrb[0].mxu0 %v1277
    %v1592 = vpop.f32.mrb[0].mxu0
    %v1593 = vadd.f32 0.0, %v1592
    %v1594 = vpop.f32.mrb[0].mxu0
    %v1595 = vadd.f32 0.0, %v1594
    %v1596 = vpop.f32.mrb[0].mxu0
    %v1597 = vadd.f32 0.0, %v1596
    %v1598 = vpop.f32.mrb[0].mxu0
    %v1599 = vadd.f32 0.0, %v1598
    %1600 = vmatprep.mubr.bf16.mxu0 0
    %1601 = vmatmul.mubr.bf16.gmra.mrb[0].mxu0 %v1278
    %v1602 = vpop.f32.mrb[0].mxu0
    %v1603 = vadd.f32 0.0, %v1602
    %v1604 = vpop.f32.mrb[0].mxu0
    %v1605 = vadd.f32 0.0, %v1604
    %v1606 = vpop.f32.mrb[0].mxu0
    %v1607 = vadd.f32 0.0, %v1606
    %v1608 = vpop.f32.mrb[0].mxu0
    %v1609 = vadd.f32 0.0, %v1608
    %1610 = vmatprep.mubr.bf16.mxu0 0
    %1611 = vmatmul.mubr.bf16.gmra.mrb[0].mxu0 %v1279
    %v1612 = vpop.f32.mrb[0].mxu0
    %v1613 = vadd.f32 0.0, %v1612
    %v1614 = vpop.f32.mrb[0].mxu0
    %v1615 = vadd.f32 0.0, %v1614
    %v1616 = vpop.f32.mrb[0].mxu0
    %v1617 = vadd.f32 0.0, %v1616
    %v1618 = vpop.f32.mrb[0].mxu0
    %v1619 = vadd.f32 0.0, %v1618
    %1620 = vmatprep.mubr.bf16.mxu0 0
    %1621 = vmatmul.mubr.bf16.gmra.mrb[0].mxu0 %v1280
    %v1622 = vpop.f32.mrb[0].mxu0
    %v1623 = vadd.f32 0.0, %v1622
    %v1624 = vpop.f32.mrb[0].mxu0
    %v1625 = vadd.f32 0.0, %v1624
    %v1626 = vpop.f32.mrb[0].mxu0
    %v1627 = vadd.f32 0.0, %v1626
    %v1628 = vpop.f32.mrb[0].mxu0
    %v1629 = vadd.f32 0.0, %v1628
    %1630 = vmatprep.mubr.bf16.mxu0 0
    %1631 = vmatmul.mubr.bf16.gmra.mrb[0].mxu0 %v1281
    %v1632 = vpop.f32.mrb[0].mxu0
    %v1633 = vadd.f32 0.0, %v1632
    %v1634 = vpop.f32.mrb[0].mxu0
    %v1635 = vadd.f32 0.0, %v1634
    %v1636 = vpop.f32.mrb[0].mxu0
    %v1637 = vadd.f32 0.0, %v1636
    %v1638 = vpop.f32.mrb[0].mxu0
    %v1639 = vadd.f32 0.0, %v1638
    %1640 = vmatprep.mubr.bf16.mxu0 0
    %1641 = vmatmul.mubr.bf16.gmra.mrb[0].mxu0 %v1282
    %v1642 = vpop.f32.mrb[0].mxu0
    %v1643 = vadd.f32 0.0, %v1642
    %v1644 = vpop.f32.mrb[0].mxu0
    %v1645 = vadd.f32 0.0, %v1644
    %v1646 = vpop.f32.mrb[0].mxu0
    %v1647 = vadd.f32 0.0, %v1646
    %v1648 = vpop.f32.mrb[0].mxu0
    %v1649 = vadd.f32 0.0, %v1648
    %1650 = vmatprep.mubr.bf16.mxu0 0
    %1651 = vmatmul.mubr.bf16.gmra.mrb[0].mxu0 %v1283
    %v1652 = vpop.f32.mrb[0].mxu0
    %v1653 = vadd.f32 0.0, %v1652
    %v1654 = vpop.f32.mrb[0].mxu0
    %v1655 = vadd.f32 0.0, %v1654
    %v1656 = vpop.f32.mrb[0].mxu0
    %v1657 = vadd.f32 0.0, %v1656
    %v1658 = vpop.f32.mrb[0].mxu0
    %v1659 = vadd.f32 0.0, %v1658
    %1660 = vmatprep.mubr.bf16.mxu0 0
    %1661 = vmatmul.mubr.bf16.gmra.mrb[0].mxu0 %v1284
    %v1662 = vpop.f32.mrb[0].mxu0
    %v1663 = vadd.f32 0.0, %v1662
    %v1664 = vpop.f32.mrb[0].mxu0
    %v1665 = vadd.f32 0.0, %v1664
    %v1666 = vpop.f32.mrb[0].mxu0
    %v1667 = vadd.f32 0.0, %v1666
    %v1668 = vpop.f32.mrb[0].mxu0
    %v1669 = vadd.f32 0.0, %v1668
    %1670 = vmatprep.mubr.bf16.mxu0 0
    %1671 = vmatmul.mubr.bf16.gmra.mrb[0].mxu0 %v1285
    %v1672 = vpop.f32.mrb[0].mxu0
    %v1673 = vadd.f32 0.0, %v1672
    %v1674 = vpop.f32.mrb[0].mxu0
    %v1675 = vadd.f32 0.0, %v1674
    %v1676 = vpop.f32.mrb[0].mxu0
    %v1677 = vadd.f32 0.0, %v1676
    %v1678 = vpop.f32.mrb[0].mxu0
    %v1679 = vadd.f32 0.0, %v1678
    %1680 = vmatprep.mubr.bf16.mxu0 0
    %1681 = vmatmul.mubr.bf16.gmra.mrb[0].mxu0 %v1286
    %v1682 = vpop.f32.mrb[0].mxu0
    %v1683 = vadd.f32 0.0, %v1682
    %v1684 = vpop.f32.mrb[0].mxu0
    %v1685 = vadd.f32 0.0, %v1684
    %v1686 = vpop.f32.mrb[0].mxu0
    %v1687 = vadd.f32 0.0, %v1686
    %v1688 = vpop.f32.mrb[0].mxu0
    %v1689 = vadd.f32 0.0, %v1688
    %1690 = vmatprep.mubr.bf16.mxu0 0
    %1691 = vmatmul.mubr.bf16.gmra.mrb[0].mxu0 %v1287
    %v1692 = vpop.f32.mrb[0].mxu0
    %v1693 = vadd.f32 0.0, %v1692
    %v1694 = vpop.f32.mrb[0].mxu0
    %v1695 = vadd.f32 0.0, %v1694
    %v1696 = vpop.f32.mrb[0].mxu0
    %v1697 = vadd.f32 0.0, %v1696
    %v1698 = vpop.f32.mrb[0].mxu0
    %v1699 = vadd.f32 0.0, %v1698
    %1700 = vmatprep.mubr.bf16.mxu0 0
    %1701 = vmatmul.mubr.bf16.gmra.mrb[0].mxu0 %v1288
    %v1702 = vpop.f32.mrb[0].mxu0
    %v1703 = vadd.f32 0.0, %v1702
    %v1704 = vpop.f32.mrb[0].mxu0
    %v1705 = vadd.f32 0.0, %v1704
    %v1706 = vpop.f32.mrb[0].mxu0
    %v1707 = vadd.f32 0.0, %v1706
    %v1708 = vpop.f32.mrb[0].mxu0
    %v1709 = vadd.f32 0.0, %v1708
    %1710 = vmatprep.mubr.bf16.mxu0 0
    %1711 = vmatmul.mubr.bf16.gmra.mrb[0].mxu0 %v1289
    %v1712 = vpop.f32.mrb[0].mxu0
    %v1713 = vadd.f32 0.0, %v1712
    %v1714 = vpop.f32.mrb[0].mxu0
    %v1715 = vadd.f32 0.0, %v1714
    %v1716 = vpop.f32.mrb[0].mxu0
    %v1717 = vadd.f32 0.0, %v1716
    %v1718 = vpop.f32.mrb[0].mxu0
    %v1719 = vadd.f32 0.0, %v1718
    %1720 = vmatprep.mubr.bf16.mxu0 0
    %1721 = vmatmul.mubr.bf16.gmra.mrb[0].mxu0 %v1290
    %v1722 = vpop.f32.mrb[0].mxu0
    %v1723 = vadd.f32 0.0, %v1722
    %v1724 = vpop.f32.mrb[0].mxu0
    %v1725 = vadd.f32 0.0, %v1724
    %v1726 = vpop.f32.mrb[0].mxu0
    %v1727 = vadd.f32 0.0, %v1726
    %v1728 = vpop.f32.mrb[0].mxu0
    %v1729 = vadd.f32 0.0, %v1728
    %1730 = vmatprep.mubr.bf16.mxu0 0
    %1731 = vmatmul.mubr.bf16.gmra.mrb[0].mxu0 %v1291
    %v1732 = vpop.f32.mrb[0].mxu0
    %v1733 = vadd.f32 0.0, %v1732
    %v1734 = vpop.f32.mrb[0].mxu0
    %v1735 = vadd.f32 0.0, %v1734
    %v1736 = vpop.f32.mrb[0].mxu0
    %v1737 = vadd.f32 0.0, %v1736
    %v1738 = vpop.f32.mrb[0].mxu0
    %v1739 = vadd.f32 0.0, %v1738
    %1740 = vdwg.mxu0
    %v1741 = vadd.f32 %v1423, %v1427
    %v1742 = vadd.f32 %v1741, %v1433
    %v1743 = vadd.f32 %v1742, %v1437
    %v1744 = vadd.f32 %v1743, %v1443
    %v1745 = vadd.f32 %v1744, %v1447
    %v1746 = vadd.f32 %v1745, %v1453
    %v1747 = vadd.f32 %v1746, %v1457
    %v1748 = vadd.f32 %v1747, %v1463
    %v1749 = vadd.f32 %v1748, %v1467
    %v1750 = vadd.f32 %v1749, %v1473
    %v1751 = vadd.f32 %v1750, %v1477
    %v1752 = vadd.f32 %v1751, %v1483
    %v1753 = vadd.f32 %v1752, %v1487
    %v1754 = vadd.f32 %v1753, %v1493
    %v1755 = vadd.f32 %v1754, %v1497
    %v1756 = vadd.f32 %v1755, %v1503
    %v1757 = vadd.f32 %v1756, %v1507
    %v1758 = vadd.f32 %v1757, %v1513
    %v1759 = vadd.f32 %v1758, %v1517
    %v1760 = vadd.f32 %v1759, %v1523
    %v1761 = vadd.f32 %v1760, %v1527
    %v1762 = vadd.f32 %v1761, %v1533
    %v1763 = vadd.f32 %v1762, %v1537
    %v1764 = vadd.f32 %v1763, %v1543
    %v1765 = vadd.f32 %v1764, %v1547
    %v1766 = vadd.f32 %v1765, %v1553
    %v1767 = vadd.f32 %v1766, %v1557
    %v1768 = vadd.f32 %v1767, %v1563
    %v1769 = vadd.f32 %v1768, %v1567
    %v1770 = vadd.f32 %v1769, %v1573
    %v1771 = vadd.f32 %v1770, %v1577
    %v1772 = vadd.f32 %v1771, %v1583
    %v1773 = vadd.f32 %v1772, %v1587
    %v1774 = vadd.f32 %v1773, %v1593
    %v1775 = vadd.f32 %v1774, %v1597
    %v1776 = vadd.f32 %v1775, %v1603
    %v1777 = vadd.f32 %v1776, %v1607
    %v1778 = vadd.f32 %v1777, %v1613
    %v1779 = vadd.f32 %v1778, %v1617
    %v1780 = vadd.f32 %v1779, %v1623
    %v1781 = vadd.f32 %v1780, %v1627
    %v1782 = vadd.f32 %v1781, %v1633
    %v1783 = vadd.f32 %v1782, %v1637
    %v1784 = vadd.f32 %v1783, %v1643
    %v1785 = vadd.f32 %v1784, %v1647
    %v1786 = vadd.f32 %v1785, %v1653
    %v1787 = vadd.f32 %v1786, %v1657
    %v1788 = vadd.f32 %v1787, %v1663
    %v1789 = vadd.f32 %v1788, %v1667
    %v1790 = vadd.f32 %v1789, %v1673
    %v1791 = vadd.f32 %v1790, %v1677
    %v1792 = vadd.f32 %v1791, %v1683
    %v1793 = vadd.f32 %v1792, %v1687
    %v1794 = vadd.f32 %v1793, %v1693
    %v1795 = vadd.f32 %v1794, %v1697
    %v1796 = vadd.f32 %v1795, %v1703
    %v1797 = vadd.f32 %v1796, %v1707
    %v1798 = vadd.f32 %v1797, %v1713
    %v1799 = vadd.f32 %v1798, %v1717
    %v1800 = vadd.f32 %v1799, %v1723
    %v1801 = vadd.f32 %v1800, %v1727
    %v1802 = vadd.f32 %v1801, %v1733
    %v1803 = vadd.f32 %v1802, %v1737
    %v1804 = vrot.slane %v1803, 4
    %v1805 = vadd.f32 %v1803, %v1804
    %v1806 = vrot.slane %v1805, 2
    %v1807 = vadd.f32 %v1805, %v1806
    %v1808 = vrot.slane %v1807, 1
    %v1809 = vadd.f32 %v1807, %v1808
    %v1810 = vadd.f32 %v1425, %v1429
    %v1811 = vadd.f32 %v1810, %v1435
    %v1812 = vadd.f32 %v1811, %v1439
    %v1813 = vadd.f32 %v1812, %v1445
    %v1814 = vadd.f32 %v1813, %v1449
    %v1815 = vadd.f32 %v1814, %v1455
    %v1816 = vadd.f32 %v1815, %v1459
    %v1817 = vadd.f32 %v1816, %v1465
    %v1818 = vadd.f32 %v1817, %v1469
    %v1819 = vadd.f32 %v1818, %v1475
    %v1820 = vadd.f32 %v1819, %v1479
    %v1821 = vadd.f32 %v1820, %v1485
    %v1822 = vadd.f32 %v1821, %v1489
    %v1823 = vadd.f32 %v1822, %v1495
    %v1824 = vadd.f32 %v1823, %v1499
    %v1825 = vadd.f32 %v1824, %v1505
    %v1826 = vadd.f32 %v1825, %v1509
    %v1827 = vadd.f32 %v1826, %v1515
    %v1828 = vadd.f32 %v1827, %v1519
    %v1829 = vadd.f32 %v1828, %v1525
    %v1830 = vadd.f32 %v1829, %v1529
    %v1831 = vadd.f32 %v1830, %v1535
    %v1832 = vadd.f32 %v1831, %v1539
    %v1833 = vadd.f32 %v1832, %v1545
    %v1834 = vadd.f32 %v1833, %v1549
    %v1835 = vadd.f32 %v1834, %v1555
    %v1836 = vadd.f32 %v1835, %v1559
    %v1837 = vadd.f32 %v1836, %v1565
    %v1838 = vadd.f32 %v1837, %v1569
    %v1839 = vadd.f32 %v1838, %v1575
    %v1840 = vadd.f32 %v1839, %v1579
    %v1841 = vadd.f32 %v1840, %v1585
    %v1842 = vadd.f32 %v1841, %v1589
    %v1843 = vadd.f32 %v1842, %v1595
    %v1844 = vadd.f32 %v1843, %v1599
    %v1845 = vadd.f32 %v1844, %v1605
    %v1846 = vadd.f32 %v1845, %v1609
    %v1847 = vadd.f32 %v1846, %v1615
    %v1848 = vadd.f32 %v1847, %v1619
    %v1849 = vadd.f32 %v1848, %v1625
    %v1850 = vadd.f32 %v1849, %v1629
    %v1851 = vadd.f32 %v1850, %v1635
    %v1852 = vadd.f32 %v1851, %v1639
    %v1853 = vadd.f32 %v1852, %v1645
    %v1854 = vadd.f32 %v1853, %v1649
    %v1855 = vadd.f32 %v1854, %v1655
    %v1856 = vadd.f32 %v1855, %v1659
    %v1857 = vadd.f32 %v1856, %v1665
    %v1858 = vadd.f32 %v1857, %v1669
    %v1859 = vadd.f32 %v1858, %v1675
    %v1860 = vadd.f32 %v1859, %v1679
    %v1861 = vadd.f32 %v1860, %v1685
    %v1862 = vadd.f32 %v1861, %v1689
    %v1863 = vadd.f32 %v1862, %v1695
    %v1864 = vadd.f32 %v1863, %v1699
    %v1865 = vadd.f32 %v1864, %v1705
    %v1866 = vadd.f32 %v1865, %v1709
    %v1867 = vadd.f32 %v1866, %v1715
    %v1868 = vadd.f32 %v1867, %v1719
    %v1869 = vadd.f32 %v1868, %v1725
    %v1870 = vadd.f32 %v1869, %v1729
    %v1871 = vadd.f32 %v1870, %v1735
    %v1872 = vadd.f32 %v1871, %v1739
    %v1873 = vrot.slane %v1872, 4
    %v1874 = vadd.f32 %v1872, %v1873
    %v1875 = vrot.slane %v1874, 2
    %v1876 = vadd.f32 %v1874, %v1875
    %v1877 = vrot.slane %v1876, 1
    %v1878 = vadd.f32 %v1876, %v1877
    %1880 = vrot.lane.b32.xlu0 %v1809, 64
    %v1881 = vpop.permute.xlu0 %1880
    %v1883 = vadd.f32 %v1809, %v1881
    %v1884 = vadd.f32 %v1883, %v1878
    %1886 = vrot.lane.b32.xlu0 %v1878, 64
    %v1887 = vpop.permute.xlu0 %1886
    %v1889 = vadd.f32 %v1884, %v1887
    %v1890 = vmul.f32 %v1889, 0.00048828125
    %1892 = vrot.lane.b32.xlu0 %v1890, 64
    %v1893 = vpop.permute.xlu0 %1892
    %vm1895 = vcmask 523264
    %v1896 = vsel %vm1895, %v1890, %v1893
    %v1897 = vlaneseq
    %v1898 = vshrl.u32 %v1897, 7
    %v1899 = vsub.s32 0, %v1898
    %v1900 = vrot.slane %v1896, %v1899
    %v1901 = vsub.f32 %v1423, %v1900
    %v1902 = vsub.f32 %v1425, %v1900
    %v1903 = vsub.f32 %v1427, %v1900
    %v1904 = vsub.f32 %v1429, %v1900
    %v1905 = vsub.f32 %v1433, %v1900
    %v1906 = vsub.f32 %v1435, %v1900
    %v1907 = vsub.f32 %v1437, %v1900
    %v1908 = vsub.f32 %v1439, %v1900
    %v1909 = vsub.f32 %v1443, %v1900
    %v1910 = vsub.f32 %v1445, %v1900
    %v1911 = vsub.f32 %v1447, %v1900
    %v1912 = vsub.f32 %v1449, %v1900
    %v1913 = vsub.f32 %v1453, %v1900
    %v1914 = vsub.f32 %v1455, %v1900
    %v1915 = vsub.f32 %v1457, %v1900
    %v1916 = vsub.f32 %v1459, %v1900
    %v1917 = vsub.f32 %v1463, %v1900
    %v1918 = vsub.f32 %v1465, %v1900
    %v1919 = vsub.f32 %v1467, %v1900
    %v1920 = vsub.f32 %v1469, %v1900
    %v1921 = vsub.f32 %v1473, %v1900
    %v1922 = vsub.f32 %v1475, %v1900
    %v1923 = vsub.f32 %v1477, %v1900
    %v1924 = vsub.f32 %v1479, %v1900
    %v1925 = vsub.f32 %v1483, %v1900
    %v1926 = vsub.f32 %v1485, %v1900
    %v1927 = vsub.f32 %v1487, %v1900
    %v1928 = vsub.f32 %v1489, %v1900
    %v1929 = vsub.f32 %v1493, %v1900
    %v1930 = vsub.f32 %v1495, %v1900
    %v1931 = vsub.f32 %v1497, %v1900
    %v1932 = vsub.f32 %v1499, %v1900
    %v1933 = vsub.f32 %v1503, %v1900
    %v1934 = vsub.f32 %v1505, %v1900
    %v1935 = vsub.f32 %v1507, %v1900
    %v1936 = vsub.f32 %v1509, %v1900
    %v1937 = vsub.f32 %v1513, %v1900
    %v1938 = vsub.f32 %v1515, %v1900
    %v1939 = vsub.f32 %v1517, %v1900
    %v1940 = vsub.f32 %v1519, %v1900
    %v1941 = vsub.f32 %v1523, %v1900
    %v1942 = vsub.f32 %v1525, %v1900
    %v1943 = vsub.f32 %v1527, %v1900
    %v1944 = vsub.f32 %v1529, %v1900
    %v1945 = vsub.f32 %v1533, %v1900
    %v1946 = vsub.f32 %v1535, %v1900
    %v1947 = vsub.f32 %v1537, %v1900
    %v1948 = vsub.f32 %v1539, %v1900
    %v1949 = vsub.f32 %v1543, %v1900
    %v1950 = vsub.f32 %v1545, %v1900
    %v1951 = vsub.f32 %v1547, %v1900
    %v1952 = vsub.f32 %v1549, %v1900
    %v1953 = vsub.f32 %v1553, %v1900
    %v1954 = vsub.f32 %v1555, %v1900
    %v1955 = vsub.f32 %v1557, %v1900
    %v1956 = vsub.f32 %v1559, %v1900
    %v1957 = vsub.f32 %v1563, %v1900
    %v1958 = vsub.f32 %v1565, %v1900
    %v1959 = vsub.f32 %v1567, %v1900
    %v1960 = vsub.f32 %v1569, %v1900
    %v1961 = vsub.f32 %v1573, %v1900
    %v1962 = vsub.f32 %v1575, %v1900
    %v1963 = vsub.f32 %v1577, %v1900
    %v1964 = vsub.f32 %v1579, %v1900
    %v1965 = vsub.f32 %v1583, %v1900
    %v1966 = vsub.f32 %v1585, %v1900
    %v1967 = vsub.f32 %v1587, %v1900
    %v1968 = vsub.f32 %v1589, %v1900
    %v1969 = vsub.f32 %v1593, %v1900
    %v1970 = vsub.f32 %v1595, %v1900
    %v1971 = vsub.f32 %v1597, %v1900
    %v1972 = vsub.f32 %v1599, %v1900
    %v1973 = vsub.f32 %v1603, %v1900
    %v1974 = vsub.f32 %v1605, %v1900
    %v1975 = vsub.f32 %v1607, %v1900
    %v1976 = vsub.f32 %v1609, %v1900
    %v1977 = vsub.f32 %v1613, %v1900
    %v1978 = vsub.f32 %v1615, %v1900
    %v1979 = vsub.f32 %v1617, %v1900
    %v1980 = vsub.f32 %v1619, %v1900
    %v1981 = vsub.f32 %v1623, %v1900
    %v1982 = vsub.f32 %v1625, %v1900
    %v1983 = vsub.f32 %v1627, %v1900
    %v1984 = vsub.f32 %v1629, %v1900
    %v1985 = vsub.f32 %v1633, %v1900
    %v1986 = vsub.f32 %v1635, %v1900
    %v1987 = vsub.f32 %v1637, %v1900
    %v1988 = vsub.f32 %v1639, %v1900
    %v1989 = vsub.f32 %v1643, %v1900
    %v1990 = vsub.f32 %v1645, %v1900
    %v1991 = vsub.f32 %v1647, %v1900
    %v1992 = vsub.f32 %v1649, %v1900
    %v1993 = vsub.f32 %v1653, %v1900
    %v1994 = vsub.f32 %v1655, %v1900
    %v1995 = vsub.f32 %v1657, %v1900
    %v1996 = vsub.f32 %v1659, %v1900
    %v1997 = vsub.f32 %v1663, %v1900
    %v1998 = vsub.f32 %v1665, %v1900
    %v1999 = vsub.f32 %v1667, %v1900
    %v2000 = vsub.f32 %v1669, %v1900
    %v2001 = vsub.f32 %v1673, %v1900
    %v2002 = vsub.f32 %v1675, %v1900
    %v2003 = vsub.f32 %v1677, %v1900
    %v2004 = vsub.f32 %v1679, %v1900
    %v2005 = vsub.f32 %v1683, %v1900
    %v2006 = vsub.f32 %v1685, %v1900
    %v2007 = vsub.f32 %v1687, %v1900
    %v2008 = vsub.f32 %v1689, %v1900
    %v2009 = vsub.f32 %v1693, %v1900
    %v2010 = vsub.f32 %v1695, %v1900
    %v2011 = vsub.f32 %v1697, %v1900
    %v2012 = vsub.f32 %v1699, %v1900
    %v2013 = vsub.f32 %v1703, %v1900
    %v2014 = vsub.f32 %v1705, %v1900
    %v2015 = vsub.f32 %v1707, %v1900
    %v2016 = vsub.f32 %v1709, %v1900
    %v2017 = vsub.f32 %v1713, %v1900
    %v2018 = vsub.f32 %v1715, %v1900
    %v2019 = vsub.f32 %v1717, %v1900
    %v2020 = vsub.f32 %v1719, %v1900
    %v2021 = vsub.f32 %v1723, %v1900
    %v2022 = vsub.f32 %v1725, %v1900
    %v2023 = vsub.f32 %v1727, %v1900
    %v2024 = vsub.f32 %v1729, %v1900
    %v2025 = vsub.f32 %v1733, %v1900
    %v2026 = vsub.f32 %v1735, %v1900
    %v2027 = vsub.f32 %v1737, %v1900
    %v2028 = vsub.f32 %v1739, %v1900
    %v2029 = vmul.f32 %v1901, %v1901
    %v2030 = vmul.f32 %v1902, %v1902
    %v2031 = vmul.f32 %v1903, %v1903
    %v2032 = vmul.f32 %v1904, %v1904
    %v2033 = vmul.f32 %v1905, %v1905
    %v2034 = vmul.f32 %v1906, %v1906
    %v2035 = vmul.f32 %v1907, %v1907
    %v2036 = vmul.f32 %v1908, %v1908
    %v2037 = vmul.f32 %v1909, %v1909
    %v2038 = vmul.f32 %v1910, %v1910
    %v2039 = vmul.f32 %v1911, %v1911
    %v2040 = vmul.f32 %v1912, %v1912
    %v2041 = vmul.f32 %v1913, %v1913
    %v2042 = vmul.f32 %v1914, %v1914
    %v2043 = vmul.f32 %v1915, %v1915
    %v2044 = vmul.f32 %v1916, %v1916
    %v2045 = vmul.f32 %v1917, %v1917
    %v2046 = vmul.f32 %v1918, %v1918
    %v2047 = vmul.f32 %v1919, %v1919
    %v2048 = vmul.f32 %v1920, %v1920
    %v2049 = vmul.f32 %v1921, %v1921
    %v2050 = vmul.f32 %v1922, %v1922
    %v2051 = vmul.f32 %v1923, %v1923
    %v2052 = vmul.f32 %v1924, %v1924
    %v2053 = vmul.f32 %v1925, %v1925
    %v2054 = vmul.f32 %v1926, %v1926
    %v2055 = vmul.f32 %v1927, %v1927
    %v2056 = vmul.f32 %v1928, %v1928
    %v2057 = vmul.f32 %v1929, %v1929
    %v2058 = vmul.f32 %v1930, %v1930
    %v2059 = vmul.f32 %v1931, %v1931
    %v2060 = vmul.f32 %v1932, %v1932
    %v2061 = vmul.f32 %v1933, %v1933
    %v2062 = vmul.f32 %v1934, %v1934
    %v2063 = vmul.f32 %v1935, %v1935
    %v2064 = vmul.f32 %v1936, %v1936
    %v2065 = vmul.f32 %v1937, %v1937
    %v2066 = vmul.f32 %v1938, %v1938
    %v2067 = vmul.f32 %v1939, %v1939
    %v2068 = vmul.f32 %v1940, %v1940
    %v2069 = vmul.f32 %v1941, %v1941
    %v2070 = vmul.f32 %v1942, %v1942
    %v2071 = vmul.f32 %v1943, %v1943
    %v2072 = vmul.f32 %v1944, %v1944
    %v2073 = vmul.f32 %v1945, %v1945
    %v2074 = vmul.f32 %v1946, %v1946
    %v2075 = vmul.f32 %v1947, %v1947
    %v2076 = vmul.f32 %v1948, %v1948
    %v2077 = vmul.f32 %v1949, %v1949
    %v2078 = vmul.f32 %v1950, %v1950
    %v2079 = vmul.f32 %v1951, %v1951
    %v2080 = vmul.f32 %v1952, %v1952
    %v2081 = vmul.f32 %v1953, %v1953
    %v2082 = vmul.f32 %v1954, %v1954
    %v2083 = vmul.f32 %v1955, %v1955
    %v2084 = vmul.f32 %v1956, %v1956
    %v2085 = vmul.f32 %v1957, %v1957
    %v2086 = vmul.f32 %v1958, %v1958
    %v2087 = vmul.f32 %v1959, %v1959
    %v2088 = vmul.f32 %v1960, %v1960
    %v2089 = vmul.f32 %v1961, %v1961
    %v2090 = vmul.f32 %v1962, %v1962
    %v2091 = vmul.f32 %v1963, %v1963
    %v2092 = vmul.f32 %v1964, %v1964
    %v2093 = vmul.f32 %v1965, %v1965
    %v2094 = vmul.f32 %v1966, %v1966
    %v2095 = vmul.f32 %v1967, %v1967
    %v2096 = vmul.f32 %v1968, %v1968
    %v2097 = vmul.f32 %v1969, %v1969
    %v2098 = vmul.f32 %v1970, %v1970
    %v2099 = vmul.f32 %v1971, %v1971
    %v2100 = vmul.f32 %v1972, %v1972
    %v2101 = vmul.f32 %v1973, %v1973
    %v2102 = vmul.f32 %v1974, %v1974
    %v2103 = vmul.f32 %v1975, %v1975
    %v2104 = vmul.f32 %v1976, %v1976
    %v2105 = vmul.f32 %v1977, %v1977
    %v2106 = vmul.f32 %v1978, %v1978
    %v2107 = vmul.f32 %v1979, %v1979
    %v2108 = vmul.f32 %v1980, %v1980
    %v2109 = vmul.f32 %v1981, %v1981
    %v2110 = vmul.f32 %v1982, %v1982
    %v2111 = vmul.f32 %v1983, %v1983
    %v2112 = vmul.f32 %v1984, %v1984
    %v2113 = vmul.f32 %v1985, %v1985
    %v2114 = vmul.f32 %v1986, %v1986
    %v2115 = vmul.f32 %v1987, %v1987
    %v2116 = vmul.f32 %v1988, %v1988
    %v2117 = vmul.f32 %v1989, %v1989
    %v2118 = vmul.f32 %v1990, %v1990
    %v2119 = vmul.f32 %v1991, %v1991
    %v2120 = vmul.f32 %v1992, %v1992
    %v2121 = vmul.f32 %v1993, %v1993
    %v2122 = vmul.f32 %v1994, %v1994
    %v2123 = vmul.f32 %v1995, %v1995
    %v2124 = vmul.f32 %v1996, %v1996
    %v2125 = vmul.f32 %v1997, %v1997
    %v2126 = vmul.f32 %v1998, %v1998
    %v2127 = vmul.f32 %v1999, %v1999
    %v2128 = vmul.f32 %v2000, %v2000
    %v2129 = vmul.f32 %v2001, %v2001
    %v2130 = vmul.f32 %v2002, %v2002
    %v2131 = vmul.f32 %v2003, %v2003
    %v2132 = vmul.f32 %v2004, %v2004
    %v2133 = vmul.f32 %v2005, %v2005
    %v2134 = vmul.f32 %v2006, %v2006
    %v2135 = vmul.f32 %v2007, %v2007
    %v2136 = vmul.f32 %v2008, %v2008
    %v2137 = vmul.f32 %v2009, %v2009
    %v2138 = vmul.f32 %v2010, %v2010
    %v2139 = vmul.f32 %v2011, %v2011
    %v2140 = vmul.f32 %v2012, %v2012
    %v2141 = vmul.f32 %v2013, %v2013
    %v2142 = vmul.f32 %v2014, %v2014
    %v2143 = vmul.f32 %v2015, %v2015
    %v2144 = vmul.f32 %v2016, %v2016
    %v2145 = vmul.f32 %v2017, %v2017
    %v2146 = vmul.f32 %v2018, %v2018
    %v2147 = vmul.f32 %v2019, %v2019
    %v2148 = vmul.f32 %v2020, %v2020
    %v2149 = vmul.f32 %v2021, %v2021
    %v2150 = vmul.f32 %v2022, %v2022
    %v2151 = vmul.f32 %v2023, %v2023
    %v2152 = vmul.f32 %v2024, %v2024
    %v2153 = vmul.f32 %v2025, %v2025
    %v2154 = vmul.f32 %v2026, %v2026
    %v2155 = vmul.f32 %v2027, %v2027
    %v2156 = vmul.f32 %v2028, %v2028
    %v2157 = vadd.f32 %v2029, %v2031
    %v2158 = vadd.f32 %v2157, %v2033
    %v2159 = vadd.f32 %v2158, %v2035
    %v2160 = vadd.f32 %v2159, %v2037
    %v2161 = vadd.f32 %v2160, %v2039
    %v2162 = vadd.f32 %v2161, %v2041
    %v2163 = vadd.f32 %v2162, %v2043
    %v2164 = vadd.f32 %v2163, %v2045
    %v2165 = vadd.f32 %v2164, %v2047
    %v2166 = vadd.f32 %v2165, %v2049
    %v2167 = vadd.f32 %v2166, %v2051
    %v2168 = vadd.f32 %v2167, %v2053
    %v2169 = vadd.f32 %v2168, %v2055
    %v2170 = vadd.f32 %v2169, %v2057
    %v2171 = vadd.f32 %v2170, %v2059
    %v2172 = vadd.f32 %v2171, %v2061
    %v2173 = vadd.f32 %v2172, %v2063
    %v2174 = vadd.f32 %v2173, %v2065
    %v2175 = vadd.f32 %v2174, %v2067
    %v2176 = vadd.f32 %v2175, %v2069
    %v2177 = vadd.f32 %v2176, %v2071
    %v2178 = vadd.f32 %v2177, %v2073
    %v2179 = vadd.f32 %v2178, %v2075
    %v2180 = vadd.f32 %v2179, %v2077
    %v2181 = vadd.f32 %v2180, %v2079
    %v2182 = vadd.f32 %v2181, %v2081
    %v2183 = vadd.f32 %v2182, %v2083
    %v2184 = vadd.f32 %v2183, %v2085
    %v2185 = vadd.f32 %v2184, %v2087
    %v2186 = vadd.f32 %v2185, %v2089
    %v2187 = vadd.f32 %v2186, %v2091
    %v2188 = vadd.f32 %v2187, %v2093
    %v2189 = vadd.f32 %v2188, %v2095
    %v2190 = vadd.f32 %v2189, %v2097
    %v2191 = vadd.f32 %v2190, %v2099
    %v2192 = vadd.f32 %v2191, %v2101
    %v2193 = vadd.f32 %v2192, %v2103
    %v2194 = vadd.f32 %v2193, %v2105
    %v2195 = vadd.f32 %v2194, %v2107
    %v2196 = vadd.f32 %v2195, %v2109
    %v2197 = vadd.f32 %v2196, %v2111
    %v2198 = vadd.f32 %v2197, %v2113
    %v2199 = vadd.f32 %v2198, %v2115
    %v2200 = vadd.f32 %v2199, %v2117
    %v2201 = vadd.f32 %v2200, %v2119
    %v2202 = vadd.f32 %v2201, %v2121
    %v2203 = vadd.f32 %v2202, %v2123
    %v2204 = vadd.f32 %v2203, %v2125
    %v2205 = vadd.f32 %v2204, %v2127
    %v2206 = vadd.f32 %v2205, %v2129
    %v2207 = vadd.f32 %v2206, %v2131
    %v2208 = vadd.f32 %v2207, %v2133
    %v2209 = vadd.f32 %v2208, %v2135
    %v2210 = vadd.f32 %v2209, %v2137
    %v2211 = vadd.f32 %v2210, %v2139
    %v2212 = vadd.f32 %v2211, %v2141
    %v2213 = vadd.f32 %v2212, %v2143
    %v2214 = vadd.f32 %v2213, %v2145
    %v2215 = vadd.f32 %v2214, %v2147
    %v2216 = vadd.f32 %v2215, %v2149
    %v2217 = vadd.f32 %v2216, %v2151
    %v2218 = vadd.f32 %v2217, %v2153
    %v2219 = vadd.f32 %v2218, %v2155
    %v2220 = vrot.slane %v2219, 4
    %v2221 = vadd.f32 %v2219, %v2220
    %v2222 = vrot.slane %v2221, 2
    %v2223 = vadd.f32 %v2221, %v2222
    %v2224 = vrot.slane %v2223, 1
    %v2225 = vadd.f32 %v2223, %v2224
    %v2226 = vadd.f32 %v2030, %v2032
    %v2227 = vadd.f32 %v2226, %v2034
    %v2228 = vadd.f32 %v2227, %v2036
    %v2229 = vadd.f32 %v2228, %v2038
    %v2230 = vadd.f32 %v2229, %v2040
    %v2231 = vadd.f32 %v2230, %v2042
    %v2232 = vadd.f32 %v2231, %v2044
    %v2233 = vadd.f32 %v2232, %v2046
    %v2234 = vadd.f32 %v2233, %v2048
    %v2235 = vadd.f32 %v2234, %v2050
    %v2236 = vadd.f32 %v2235, %v2052
    %v2237 = vadd.f32 %v2236, %v2054
    %v2238 = vadd.f32 %v2237, %v2056
    %v2239 = vadd.f32 %v2238, %v2058
    %v2240 = vadd.f32 %v2239, %v2060
    %v2241 = vadd.f32 %v2240, %v2062
    %v2242 = vadd.f32 %v2241, %v2064
    %v2243 = vadd.f32 %v2242, %v2066
    %v2244 = vadd.f32 %v2243, %v2068
    %v2245 = vadd.f32 %v2244, %v2070
    %v2246 = vadd.f32 %v2245, %v2072
    %v2247 = vadd.f32 %v2246, %v2074
    %v2248 = vadd.f32 %v2247, %v2076
    %v2249 = vadd.f32 %v2248, %v2078
    %v2250 = vadd.f32 %v2249, %v2080
    %v2251 = vadd.f32 %v2250, %v2082
    %v2252 = vadd.f32 %v2251, %v2084
    %v2253 = vadd.f32 %v2252, %v2086
    %v2254 = vadd.f32 %v2253, %v2088
    %v2255 = vadd.f32 %v2254, %v2090
    %v2256 = vadd.f32 %v2255, %v2092
    %v2257 = vadd.f32 %v2256, %v2094
    %v2258 = vadd.f32 %v2257, %v2096
    %v2259 = vadd.f32 %v2258, %v2098
    %v2260 = vadd.f32 %v2259, %v2100
    %v2261 = vadd.f32 %v2260, %v2102
    %v2262 = vadd.f32 %v2261, %v2104
    %v2263 = vadd.f32 %v2262, %v2106
    %v2264 = vadd.f32 %v2263, %v2108
    %v2265 = vadd.f32 %v2264, %v2110
    %v2266 = vadd.f32 %v2265, %v2112
    %v2267 = vadd.f32 %v2266, %v2114
    %v2268 = vadd.f32 %v2267, %v2116
    %v2269 = vadd.f32 %v2268, %v2118
    %v2270 = vadd.f32 %v2269, %v2120
    %v2271 = vadd.f32 %v2270, %v2122
    %v2272 = vadd.f32 %v2271, %v2124
    %v2273 = vadd.f32 %v2272, %v2126
    %v2274 = vadd.f32 %v2273, %v2128
    %v2275 = vadd.f32 %v2274, %v2130
    %v2276 = vadd.f32 %v2275, %v2132
    %v2277 = vadd.f32 %v2276, %v2134
    %v2278 = vadd.f32 %v2277, %v2136
    %v2279 = vadd.f32 %v2278, %v2138
    %v2280 = vadd.f32 %v2279, %v2140
    %v2281 = vadd.f32 %v2280, %v2142
    %v2282 = vadd.f32 %v2281, %v2144
    %v2283 = vadd.f32 %v2282, %v2146
    %v2284 = vadd.f32 %v2283, %v2148
    %v2285 = vadd.f32 %v2284, %v2150
    %v2286 = vadd.f32 %v2285, %v2152
    %v2287 = vadd.f32 %v2286, %v2154
    %v2288 = vadd.f32 %v2287, %v2156
    %v2289 = vrot.slane %v2288, 4
    %v2290 = vadd.f32 %v2288, %v2289
    %v2291 = vrot.slane %v2290, 2
    %v2292 = vadd.f32 %v2290, %v2291
    %v2293 = vrot.slane %v2292, 1
    %v2294 = vadd.f32 %v2292, %v2293
    %2296 = vrot.lane.b32.xlu0 %v2225, 64
    %v2297 = vpop.permute.xlu0 %2296
    %v2299 = vadd.f32 %v2225, %v2297
    %v2300 = vadd.f32 %v2299, %v2294
    %2302 = vrot.lane.b32.xlu0 %v2294, 64
    %v2303 = vpop.permute.xlu0 %2302
    %v2305 = vadd.f32 %v2300, %v2303
    %v2306 = vmul.f32 %v2305, 0.00048828125
    %v2307 = vld [vmem:[%s5] sm:$0x1]
    %v2308 = vadd.f32 %v2306, 1e-05
    %v2309 = vrsqrt.pop %v2308
    %v2310 = vmul.f32 %v2307, %v2309
    %v2312 = vlaneseq
    %v2313 = vshrl.u32 %v2312, 7
    %v2314 = vsub.s32 0, %v2313
    %v2315 = vrot.slane %v2310, %v2314
    %2316 = vrot.lane.b32.xlu0 %v2315, 64
    %v2317 = vpop.permute.xlu0 %2316
    %v2319 = vsel %vm1895, %v2310, %v2317
    %v2320 = vld [vmem:[%s6] sm:$0x1]
    %v2322 = vlaneseq
    %v2323 = vshrl.u32 %v2322, 7
    %v2324 = vsub.s32 0, %v2323
    %v2325 = vrot.slane %v2320, %v2324
    %2326 = vrot.lane.b32.xlu0 %v2325, 64
    %v2327 = vpop.permute.xlu0 %2326
    %v2329 = vsel %vm1895, %v2320, %v2327
    %v2330 = vlaneseq
    %v2331 = vshrl.u32 %v2330, 7
    %v2332 = vsub.s32 0, %v2331
    %v2333 = vrot.slane %v2319, %v2332
    %v2334 = vmul.f32 %v1901, %v2333
    %v2335 = vmul.f32 %v1902, %v2333
    %v2336 = vmul.f32 %v1903, %v2333
    %v2337 = vmul.f32 %v1904, %v2333
    %v2338 = vmul.f32 %v1905, %v2333
    %v2339 = vmul.f32 %v1906, %v2333
    %v2340 = vmul.f32 %v1907, %v2333
    %v2341 = vmul.f32 %v1908, %v2333
    %v2342 = vmul.f32 %v1909, %v2333
    %v2343 = vmul.f32 %v1910, %v2333
    %v2344 = vmul.f32 %v1911, %v2333
    %v2345 = vmul.f32 %v1912, %v2333
    %v2346 = vmul.f32 %v1913, %v2333
    %v2347 = vmul.f32 %v1914, %v2333
    %v2348 = vmul.f32 %v1915, %v2333
    %v2349 = vmul.f32 %v1916, %v2333
    %v2350 = vmul.f32 %v1917, %v2333
    %v2351 = vmul.f32 %v1918, %v2333
    %v2352 = vmul.f32 %v1919, %v2333
    %v2353 = vmul.f32 %v1920, %v2333
    %v2354 = vmul.f32 %v1921, %v2333
    %v2355 = vmul.f32 %v1922, %v2333
    %v2356 = vmul.f32 %v1923, %v2333
    %v2357 = vmul.f32 %v1924, %v2333
    %v2358 = vmul.f32 %v1925, %v2333
    %v2359 = vmul.f32 %v1926, %v2333
    %v2360 = vmul.f32 %v1927, %v2333
    %v2361 = vmul.f32 %v1928, %v2333
    %v2362 = vmul.f32 %v1929, %v2333
    %v2363 = vmul.f32 %v1930, %v2333
    %v2364 = vmul.f32 %v1931, %v2333
    %v2365 = vmul.f32 %v1932, %v2333
    %v2366 = vmul.f32 %v1933, %v2333
    %v2367 = vmul.f32 %v1934, %v2333
    %v2368 = vmul.f32 %v1935, %v2333
    %v2369 = vmul.f32 %v1936, %v2333
    %v2370 = vmul.f32 %v1937, %v2333
    %v2371 = vmul.f32 %v1938, %v2333
    %v2372 = vmul.f32 %v1939, %v2333
    %v2373 = vmul.f32 %v1940, %v2333
    %v2374 = vmul.f32 %v1941, %v2333
    %v2375 = vmul.f32 %v1942, %v2333
    %v2376 = vmul.f32 %v1943, %v2333
    %v2377 = vmul.f32 %v1944, %v2333
    %v2378 = vmul.f32 %v1945, %v2333
    %v2379 = vmul.f32 %v1946, %v2333
    %v2380 = vmul.f32 %v1947, %v2333
    %v2381 = vmul.f32 %v1948, %v2333
    %v2382 = vmul.f32 %v1949, %v2333
    %v2383 = vmul.f32 %v1950, %v2333
    %v2384 = vmul.f32 %v1951, %v2333
    %v2385 = vmul.f32 %v1952, %v2333
    %v2386 = vmul.f32 %v1953, %v2333
    %v2387 = vmul.f32 %v1954, %v2333
    %v2388 = vmul.f32 %v1955, %v2333
    %v2389 = vmul.f32 %v1956, %v2333
    %v2390 = vmul.f32 %v1957, %v2333
    %v2391 = vmul.f32 %v1958, %v2333
    %v2392 = vmul.f32 %v1959, %v2333
    %v2393 = vmul.f32 %v1960, %v2333
    %v2394 = vmul.f32 %v1961, %v2333
    %v2395 = vmul.f32 %v1962, %v2333
    %v2396 = vmul.f32 %v1963, %v2333
    %v2397 = vmul.f32 %v1964, %v2333
    %v2398 = vmul.f32 %v1965, %v2333
    %v2399 = vmul.f32 %v1966, %v2333
    %v2400 = vmul.f32 %v1967, %v2333
    %v2401 = vmul.f32 %v1968, %v2333
    %v2402 = vmul.f32 %v1969, %v2333
    %v2403 = vmul.f32 %v1970, %v2333
    %v2404 = vmul.f32 %v1971, %v2333
    %v2405 = vmul.f32 %v1972, %v2333
    %v2406 = vmul.f32 %v1973, %v2333
    %v2407 = vmul.f32 %v1974, %v2333
    %v2408 = vmul.f32 %v1975, %v2333
    %v2409 = vmul.f32 %v1976, %v2333
    %v2410 = vmul.f32 %v1977, %v2333
    %v2411 = vmul.f32 %v1978, %v2333
    %v2412 = vmul.f32 %v1979, %v2333
    %v2413 = vmul.f32 %v1980, %v2333
    %v2414 = vmul.f32 %v1981, %v2333
    %v2415 = vmul.f32 %v1982, %v2333
    %v2416 = vmul.f32 %v1983, %v2333
    %v2417 = vmul.f32 %v1984, %v2333
    %v2418 = vmul.f32 %v1985, %v2333
    %v2419 = vmul.f32 %v1986, %v2333
    %v2420 = vmul.f32 %v1987, %v2333
    %v2421 = vmul.f32 %v1988, %v2333
    %v2422 = vmul.f32 %v1989, %v2333
    %v2423 = vmul.f32 %v1990, %v2333
    %v2424 = vmul.f32 %v1991, %v2333
    %v2425 = vmul.f32 %v1992, %v2333
    %v2426 = vmul.f32 %v1993, %v2333
    %v2427 = vmul.f32 %v1994, %v2333
    %v2428 = vmul.f32 %v1995, %v2333
    %v2429 = vmul.f32 %v1996, %v2333
    %v2430 = vmul.f32 %v1997, %v2333
    %v2431 = vmul.f32 %v1998, %v2333
    %v2432 = vmul.f32 %v1999, %v2333
    %v2433 = vmul.f32 %v2000, %v2333
    %v2434 = vmul.f32 %v2001, %v2333
    %v2435 = vmul.f32 %v2002, %v2333
    %v2436 = vmul.f32 %v2003, %v2333
    %v2437 = vmul.f32 %v2004, %v2333
    %v2438 = vmul.f32 %v2005, %v2333
    %v2439 = vmul.f32 %v2006, %v2333
    %v2440 = vmul.f32 %v2007, %v2333
    %v2441 = vmul.f32 %v2008, %v2333
    %v2442 = vmul.f32 %v2009, %v2333
    %v2443 = vmul.f32 %v2010, %v2333
    %v2444 = vmul.f32 %v2011, %v2333
    %v2445 = vmul.f32 %v2012, %v2333
    %v2446 = vmul.f32 %v2013, %v2333
    %v2447 = vmul.f32 %v2014, %v2333
    %v2448 = vmul.f32 %v2015, %v2333
    %v2449 = vmul.f32 %v2016, %v2333
    %v2450 = vmul.f32 %v2017, %v2333
    %v2451 = vmul.f32 %v2018, %v2333
    %v2452 = vmul.f32 %v2019, %v2333
    %v2453 = vmul.f32 %v2020, %v2333
    %v2454 = vmul.f32 %v2021, %v2333
    %v2455 = vmul.f32 %v2022, %v2333
    %v2456 = vmul.f32 %v2023, %v2333
    %v2457 = vmul.f32 %v2024, %v2333
    %v2458 = vmul.f32 %v2025, %v2333
    %v2459 = vmul.f32 %v2026, %v2333
    %v2460 = vmul.f32 %v2027, %v2333
    %v2461 = vmul.f32 %v2028, %v2333
    %v2462 = vlaneseq
    %v2463 = vshrl.u32 %v2462, 7
    %v2464 = vsub.s32 0, %v2463
    %v2465 = vrot.slane %v2329, %v2464
    %v2466 = vadd.f32 %v2334, %v2465
    %v2467 = vadd.f32 %v2335, %v2465
    %v2468 = vadd.f32 %v2336, %v2465
    %v2469 = vadd.f32 %v2337, %v2465
    %v2470 = vadd.f32 %v2338, %v2465
    %v2471 = vadd.f32 %v2339, %v2465
    %v2472 = vadd.f32 %v2340, %v2465
    %v2473 = vadd.f32 %v2341, %v2465
    %v2474 = vadd.f32 %v2342, %v2465
    %v2475 = vadd.f32 %v2343, %v2465
    %v2476 = vadd.f32 %v2344, %v2465
    %v2477 = vadd.f32 %v2345, %v2465
    %v2478 = vadd.f32 %v2346, %v2465
    %v2479 = vadd.f32 %v2347, %v2465
    %v2480 = vadd.f32 %v2348, %v2465
    %v2481 = vadd.f32 %v2349, %v2465
    %v2482 = vadd.f32 %v2350, %v2465
    %v2483 = vadd.f32 %v2351, %v2465
    %v2484 = vadd.f32 %v2352, %v2465
    %v2485 = vadd.f32 %v2353, %v2465
    %v2486 = vadd.f32 %v2354, %v2465
    %v2487 = vadd.f32 %v2355, %v2465
    %v2488 = vadd.f32 %v2356, %v2465
    %v2489 = vadd.f32 %v2357, %v2465
    %v2490 = vadd.f32 %v2358, %v2465
    %v2491 = vadd.f32 %v2359, %v2465
    %v2492 = vadd.f32 %v2360, %v2465
    %v2493 = vadd.f32 %v2361, %v2465
    %v2494 = vadd.f32 %v2362, %v2465
    %v2495 = vadd.f32 %v2363, %v2465
    %v2496 = vadd.f32 %v2364, %v2465
    %v2497 = vadd.f32 %v2365, %v2465
    %v2498 = vadd.f32 %v2366, %v2465
    %v2499 = vadd.f32 %v2367, %v2465
    %v2500 = vadd.f32 %v2368, %v2465
    %v2501 = vadd.f32 %v2369, %v2465
    %v2502 = vadd.f32 %v2370, %v2465
    %v2503 = vadd.f32 %v2371, %v2465
    %v2504 = vadd.f32 %v2372, %v2465
    %v2505 = vadd.f32 %v2373, %v2465
    %v2506 = vadd.f32 %v2374, %v2465
    %v2507 = vadd.f32 %v2375, %v2465
    %v2508 = vadd.f32 %v2376, %v2465
    %v2509 = vadd.f32 %v2377, %v2465
    %v2510 = vadd.f32 %v2378, %v2465
    %v2511 = vadd.f32 %v2379, %v2465
    %v2512 = vadd.f32 %v2380, %v2465
    %v2513 = vadd.f32 %v2381, %v2465
    %v2514 = vadd.f32 %v2382, %v2465
    %v2515 = vadd.f32 %v2383, %v2465
    %v2516 = vadd.f32 %v2384, %v2465
    %v2517 = vadd.f32 %v2385, %v2465
    %v2518 = vadd.f32 %v2386, %v2465
    %v2519 = vadd.f32 %v2387, %v2465
    %v2520 = vadd.f32 %v2388, %v2465
    %v2521 = vadd.f32 %v2389, %v2465
    %v2522 = vadd.f32 %v2390, %v2465
    %v2523 = vadd.f32 %v2391, %v2465
    %v2524 = vadd.f32 %v2392, %v2465
    %v2525 = vadd.f32 %v2393, %v2465
    %v2526 = vadd.f32 %v2394, %v2465
    %v2527 = vadd.f32 %v2395, %v2465
    %v2528 = vadd.f32 %v2396, %v2465
    %v2529 = vadd.f32 %v2397, %v2465
    %v2530 = vadd.f32 %v2398, %v2465
    %v2531 = vadd.f32 %v2399, %v2465
    %v2532 = vadd.f32 %v2400, %v2465
    %v2533 = vadd.f32 %v2401, %v2465
    %v2534 = vadd.f32 %v2402, %v2465
    %v2535 = vadd.f32 %v2403, %v2465
    %v2536 = vadd.f32 %v2404, %v2465
    %v2537 = vadd.f32 %v2405, %v2465
    %v2538 = vadd.f32 %v2406, %v2465
    %v2539 = vadd.f32 %v2407, %v2465
    %v2540 = vadd.f32 %v2408, %v2465
    %v2541 = vadd.f32 %v2409, %v2465
    %v2542 = vadd.f32 %v2410, %v2465
    %v2543 = vadd.f32 %v2411, %v2465
    %v2544 = vadd.f32 %v2412, %v2465
    %v2545 = vadd.f32 %v2413, %v2465
    %v2546 = vadd.f32 %v2414, %v2465
    %v2547 = vadd.f32 %v2415, %v2465
    %v2548 = vadd.f32 %v2416, %v2465
    %v2549 = vadd.f32 %v2417, %v2465
    %v2550 = vadd.f32 %v2418, %v2465
    %v2551 = vadd.f32 %v2419, %v2465
    %v2552 = vadd.f32 %v2420, %v2465
    %v2553 = vadd.f32 %v2421, %v2465
    %v2554 = vadd.f32 %v2422, %v2465
    %v2555 = vadd.f32 %v2423, %v2465
    %v2556 = vadd.f32 %v2424, %v2465
    %v2557 = vadd.f32 %v2425, %v2465
    %v2558 = vadd.f32 %v2426, %v2465
    %v2559 = vadd.f32 %v2427, %v2465
    %v2560 = vadd.f32 %v2428, %v2465
    %v2561 = vadd.f32 %v2429, %v2465
    %v2562 = vadd.f32 %v2430, %v2465
    %v2563 = vadd.f32 %v2431, %v2465
    %v2564 = vadd.f32 %v2432, %v2465
    %v2565 = vadd.f32 %v2433, %v2465
    %v2566 = vadd.f32 %v2434, %v2465
    %v2567 = vadd.f32 %v2435, %v2465
    %v2568 = vadd.f32 %v2436, %v2465
    %v2569 = vadd.f32 %v2437, %v2465
    %v2570 = vadd.f32 %v2438, %v2465
    %v2571 = vadd.f32 %v2439, %v2465
    %v2572 = vadd.f32 %v2440, %v2465
    %v2573 = vadd.f32 %v2441, %v2465
    %v2574 = vadd.f32 %v2442, %v2465
    %v2575 = vadd.f32 %v2443, %v2465
    %v2576 = vadd.f32 %v2444, %v2465
    %v2577 = vadd.f32 %v2445, %v2465
    %v2578 = vadd.f32 %v2446, %v2465
    %v2579 = vadd.f32 %v2447, %v2465
    %v2580 = vadd.f32 %v2448, %v2465
    %v2581 = vadd.f32 %v2449, %v2465
    %v2582 = vadd.f32 %v2450, %v2465
    %v2583 = vadd.f32 %v2451, %v2465
    %v2584 = vadd.f32 %v2452, %v2465
    %v2585 = vadd.f32 %v2453, %v2465
    %v2586 = vadd.f32 %v2454, %v2465
    %v2587 = vadd.f32 %v2455, %v2465
    %v2588 = vadd.f32 %v2456, %v2465
    %v2589 = vadd.f32 %v2457, %v2465
    %v2590 = vadd.f32 %v2458, %v2465
    %v2591 = vadd.f32 %v2459, %v2465
    %v2592 = vadd.f32 %v2460, %v2465
    %v2593 = vadd.f32 %v2461, %v2465
    %v2594 = vmax.f32 %v2466, 0.0
    %v2595 = vmax.f32 %v2467, 0.0
    %v2596 = vmax.f32 %v2468, 0.0
    %v2597 = vmax.f32 %v2469, 0.0
    %v2598 = vmax.f32 %v2470, 0.0
    %v2599 = vmax.f32 %v2471, 0.0
    %v2600 = vmax.f32 %v2472, 0.0
    %v2601 = vmax.f32 %v2473, 0.0
    %v2602 = vmax.f32 %v2474, 0.0
    %v2603 = vmax.f32 %v2475, 0.0
    %v2604 = vmax.f32 %v2476, 0.0
    %v2605 = vmax.f32 %v2477, 0.0
    %v2606 = vmax.f32 %v2478, 0.0
    %v2607 = vmax.f32 %v2479, 0.0
    %v2608 = vmax.f32 %v2480, 0.0
    %v2609 = vmax.f32 %v2481, 0.0
    %v2610 = vmax.f32 %v2482, 0.0
    %v2611 = vmax.f32 %v2483, 0.0
    %v2612 = vmax.f32 %v2484, 0.0
    %v2613 = vmax.f32 %v2485, 0.0
    %v2614 = vmax.f32 %v2486, 0.0
    %v2615 = vmax.f32 %v2487, 0.0
    %v2616 = vmax.f32 %v2488, 0.0
    %v2617 = vmax.f32 %v2489, 0.0
    %v2618 = vmax.f32 %v2490, 0.0
    %v2619 = vmax.f32 %v2491, 0.0
    %v2620 = vmax.f32 %v2492, 0.0
    %v2621 = vmax.f32 %v2493, 0.0
    %v2622 = vmax.f32 %v2494, 0.0
    %v2623 = vmax.f32 %v2495, 0.0
    %v2624 = vmax.f32 %v2496, 0.0
    %v2625 = vmax.f32 %v2497, 0.0
    %v2626 = vmax.f32 %v2498, 0.0
    %v2627 = vmax.f32 %v2499, 0.0
    %v2628 = vmax.f32 %v2500, 0.0
    %v2629 = vmax.f32 %v2501, 0.0
    %v2630 = vmax.f32 %v2502, 0.0
    %v2631 = vmax.f32 %v2503, 0.0
    %v2632 = vmax.f32 %v2504, 0.0
    %v2633 = vmax.f32 %v2505, 0.0
    %v2634 = vmax.f32 %v2506, 0.0
    %v2635 = vmax.f32 %v2507, 0.0
    %v2636 = vmax.f32 %v2508, 0.0
    %v2637 = vmax.f32 %v2509, 0.0
    %v2638 = vmax.f32 %v2510, 0.0
    %v2639 = vmax.f32 %v2511, 0.0
    %v2640 = vmax.f32 %v2512, 0.0
    %v2641 = vmax.f32 %v2513, 0.0
    %v2642 = vmax.f32 %v2514, 0.0
    %v2643 = vmax.f32 %v2515, 0.0
    %v2644 = vmax.f32 %v2516, 0.0
    %v2645 = vmax.f32 %v2517, 0.0
    %v2646 = vmax.f32 %v2518, 0.0
    %v2647 = vmax.f32 %v2519, 0.0
    %v2648 = vmax.f32 %v2520, 0.0
    %v2649 = vmax.f32 %v2521, 0.0
    %v2650 = vmax.f32 %v2522, 0.0
    %v2651 = vmax.f32 %v2523, 0.0
    %v2652 = vmax.f32 %v2524, 0.0
    %v2653 = vmax.f32 %v2525, 0.0
    %v2654 = vmax.f32 %v2526, 0.0
    %v2655 = vmax.f32 %v2527, 0.0
    %v2656 = vmax.f32 %v2528, 0.0
    %v2657 = vmax.f32 %v2529, 0.0
    %v2658 = vmax.f32 %v2530, 0.0
    %v2659 = vmax.f32 %v2531, 0.0
    %v2660 = vmax.f32 %v2532, 0.0
    %v2661 = vmax.f32 %v2533, 0.0
    %v2662 = vmax.f32 %v2534, 0.0
    %v2663 = vmax.f32 %v2535, 0.0
    %v2664 = vmax.f32 %v2536, 0.0
    %v2665 = vmax.f32 %v2537, 0.0
    %v2666 = vmax.f32 %v2538, 0.0
    %v2667 = vmax.f32 %v2539, 0.0
    %v2668 = vmax.f32 %v2540, 0.0
    %v2669 = vmax.f32 %v2541, 0.0
    %v2670 = vmax.f32 %v2542, 0.0
    %v2671 = vmax.f32 %v2543, 0.0
    %v2672 = vmax.f32 %v2544, 0.0
    %v2673 = vmax.f32 %v2545, 0.0
    %v2674 = vmax.f32 %v2546, 0.0
    %v2675 = vmax.f32 %v2547, 0.0
    %v2676 = vmax.f32 %v2548, 0.0
    %v2677 = vmax.f32 %v2549, 0.0
    %v2678 = vmax.f32 %v2550, 0.0
    %v2679 = vmax.f32 %v2551, 0.0
    %v2680 = vmax.f32 %v2552, 0.0
    %v2681 = vmax.f32 %v2553, 0.0
    %v2682 = vmax.f32 %v2554, 0.0
    %v2683 = vmax.f32 %v2555, 0.0
    %v2684 = vmax.f32 %v2556, 0.0
    %v2685 = vmax.f32 %v2557, 0.0
    %v2686 = vmax.f32 %v2558, 0.0
    %v2687 = vmax.f32 %v2559, 0.0
    %v2688 = vmax.f32 %v2560, 0.0
    %v2689 = vmax.f32 %v2561, 0.0
    %v2690 = vmax.f32 %v2562, 0.0
    %v2691 = vmax.f32 %v2563, 0.0
    %v2692 = vmax.f32 %v2564, 0.0
    %v2693 = vmax.f32 %v2565, 0.0
    %v2694 = vmax.f32 %v2566, 0.0
    %v2695 = vmax.f32 %v2567, 0.0
    %v2696 = vmax.f32 %v2568, 0.0
    %v2697 = vmax.f32 %v2569, 0.0
    %v2698 = vmax.f32 %v2570, 0.0
    %v2699 = vmax.f32 %v2571, 0.0
    %v2700 = vmax.f32 %v2572, 0.0
    %v2701 = vmax.f32 %v2573, 0.0
    %v2702 = vmax.f32 %v2574, 0.0
    %v2703 = vmax.f32 %v2575, 0.0
    %v2704 = vmax.f32 %v2576, 0.0
    %v2705 = vmax.f32 %v2577, 0.0
    %v2706 = vmax.f32 %v2578, 0.0
    %v2707 = vmax.f32 %v2579, 0.0
    %v2708 = vmax.f32 %v2580, 0.0
    %v2709 = vmax.f32 %v2581, 0.0
    %v2710 = vmax.f32 %v2582, 0.0
    %v2711 = vmax.f32 %v2583, 0.0
    %v2712 = vmax.f32 %v2584, 0.0
    %v2713 = vmax.f32 %v2585, 0.0
    %v2714 = vmax.f32 %v2586, 0.0
    %v2715 = vmax.f32 %v2587, 0.0
    %v2716 = vmax.f32 %v2588, 0.0
    %v2717 = vmax.f32 %v2589, 0.0
    %v2718 = vmax.f32 %v2590, 0.0
    %v2719 = vmax.f32 %v2591, 0.0
    %v2720 = vmax.f32 %v2592, 0.0
    %v2721 = vmax.f32 %v2593, 0.0
    %v2722 = vld [vmem:[%s7] sm:$0xff]
    %v2723 = vld [vmem:[%s7 + $0x8] sm:$0xff]
    %v2724 = vld [vmem:[%s7 + $0x10] sm:$0xff]
    %v2725 = vld [vmem:[%s7 + $0x18] sm:$0xff]
    %v2726 = vld [vmem:[%s7 + $0x20] sm:$0xff]
    %v2727 = vld [vmem:[%s7 + $0x28] sm:$0xff]
    %v2728 = vld [vmem:[%s7 + $0x30] sm:$0xff]
    %v2729 = vld [vmem:[%s7 + $0x38] sm:$0xff]
    %v2730 = vld [vmem:[%s7 + $0x40] sm:$0xff]
    %v2731 = vld [vmem:[%s7 + $0x48] sm:$0xff]
    %v2732 = vld [vmem:[%s7 + $0x50] sm:$0xff]
    %v2733 = vld [vmem:[%s7 + $0x58] sm:$0xff]
    %v2734 = vld [vmem:[%s7 + $0x60] sm:$0xff]
    %v2735 = vld [vmem:[%s7 + $0x68] sm:$0xff]
    %v2736 = vld [vmem:[%s7 + $0x70] sm:$0xff]
    %v2737 = vld [vmem:[%s7 + $0x78] sm:$0xff]
    %v2738 = vld [vmem:[%s7 + $0x80] sm:$0xff]
    %v2739 = vld [vmem:[%s7 + $0x88] sm:$0xff]
    %v2740 = vld [vmem:[%s7 + $0x90] sm:$0xff]
    %v2741 = vld [vmem:[%s7 + $0x98] sm:$0xff]
    %v2742 = vld [vmem:[%s7 + $0xa0] sm:$0xff]
    %v2743 = vld [vmem:[%s7 + $0xa8] sm:$0xff]
    %v2744 = vld [vmem:[%s7 + $0xb0] sm:$0xff]
    %v2745 = vld [vmem:[%s7 + $0xb8] sm:$0xff]
    %v2746 = vld [vmem:[%s7 + $0xc0] sm:$0xff]
    %v2747 = vld [vmem:[%s7 + $0xc8] sm:$0xff]
    %v2748 = vld [vmem:[%s7 + $0xd0] sm:$0xff]
    %v2749 = vld [vmem:[%s7 + $0xd8] sm:$0xff]
    %v2750 = vld [vmem:[%s7 + $0xe0] sm:$0xff]
    %v2751 = vld [vmem:[%s7 + $0xe8] sm:$0xff]
    %v2752 = vld [vmem:[%s7 + $0xf0] sm:$0xff]
    %v2753 = vld [vmem:[%s7 + $0xf8] sm:$0xff]
    %v2754 = vld [vmem:[#allocation2] sm:$0x1]
    %v2756 = vlaneseq
    %v2757 = vshrl.u32 %v2756, 7
    %v2758 = vsub.s32 0, %v2757
    %v2759 = vrot.slane %v2754, %v2758
    %2760 = vset.pattern.permute.xlu0 0
    %2761 = vperm.xlu0 %2760, %v2759
    %v2762 = vpop.permute.xlu0 %2761
    %2764 = vmatprep.subr.mxu0 0.0
    %2765 = vmatpush1.msra.mxu0 %v2722
    %2766 = vmatprep.subr.mxu0 0.0
    %2767 = vmatpush1.msra.mxu0 %v2723
    %2768 = vmatprep.subr.mxu0 0.0
    %2769 = vmatpush1.msra.mxu0 %v2724
    %2770 = vmatprep.subr.mxu0 0.0
    %2771 = vmatpush1.msra.mxu0 %v2725
    %2772 = vmatprep.subr.mxu0 0.0
    %2773 = vmatpush1.msra.mxu0 %v2726
    %2774 = vmatprep.subr.mxu0 0.0
    %2775 = vmatpush1.msra.mxu0 %v2727
    %2776 = vmatprep.subr.mxu0 0.0
    %2777 = vmatpush1.msra.mxu0 %v2728
    %2778 = vmatprep.subr.mxu0 0.0
    %2779 = vmatpush1.msra.mxu0 %v2729
    %2780 = vmatprep.subr.mxu0 0.0
    %2781 = vmatpush1.msra.mxu0 %v2730
    %2782 = vmatprep.subr.mxu0 0.0
    %2783 = vmatpush1.msra.mxu0 %v2731
    %2784 = vmatprep.subr.mxu0 0.0
    %2785 = vmatpush1.msra.mxu0 %v2732
    %2786 = vmatprep.subr.mxu0 0.0
    %2787 = vmatpush1.msra.mxu0 %v2733
    %2788 = vmatprep.subr.mxu0 0.0
    %2789 = vmatpush1.msra.mxu0 %v2734
    %2790 = vmatprep.subr.mxu0 0.0
    %2791 = vmatpush1.msra.mxu0 %v2735
    %2792 = vmatprep.subr.mxu0 0.0
    %2793 = vmatpush1.msra.mxu0 %v2736
    %2794 = vmatprep.subr.mxu0 0.0
    %2795 = vmatpush1.msra.mxu0 %v2737
    %2796 = vmatprep.subr.mxu0 0.0
    %2797 = vmatpush1.msra.mxu0 %v2738
    %2798 = vmatprep.subr.mxu0 0.0
    %2799 = vmatpush1.msra.mxu0 %v2739
    %2800 = vmatprep.subr.mxu0 0.0
    %2801 = vmatpush1.msra.mxu0 %v2740
    %2802 = vmatprep.subr.mxu0 0.0
    %2803 = vmatpush1.msra.mxu0 %v2741
    %2804 = vmatprep.subr.mxu0 0.0
    %2805 = vmatpush1.msra.mxu0 %v2742
    %2806 = vmatprep.subr.mxu0 0.0
    %2807 = vmatpush1.msra.mxu0 %v2743
    %2808 = vmatprep.subr.mxu0 0.0
    %2809 = vmatpush1.msra.mxu0 %v2744
    %2810 = vmatprep.subr.mxu0 0.0
    %2811 = vmatpush1.msra.mxu0 %v2745
    %2812 = vmatprep.subr.mxu0 0.0
    %2813 = vmatpush1.msra.mxu0 %v2746
    %2814 = vmatprep.subr.mxu0 0.0
    %2815 = vmatpush1.msra.mxu0 %v2747
    %2816 = vmatprep.subr.mxu0 0.0
    %2817 = vmatpush1.msra.mxu0 %v2748
    %2818 = vmatprep.subr.mxu0 0.0
    %2819 = vmatpush1.msra.mxu0 %v2749
    %2820 = vmatprep.subr.mxu0 0.0
    %2821 = vmatpush1.msra.mxu0 %v2750
    %2822 = vmatprep.subr.mxu0 0.0
    %2823 = vmatpush1.msra.mxu0 %v2751
    %2824 = vmatprep.subr.mxu0 0.0
    %2825 = vmatpush1.msra.mxu0 %v2752
    %2826 = vmatprep.subr.mxu0 0.0
    %2827 = vmatpush1.msra.mxu0 %v2753
    %2828 = vmatprep.mubr.f32.mxu0 %v2595
    %2829 = vmatmul.mubr.f32.gmra.mrb[0].mxu0 %v2594
    %v2830 = vpop.f32.mrb[0].mxu0
    %v2831 = vadd.f32 %v2762, %v2830
    %v2832 = vpop.f32.mrb[0].mxu0
    %2833 = vmatprep.mubr.f32.mxu0 %v2597
    %2834 = vmatmul.mubr.f32.gmra.mrb[0].mxu0 %v2596
    %v2835 = vpop.f32.mrb[0].mxu0
    %v2836 = vadd.f32 %v2762, %v2835
    %v2837 = vpop.f32.mrb[0].mxu0
    %2838 = vmatprep.mubr.f32.mxu0 %v2599
    %2839 = vmatmul.mubr.f32.gmra.mrb[0].mxu0 %v2598
    %v2840 = vpop.f32.mrb[0].mxu0
    %v2841 = vadd.f32 %v2762, %v2840
    %v2842 = vpop.f32.mrb[0].mxu0
    %2843 = vmatprep.mubr.f32.mxu0 %v2601
    %2844 = vmatmul.mubr.f32.gmra.mrb[0].mxu0 %v2600
    %v2845 = vpop.f32.mrb[0].mxu0
    %v2846 = vadd.f32 %v2762, %v2845
    %v2847 = vpop.f32.mrb[0].mxu0
    %2848 = vmatprep.mubr.f32.mxu0 %v2603
    %2849 = vmatmul.mubr.f32.gmra.mrb[0].mxu0 %v2602
    %v2850 = vpop.f32.mrb[0].mxu0
    %v2851 = vadd.f32 %v2762, %v2850
    %v2852 = vpop.f32.mrb[0].mxu0
    %2853 = vmatprep.mubr.f32.mxu0 %v2605
    %2854 = vmatmul.mubr.f32.gmra.mrb[0].mxu0 %v2604
    %v2855 = vpop.f32.mrb[0].mxu0
    %v2856 = vadd.f32 %v2762, %v2855
    %v2857 = vpop.f32.mrb[0].mxu0
    %2858 = vmatprep.mubr.f32.mxu0 %v2607
    %2859 = vmatmul.mubr.f32.gmra.mrb[0].mxu0 %v2606
    %v2860 = vpop.f32.mrb[0].mxu0
    %v2861 = vadd.f32 %v2762, %v2860
    %v2862 = vpop.f32.mrb[0].mxu0
    %2863 = vmatprep.mubr.f32.mxu0 %v2609
    %2864 = vmatmul.mubr.f32.gmra.mrb[0].mxu0 %v2608
    %v2865 = vpop.f32.mrb[0].mxu0
    %v2866 = vadd.f32 %v2762, %v2865
    %v2867 = vpop.f32.mrb[0].mxu0
    %2868 = vmatprep.mubr.f32.mxu0 %v2611
    %2869 = vmatmul.mubr.f32.gmra.mrb[0].mxu0 %v2610
    %v2870 = vpop.f32.mrb[0].mxu0
    %v2871 = vadd.f32 %v2762, %v2870
    %v2872 = vpop.f32.mrb[0].mxu0
    %2873 = vmatprep.mubr.f32.mxu0 %v2613
    %2874 = vmatmul.mubr.f32.gmra.mrb[0].mxu0 %v2612
    %v2875 = vpop.f32.mrb[0].mxu0
    %v2876 = vadd.f32 %v2762, %v2875
    %v2877 = vpop.f32.mrb[0].mxu0
    %2878 = vmatprep.mubr.f32.mxu0 %v2615
    %2879 = vmatmul.mubr.f32.gmra.mrb[0].mxu0 %v2614
    %v2880 = vpop.f32.mrb[0].mxu0
    %v2881 = vadd.f32 %v2762, %v2880
    %v2882 = vpop.f32.mrb[0].mxu0
    %2883 = vmatprep.mubr.f32.mxu0 %v2617
    %2884 = vmatmul.mubr.f32.gmra.mrb[0].mxu0 %v2616
    %v2885 = vpop.f32.mrb[0].mxu0
    %v2886 = vadd.f32 %v2762, %v2885
    %v2887 = vpop.f32.mrb[0].mxu0
    %2888 = vmatprep.mubr.f32.mxu0 %v2619
    %2889 = vmatmul.mubr.f32.gmra.mrb[0].mxu0 %v2618
    %v2890 = vpop.f32.mrb[0].mxu0
    %v2891 = vadd.f32 %v2762, %v2890
    %v2892 = vpop.f32.mrb[0].mxu0
    %2893 = vmatprep.mubr.f32.mxu0 %v2621
    %2894 = vmatmul.mubr.f32.gmra.mrb[0].mxu0 %v2620
    %v2895 = vpop.f32.mrb[0].mxu0
    %v2896 = vadd.f32 %v2762, %v2895
    %v2897 = vpop.f32.mrb[0].mxu0
    %2898 = vmatprep.mubr.f32.mxu0 %v2623
    %2899 = vmatmul.mubr.f32.gmra.mrb[0].mxu0 %v2622
    %v2900 = vpop.f32.mrb[0].mxu0
    %v2901 = vadd.f32 %v2762, %v2900
    %v2902 = vpop.f32.mrb[0].mxu0
    %2903 = vmatprep.mubr.f32.mxu0 %v2625
    %2904 = vmatmul.mubr.f32.gmra.mrb[0].mxu0 %v2624
    %v2905 = vpop.f32.mrb[0].mxu0
    %v2906 = vadd.f32 %v2762, %v2905
    %v2907 = vpop.f32.mrb[0].mxu0
    %2908 = vmatprep.mubr.f32.mxu0 %v2627
    %2909 = vmatmul.mubr.f32.gmra.mrb[0].mxu0 %v2626
    %v2910 = vpop.f32.mrb[0].mxu0
    %v2911 = vadd.f32 %v2762, %v2910
    %v2912 = vpop.f32.mrb[0].mxu0
    %2913 = vmatprep.mubr.f32.mxu0 %v2629
    %2914 = vmatmul.mubr.f32.gmra.mrb[0].mxu0 %v2628
    %v2915 = vpop.f32.mrb[0].mxu0
    %v2916 = vadd.f32 %v2762, %v2915
    %v2917 = vpop.f32.mrb[0].mxu0
    %2918 = vmatprep.mubr.f32.mxu0 %v2631
    %2919 = vmatmul.mubr.f32.gmra.mrb[0].mxu0 %v2630
    %v2920 = vpop.f32.mrb[0].mxu0
    %v2921 = vadd.f32 %v2762, %v2920
    %v2922 = vpop.f32.mrb[0].mxu0
    %2923 = vmatprep.mubr.f32.mxu0 %v2633
    %2924 = vmatmul.mubr.f32.gmra.mrb[0].mxu0 %v2632
    %v2925 = vpop.f32.mrb[0].mxu0
    %v2926 = vadd.f32 %v2762, %v2925
    %v2927 = vpop.f32.mrb[0].mxu0
    %2928 = vmatprep.mubr.f32.mxu0 %v2635
    %2929 = vmatmul.mubr.f32.gmra.mrb[0].mxu0 %v2634
    %v2930 = vpop.f32.mrb[0].mxu0
    %v2931 = vadd.f32 %v2762, %v2930
    %v2932 = vpop.f32.mrb[0].mxu0
    %2933 = vmatprep.mubr.f32.mxu0 %v2637
    %2934 = vmatmul.mubr.f32.gmra.mrb[0].mxu0 %v2636
    %v2935 = vpop.f32.mrb[0].mxu0
    %v2936 = vadd.f32 %v2762, %v2935
    %v2937 = vpop.f32.mrb[0].mxu0
    %2938 = vmatprep.mubr.f32.mxu0 %v2639
    %2939 = vmatmul.mubr.f32.gmra.mrb[0].mxu0 %v2638
    %v2940 = vpop.f32.mrb[0].mxu0
    %v2941 = vadd.f32 %v2762, %v2940
    %v2942 = vpop.f32.mrb[0].mxu0
    %2943 = vmatprep.mubr.f32.mxu0 %v2641
    %2944 = vmatmul.mubr.f32.gmra.mrb[0].mxu0 %v2640
    %v2945 = vpop.f32.mrb[0].mxu0
    %v2946 = vadd.f32 %v2762, %v2945
    %v2947 = vpop.f32.mrb[0].mxu0
    %2948 = vmatprep.mubr.f32.mxu0 %v2643
    %2949 = vmatmul.mubr.f32.gmra.mrb[0].mxu0 %v2642
    %v2950 = vpop.f32.mrb[0].mxu0
    %v2951 = vadd.f32 %v2762, %v2950
    %v2952 = vpop.f32.mrb[0].mxu0
    %2953 = vmatprep.mubr.f32.mxu0 %v2645
    %2954 = vmatmul.mubr.f32.gmra.mrb[0].mxu0 %v2644
    %v2955 = vpop.f32.mrb[0].mxu0
    %v2956 = vadd.f32 %v2762, %v2955
    %v2957 = vpop.f32.mrb[0].mxu0
    %2958 = vmatprep.mubr.f32.mxu0 %v2647
    %2959 = vmatmul.mubr.f32.gmra.mrb[0].mxu0 %v2646
    %v2960 = vpop.f32.mrb[0].mxu0
    %v2961 = vadd.f32 %v2762, %v2960
    %v2962 = vpop.f32.mrb[0].mxu0
    %2963 = vmatprep.mubr.f32.mxu0 %v2649
    %2964 = vmatmul.mubr.f32.gmra.mrb[0].mxu0 %v2648
    %v2965 = vpop.f32.mrb[0].mxu0
    %v2966 = vadd.f32 %v2762, %v2965
    %v2967 = vpop.f32.mrb[0].mxu0
    %2968 = vmatprep.mubr.f32.mxu0 %v2651
    %2969 = vmatmul.mubr.f32.gmra.mrb[0].mxu0 %v2650
    %v2970 = vpop.f32.mrb[0].mxu0
    %v2971 = vadd.f32 %v2762, %v2970
    %v2972 = vpop.f32.mrb[0].mxu0
    %2973 = vmatprep.mubr.f32.mxu0 %v2653
    %2974 = vmatmul.mubr.f32.gmra.mrb[0].mxu0 %v2652
    %v2975 = vpop.f32.mrb[0].mxu0
    %v2976 = vadd.f32 %v2762, %v2975
    %v2977 = vpop.f32.mrb[0].mxu0
    %2978 = vmatprep.mubr.f32.mxu0 %v2655
    %2979 = vmatmul.mubr.f32.gmra.mrb[0].mxu0 %v2654
    %v2980 = vpop.f32.mrb[0].mxu0
    %v2981 = vadd.f32 %v2762, %v2980
    %v2982 = vpop.f32.mrb[0].mxu0
    %2983 = vmatprep.mubr.f32.mxu0 %v2657
    %2984 = vmatmul.mubr.f32.gmra.mrb[0].mxu0 %v2656
    %v2985 = vpop.f32.mrb[0].mxu0
    %v2986 = vadd.f32 %v2762, %v2985
    %v2987 = vpop.f32.mrb[0].mxu0
    %2988 = vmatprep.mubr.f32.mxu0 %v2659
    %2989 = vmatmul.mubr.f32.gmra.mrb[0].mxu0 %v2658
    %v2990 = vpop.f32.mrb[0].mxu0
    %v2991 = vadd.f32 %v2762, %v2990
    %v2992 = vpop.f32.mrb[0].mxu0
    %2993 = vmatprep.mubr.f32.mxu0 %v2661
    %2994 = vmatmul.mubr.f32.gmra.mrb[0].mxu0 %v2660
    %v2995 = vpop.f32.mrb[0].mxu0
    %v2996 = vadd.f32 %v2762, %v2995
    %v2997 = vpop.f32.mrb[0].mxu0
    %2998 = vmatprep.mubr.f32.mxu0 %v2663
    %2999 = vmatmul.mubr.f32.gmra.mrb[0].mxu0 %v2662
    %v3000 = vpop.f32.mrb[0].mxu0
    %v3001 = vadd.f32 %v2762, %v3000
    %v3002 = vpop.f32.mrb[0].mxu0
    %3003 = vmatprep.mubr.f32.mxu0 %v2665
    %3004 = vmatmul.mubr.f32.gmra.mrb[0].mxu0 %v2664
    %v3005 = vpop.f32.mrb[0].mxu0
    %v3006 = vadd.f32 %v2762, %v3005
    %v3007 = vpop.f32.mrb[0].mxu0
    %3008 = vmatprep.mubr.f32.mxu0 %v2667
    %3009 = vmatmul.mubr.f32.gmra.mrb[0].mxu0 %v2666
    %v3010 = vpop.f32.mrb[0].mxu0
    %v3011 = vadd.f32 %v2762, %v3010
    %v3012 = vpop.f32.mrb[0].mxu0
    %3013 = vmatprep.mubr.f32.mxu0 %v2669
    %3014 = vmatmul.mubr.f32.gmra.mrb[0].mxu0 %v2668
    %v3015 = vpop.f32.mrb[0].mxu0
    %v3016 = vadd.f32 %v2762, %v3015
    %v3017 = vpop.f32.mrb[0].mxu0
    %3018 = vmatprep.mubr.f32.mxu0 %v2671
    %3019 = vmatmul.mubr.f32.gmra.mrb[0].mxu0 %v2670
    %v3020 = vpop.f32.mrb[0].mxu0
    %v3021 = vadd.f32 %v2762, %v3020
    %v3022 = vpop.f32.mrb[0].mxu0
    %3023 = vmatprep.mubr.f32.mxu0 %v2673
    %3024 = vmatmul.mubr.f32.gmra.mrb[0].mxu0 %v2672
    %v3025 = vpop.f32.mrb[0].mxu0
    %v3026 = vadd.f32 %v2762, %v3025
    %v3027 = vpop.f32.mrb[0].mxu0
    %3028 = vmatprep.mubr.f32.mxu0 %v2675
    %3029 = vmatmul.mubr.f32.gmra.mrb[0].mxu0 %v2674
    %v3030 = vpop.f32.mrb[0].mxu0
    %v3031 = vadd.f32 %v2762, %v3030
    %v3032 = vpop.f32.mrb[0].mxu0
    %3033 = vmatprep.mubr.f32.mxu0 %v2677
    %3034 = vmatmul.mubr.f32.gmra.mrb[0].mxu0 %v2676
    %v3035 = vpop.f32.mrb[0].mxu0
    %v3036 = vadd.f32 %v2762, %v3035
    %v3037 = vpop.f32.mrb[0].mxu0
    %3038 = vmatprep.mubr.f32.mxu0 %v2679
    %3039 = vmatmul.mubr.f32.gmra.mrb[0].mxu0 %v2678
    %v3040 = vpop.f32.mrb[0].mxu0
    %v3041 = vadd.f32 %v2762, %v3040
    %v3042 = vpop.f32.mrb[0].mxu0
    %3043 = vmatprep.mubr.f32.mxu0 %v2681
    %3044 = vmatmul.mubr.f32.gmra.mrb[0].mxu0 %v2680
    %v3045 = vpop.f32.mrb[0].mxu0
    %v3046 = vadd.f32 %v2762, %v3045
    %v3047 = vpop.f32.mrb[0].mxu0
    %3048 = vmatprep.mubr.f32.mxu0 %v2683
    %3049 = vmatmul.mubr.f32.gmra.mrb[0].mxu0 %v2682
    %v3050 = vpop.f32.mrb[0].mxu0
    %v3051 = vadd.f32 %v2762, %v3050
    %v3052 = vpop.f32.mrb[0].mxu0
    %3053 = vmatprep.mubr.f32.mxu0 %v2685
    %3054 = vmatmul.mubr.f32.gmra.mrb[0].mxu0 %v2684
    %v3055 = vpop.f32.mrb[0].mxu0
    %v3056 = vadd.f32 %v2762, %v3055
    %v3057 = vpop.f32.mrb[0].mxu0
    %3058 = vmatprep.mubr.f32.mxu0 %v2687
    %3059 = vmatmul.mubr.f32.gmra.mrb[0].mxu0 %v2686
    %v3060 = vpop.f32.mrb[0].mxu0
    %v3061 = vadd.f32 %v2762, %v3060
    %v3062 = vpop.f32.mrb[0].mxu0
    %3063 = vmatprep.mubr.f32.mxu0 %v2689
    %3064 = vmatmul.mubr.f32.gmra.mrb[0].mxu0 %v2688
    %v3065 = vpop.f32.mrb[0].mxu0
    %v3066 = vadd.f32 %v2762, %v3065
    %v3067 = vpop.f32.mrb[0].mxu0
    %3068 = vmatprep.mubr.f32.mxu0 %v2691
    %3069 = vmatmul.mubr.f32.gmra.mrb[0].mxu0 %v2690
    %v3070 = vpop.f32.mrb[0].mxu0
    %v3071 = vadd.f32 %v2762, %v3070
    %v3072 = vpop.f32.mrb[0].mxu0
    %3073 = vmatprep.mubr.f32.mxu0 %v2693
    %3074 = vmatmul.mubr.f32.gmra.mrb[0].mxu0 %v2692
    %v3075 = vpop.f32.mrb[0].mxu0
    %v3076 = vadd.f32 %v2762, %v3075
    %v3077 = vpop.f32.mrb[0].mxu0
    %3078 = vmatprep.mubr.f32.mxu0 %v2695
    %3079 = vmatmul.mubr.f32.gmra.mrb[0].mxu0 %v2694
    %v3080 = vpop.f32.mrb[0].mxu0
    %v3081 = vadd.f32 %v2762, %v3080
    %v3082 = vpop.f32.mrb[0].mxu0
    %3083 = vmatprep.mubr.f32.mxu0 %v2697
    %3084 = vmatmul.mubr.f32.gmra.mrb[0].mxu0 %v2696
    %v3085 = vpop.f32.mrb[0].mxu0
    %v3086 = vadd.f32 %v2762, %v3085
    %v3087 = vpop.f32.mrb[0].mxu0
    %3088 = vmatprep.mubr.f32.mxu0 %v2699
    %3089 = vmatmul.mubr.f32.gmra.mrb[0].mxu0 %v2698
    %v3090 = vpop.f32.mrb[0].mxu0
    %v3091 = vadd.f32 %v2762, %v3090
    %v3092 = vpop.f32.mrb[0].mxu0
    %3093 = vmatprep.mubr.f32.mxu0 %v2701
    %3094 = vmatmul.mubr.f32.gmra.mrb[0].mxu0 %v2700
    %v3095 = vpop.f32.mrb[0].mxu0
    %v3096 = vadd.f32 %v2762, %v3095
    %v3097 = vpop.f32.mrb[0].mxu0
    %3098 = vmatprep.mubr.f32.mxu0 %v2703
    %3099 = vmatmul.mubr.f32.gmra.mrb[0].mxu0 %v2702
    %v3100 = vpop.f32.mrb[0].mxu0
    %v3101 = vadd.f32 %v2762, %v3100
    %v3102 = vpop.f32.mrb[0].mxu0
    %3103 = vmatprep.mubr.f32.mxu0 %v2705
    %3104 = vmatmul.mubr.f32.gmra.mrb[0].mxu0 %v2704
    %v3105 = vpop.f32.mrb[0].mxu0
    %v3106 = vadd.f32 %v2762, %v3105
    %v3107 = vpop.f32.mrb[0].mxu0
    %3108 = vmatprep.mubr.f32.mxu0 %v2707
    %3109 = vmatmul.mubr.f32.gmra.mrb[0].mxu0 %v2706
    %v3110 = vpop.f32.mrb[0].mxu0
    %v3111 = vadd.f32 %v2762, %v3110
    %v3112 = vpop.f32.mrb[0].mxu0
    %3113 = vmatprep.mubr.f32.mxu0 %v2709
    %3114 = vmatmul.mubr.f32.gmra.mrb[0].mxu0 %v2708
    %v3115 = vpop.f32.mrb[0].mxu0
    %v3116 = vadd.f32 %v2762, %v3115
    %v3117 = vpop.f32.mrb[0].mxu0
    %3118 = vmatprep.mubr.f32.mxu0 %v2711
    %3119 = vmatmul.mubr.f32.gmra.mrb[0].mxu0 %v2710
    %v3120 = vpop.f32.mrb[0].mxu0
    %v3121 = vadd.f32 %v2762, %v3120
    %v3122 = vpop.f32.mrb[0].mxu0
    %3123 = vmatprep.mubr.f32.mxu0 %v2713
    %3124 = vmatmul.mubr.f32.gmra.mrb[0].mxu0 %v2712
    %v3125 = vpop.f32.mrb[0].mxu0
    %v3126 = vadd.f32 %v2762, %v3125
    %v3127 = vpop.f32.mrb[0].mxu0
    %3128 = vmatprep.mubr.f32.mxu0 %v2715
    %3129 = vmatmul.mubr.f32.gmra.mrb[0].mxu0 %v2714
    %v3130 = vpop.f32.mrb[0].mxu0
    %v3131 = vadd.f32 %v2762, %v3130
    %v3132 = vpop.f32.mrb[0].mxu0
    %3133 = vmatprep.mubr.f32.mxu0 %v2717
    %3134 = vmatmul.mubr.f32.gmra.mrb[0].mxu0 %v2716
    %v3135 = vpop.f32.mrb[0].mxu0
    %v3136 = vadd.f32 %v2762, %v3135
    %v3137 = vpop.f32.mrb[0].mxu0
    %3138 = vmatprep.mubr.f32.mxu0 %v2719
    %3139 = vmatmul.mubr.f32.gmra.mrb[0].mxu0 %v2718
    %v3140 = vpop.f32.mrb[0].mxu0
    %v3141 = vadd.f32 %v2762, %v3140
    %v3142 = vpop.f32.mrb[0].mxu0
    %3143 = vmatprep.mubr.f32.mxu0 %v2721
    %3144 = vmatmul.mubr.f32.gmra.mrb[0].mxu0 %v2720
    %v3145 = vpop.f32.mrb[0].mxu0
    %v3146 = vadd.f32 %v2762, %v3145
    %v3147 = vpop.f32.mrb[0].mxu0
    %3148 = vdwg.mxu0
    %v3149 = vld [vmem:[%s9] sm:$0xff]
    %v3150 = vld [vmem:[%s9 + $0x8] sm:$0xff]
    %v3151 = vld [vmem:[%s9 + $0x10] sm:$0xff]
    %v3152 = vld [vmem:[%s9 + $0x18] sm:$0xff]
    %v3153 = vld [vmem:[%s9 + $0x20] sm:$0xff]
    %v3154 = vld [vmem:[%s9 + $0x28] sm:$0xff]
    %v3155 = vld [vmem:[%s9 + $0x30] sm:$0xff]
    %v3156 = vld [vmem:[%s9 + $0x38] sm:$0xff]
    %v3157 = vld [vmem:[%s9 + $0x40] sm:$0xff]
    %v3158 = vld [vmem:[%s9 + $0x48] sm:$0xff]
    %v3159 = vld [vmem:[%s9 + $0x50] sm:$0xff]
    %v3160 = vld [vmem:[%s9 + $0x58] sm:$0xff]
    %v3161 = vld [vmem:[%s9 + $0x60] sm:$0xff]
    %v3162 = vld [vmem:[%s9 + $0x68] sm:$0xff]
    %v3163 = vld [vmem:[%s9 + $0x70] sm:$0xff]
    %v3164 = vld [vmem:[%s9 + $0x78] sm:$0xff]
    %v3165 = vld [vmem:[%s9 + $0x80] sm:$0xff]
    %v3166 = vld [vmem:[%s9 + $0x88] sm:$0xff]
    %v3167 = vld [vmem:[%s9 + $0x90] sm:$0xff]
    %v3168 = vld [vmem:[%s9 + $0x98] sm:$0xff]
    %v3169 = vld [vmem:[%s9 + $0xa0] sm:$0xff]
    %v3170 = vld [vmem:[%s9 + $0xa8] sm:$0xff]
    %v3171 = vld [vmem:[%s9 + $0xb0] sm:$0xff]
    %v3172 = vld [vmem:[%s9 + $0xb8] sm:$0xff]
    %v3173 = vld [vmem:[%s9 + $0xc0] sm:$0xff]
    %v3174 = vld [vmem:[%s9 + $0xc8] sm:$0xff]
    %v3175 = vld [vmem:[%s9 + $0xd0] sm:$0xff]
    %v3176 = vld [vmem:[%s9 + $0xd8] sm:$0xff]
    %v3177 = vld [vmem:[%s9 + $0xe0] sm:$0xff]
    %v3178 = vld [vmem:[%s9 + $0xe8] sm:$0xff]
    %v3179 = vld [vmem:[%s9 + $0xf0] sm:$0xff]
    %v3180 = vld [vmem:[%s9 + $0xf8] sm:$0xff]
    %v3181 = vld [vmem:[%s9 + $0x100] sm:$0xff]
    %v3182 = vld [vmem:[%s9 + $0x108] sm:$0xff]
    %v3183 = vld [vmem:[%s9 + $0x110] sm:$0xff]
    %v3184 = vld [vmem:[%s9 + $0x118] sm:$0xff]
    %v3185 = vld [vmem:[%s9 + $0x120] sm:$0xff]
    %v3186 = vld [vmem:[%s9 + $0x128] sm:$0xff]
    %v3187 = vld [vmem:[%s9 + $0x130] sm:$0xff]
    %v3188 = vld [vmem:[%s9 + $0x138] sm:$0xff]
    %v3189 = vld [vmem:[%s9 + $0x140] sm:$0xff]
    %v3190 = vld [vmem:[%s9 + $0x148] sm:$0xff]
    %v3191 = vld [vmem:[%s9 + $0x150] sm:$0xff]
    %v3192 = vld [vmem:[%s9 + $0x158] sm:$0xff]
    %v3193 = vld [vmem:[%s9 + $0x160] sm:$0xff]
    %v3194 = vld [vmem:[%s9 + $0x168] sm:$0xff]
    %v3195 = vld [vmem:[%s9 + $0x170] sm:$0xff]
    %v3196 = vld [vmem:[%s9 + $0x178] sm:$0xff]
    %v3197 = vld [vmem:[%s9 + $0x180] sm:$0xff]
    %v3198 = vld [vmem:[%s9 + $0x188] sm:$0xff]
    %v3199 = vld [vmem:[%s9 + $0x190] sm:$0xff]
    %v3200 = vld [vmem:[%s9 + $0x198] sm:$0xff]
    %v3201 = vld [vmem:[%s9 + $0x1a0] sm:$0xff]
    %v3202 = vld [vmem:[%s9 + $0x1a8] sm:$0xff]
    %v3203 = vld [vmem:[%s9 + $0x1b0] sm:$0xff]
    %v3204 = vld [vmem:[%s9 + $0x1b8] sm:$0xff]
    %v3205 = vld [vmem:[%s9 + $0x1c0] sm:$0xff]
    %v3206 = vld [vmem:[%s9 + $0x1c8] sm:$0xff]
    %v3207 = vld [vmem:[%s9 + $0x1d0] sm:$0xff]
    %v3208 = vld [vmem:[%s9 + $0x1d8] sm:$0xff]
    %v3209 = vld [vmem:[%s9 + $0x1e0] sm:$0xff]
    %v3210 = vld [vmem:[%s9 + $0x1e8] sm:$0xff]
    %v3211 = vld [vmem:[%s9 + $0x1f0] sm:$0xff]
    %v3212 = vld [vmem:[%s9 + $0x1f8] sm:$0xff]
    %v3213 = vand.u32 2147483647, %v2831
    %v3214 = vand.u32 2147483647, %v2836
    %v3215 = vand.u32 2147483647, %v2841
    %v3216 = vand.u32 2147483647, %v2846
    %v3217 = vand.u32 2147483647, %v2851
    %v3218 = vand.u32 2147483647, %v2856
    %v3219 = vand.u32 2147483647, %v2861
    %v3220 = vand.u32 2147483647, %v2866
    %v3221 = vand.u32 2147483647, %v2871
    %v3222 = vand.u32 2147483647, %v2876
    %v3223 = vand.u32 2147483647, %v2881
    %v3224 = vand.u32 2147483647, %v2886
    %v3225 = vand.u32 2147483647, %v2891
    %v3226 = vand.u32 2147483647, %v2896
    %v3227 = vand.u32 2147483647, %v2901
    %v3228 = vand.u32 2147483647, %v2906
    %v3229 = vand.u32 2147483647, %v2911
    %v3230 = vand.u32 2147483647, %v2916
    %v3231 = vand.u32 2147483647, %v2921
    %v3232 = vand.u32 2147483647, %v2926
    %v3233 = vand.u32 2147483647, %v2931
    %v3234 = vand.u32 2147483647, %v2936
    %v3235 = vand.u32 2147483647, %v2941
    %v3236 = vand.u32 2147483647, %v2946
    %v3237 = vand.u32 2147483647, %v2951
    %v3238 = vand.u32 2147483647, %v2956
    %v3239 = vand.u32 2147483647, %v2961
    %v3240 = vand.u32 2147483647, %v2966
    %v3241 = vand.u32 2147483647, %v2971
    %v3242 = vand.u32 2147483647, %v2976
    %v3243 = vand.u32 2147483647, %v2981
    %v3244 = vand.u32 2147483647, %v2986
    %v3245 = vand.u32 2147483647, %v2991
    %v3246 = vand.u32 2147483647, %v2996
    %v3247 = vand.u32 2147483647, %v3001
    %v3248 = vand.u32 2147483647, %v3006
    %v3249 = vand.u32 2147483647, %v3011
    %v3250 = vand.u32 2147483647, %v3016
    %v3251 = vand.u32 2147483647, %v3021
    %v3252 = vand.u32 2147483647, %v3026
    %v3253 = vand.u32 2147483647, %v3031
    %v3254 = vand.u32 2147483647, %v3036
    %v3255 = vand.u32 2147483647, %v3041
    %v3256 = vand.u32 2147483647, %v3046
    %v3257 = vand.u32 2147483647, %v3051
    %v3258 = vand.u32 2147483647, %v3056
    %v3259 = vand.u32 2147483647, %v3061
    %v3260 = vand.u32 2147483647, %v3066
    %v3261 = vand.u32 2147483647, %v3071
    %v3262 = vand.u32 2147483647, %v3076
    %v3263 = vand.u32 2147483647, %v3081
    %v3264 = vand.u32 2147483647, %v3086
    %v3265 = vand.u32 2147483647, %v3091
    %v3266 = vand.u32 2147483647, %v3096
    %v3267 = vand.u32 2147483647, %v3101
    %v3268 = vand.u32 2147483647, %v3106
    %v3269 = vand.u32 2147483647, %v3111
    %v3270 = vand.u32 2147483647, %v3116
    %v3271 = vand.u32 2147483647, %v3121
    %v3272 = vand.u32 2147483647, %v3126
    %v3273 = vand.u32 2147483647, %v3131
    %v3274 = vand.u32 2147483647, %v3136
    %v3275 = vand.u32 2147483647, %v3141
    %v3276 = vand.u32 2147483647, %v3146
    %v3277 = vsub.f32 0.0, %v3213
    %v3278 = vsub.f32 0.0, %v3214
    %v3279 = vsub.f32 0.0, %v3215
    %v3280 = vsub.f32 0.0, %v3216
    %v3281 = vsub.f32 0.0, %v3217
    %v3282 = vsub.f32 0.0, %v3218
    %v3283 = vsub.f32 0.0, %v3219
    %v3284 = vsub.f32 0.0, %v3220
    %v3285 = vsub.f32 0.0, %v3221
    %v3286 = vsub.f32 0.0, %v3222
    %v3287 = vsub.f32 0.0, %v3223
    %v3288 = vsub.f32 0.0, %v3224
    %v3289 = vsub.f32 0.0, %v3225
    %v3290 = vsub.f32 0.0, %v3226
    %v3291 = vsub.f32 0.0, %v3227
    %v3292 = vsub.f32 0.0, %v3228
    %v3293 = vsub.f32 0.0, %v3229
    %v3294 = vsub.f32 0.0, %v3230
    %v3295 = vsub.f32 0.0, %v3231
    %v3296 = vsub.f32 0.0, %v3232
    %v3297 = vsub.f32 0.0, %v3233
    %v3298 = vsub.f32 0.0, %v3234
    %v3299 = vsub.f32 0.0, %v3235
    %v3300 = vsub.f32 0.0, %v3236
    %v3301 = vsub.f32 0.0, %v3237
    %v3302 = vsub.f32 0.0, %v3238
    %v3303 = vsub.f32 0.0, %v3239
    %v3304 = vsub.f32 0.0, %v3240
    %v3305 = vsub.f32 0.0, %v3241
    %v3306 = vsub.f32 0.0, %v3242
    %v3307 = vsub.f32 0.0, %v3243
    %v3308 = vsub.f32 0.0, %v3244
    %v3309 = vsub.f32 0.0, %v3245
    %v3310 = vsub.f32 0.0, %v3246
    %v3311 = vsub.f32 0.0, %v3247
    %v3312 = vsub.f32 0.0, %v3248
    %v3313 = vsub.f32 0.0, %v3249
    %v3314 = vsub.f32 0.0, %v3250
    %v3315 = vsub.f32 0.0, %v3251
    %v3316 = vsub.f32 0.0, %v3252
    %v3317 = vsub.f32 0.0, %v3253
    %v3318 = vsub.f32 0.0, %v3254
    %v3319 = vsub.f32 0.0, %v3255
    %v3320 = vsub.f32 0.0, %v3256
    %v3321 = vsub.f32 0.0, %v3257
    %v3322 = vsub.f32 0.0, %v3258
    %v3323 = vsub.f32 0.0, %v3259
    %v3324 = vsub.f32 0.0, %v3260
    %v3325 = vsub.f32 0.0, %v3261
    %v3326 = vsub.f32 0.0, %v3262
    %v3327 = vsub.f32 0.0, %v3263
    %v3328 = vsub.f32 0.0, %v3264
    %v3329 = vsub.f32 0.0, %v3265
    %v3330 = vsub.f32 0.0, %v3266
    %v3331 = vsub.f32 0.0, %v3267
    %v3332 = vsub.f32 0.0, %v3268
    %v3333 = vsub.f32 0.0, %v3269
    %v3334 = vsub.f32 0.0, %v3270
    %v3335 = vsub.f32 0.0, %v3271
    %v3336 = vsub.f32 0.0, %v3272
    %v3337 = vsub.f32 0.0, %v3273
    %v3338 = vsub.f32 0.0, %v3274
    %v3339 = vsub.f32 0.0, %v3275
    %v3340 = vsub.f32 0.0, %v3276
    %v3341 = vmul.f32 %v3277, 1.442695
    %v3342 = vpow.pop %v3341
    %v3343 = vmul.f32 %v3278, 1.442695
    %v3344 = vpow.pop %v3343
    %v3345 = vmul.f32 %v3279, 1.442695
    %v3346 = vpow.pop %v3345
    %v3347 = vmul.f32 %v3280, 1.442695
    %v3348 = vpow.pop %v3347
    %v3349 = vmul.f32 %v3281, 1.442695
    %v3350 = vpow.pop %v3349
    %v3351 = vmul.f32 %v3282, 1.442695
    %v3352 = vpow.pop %v3351
    %v3353 = vmul.f32 %v3283, 1.442695
    %v3354 = vpow.pop %v3353
    %v3355 = vmul.f32 %v3284, 1.442695
    %v3356 = vpow.pop %v3355
    %v3357 = vmul.f32 %v3285, 1.442695
    %v3358 = vpow.pop %v3357
    %v3359 = vmul.f32 %v3286, 1.442695
    %v3360 = vpow.pop %v3359
    %v3361 = vmul.f32 %v3287, 1.442695
    %v3362 = vpow.pop %v3361
    %v3363 = vmul.f32 %v3288, 1.442695
    %v3364 = vpow.pop %v3363
    %v3365 = vmul.f32 %v3289, 1.442695
    %v3366 = vpow.pop %v3365
    %v3367 = vmul.f32 %v3290, 1.442695
    %v3368 = vpow.pop %v3367
    %v3369 = vmul.f32 %v3291, 1.442695
    %v3370 = vpow.pop %v3369
    %v3371 = vmul.f32 %v3292, 1.442695
    %v3372 = vpow.pop %v3371
    %v3373 = vmul.f32 %v3293, 1.442695
    %v3374 = vpow.pop %v3373
    %v3375 = vmul.f32 %v3294, 1.442695
    %v3376 = vpow.pop %v3375
    %v3377 = vmul.f32 %v3295, 1.442695
    %v3378 = vpow.pop %v3377
    %v3379 = vmul.f32 %v3296, 1.442695
    %v3380 = vpow.pop %v3379
    %v3381 = vmul.f32 %v3297, 1.442695
    %v3382 = vpow.pop %v3381
    %v3383 = vmul.f32 %v3298, 1.442695
    %v3384 = vpow.pop %v3383
    %v3385 = vmul.f32 %v3299, 1.442695
    %v3386 = vpow.pop %v3385
    %v3387 = vmul.f32 %v3300, 1.442695
    %v3388 = vpow.pop %v3387
    %v3389 = vmul.f32 %v3301, 1.442695
    %v3390 = vpow.pop %v3389
    %v3391 = vmul.f32 %v3302, 1.442695
    %v3392 = vpow.pop %v3391
    %v3393 = vmul.f32 %v3303, 1.442695
    %v3394 = vpow.pop %v3393
    %v3395 = vmul.f32 %v3304, 1.442695
    %v3396 = vpow.pop %v3395
    %v3397 = vmul.f32 %v3305, 1.442695
    %v3398 = vpow.pop %v3397
    %v3399 = vmul.f32 %v3306, 1.442695
    %v3400 = vpow.pop %v3399
    %v3401 = vmul.f32 %v3307, 1.442695
    %v3402 = vpow.pop %v3401
    %v3403 = vmul.f32 %v3308, 1.442695
    %v3404 = vpow.pop %v3403
    %v3405 = vmul.f32 %v3309, 1.442695
    %v3406 = vpow.pop %v3405
    %v3407 = vmul.f32 %v3310, 1.442695
    %v3408 = vpow.pop %v3407
    %v3409 = vmul.f32 %v3311, 1.442695
    %v3410 = vpow.pop %v3409
    %v3411 = vmul.f32 %v3312, 1.442695
    %v3412 = vpow.pop %v3411
    %v3413 = vmul.f32 %v3313, 1.442695
    %v3414 = vpow.pop %v3413
    %v3415 = vmul.f32 %v3314, 1.442695
    %v3416 = vpow.pop %v3415
    %v3417 = vmul.f32 %v3315, 1.442695
    %v3418 = vpow.pop %v3417
    %v3419 = vmul.f32 %v3316, 1.442695
    %v3420 = vpow.pop %v3419
    %v3421 = vmul.f32 %v3317, 1.442695
    %v3422 = vpow.pop %v3421
    %v3423 = vmul.f32 %v3318, 1.442695
    %v3424 = vpow.pop %v3423
    %v3425 = vmul.f32 %v3319, 1.442695
    %v3426 = vpow.pop %v3425
    %v3427 = vmul.f32 %v3320, 1.442695
    %v3428 = vpow.pop %v3427
    %v3429 = vmul.f32 %v3321, 1.442695
    %v3430 = vpow.pop %v3429
    %v3431 = vmul.f32 %v3322, 1.442695
    %v3432 = vpow.pop %v3431
    %v3433 = vmul.f32 %v3323, 1.442695
    %v3434 = vpow.pop %v3433
    %v3435 = vmul.f32 %v3324, 1.442695
    %v3436 = vpow.pop %v3435
    %v3437 = vmul.f32 %v3325, 1.442695
    %v3438 = vpow.pop %v3437
    %v3439 = vmul.f32 %v3326, 1.442695
    %v3440 = vpow.pop %v3439
    %v3441 = vmul.f32 %v3327, 1.442695
    %v3442 = vpow.pop %v3441
    %v3443 = vmul.f32 %v3328, 1.442695
    %v3444 = vpow.pop %v3443
    %v3445 = vmul.f32 %v3329, 1.442695
    %v3446 = vpow.pop %v3445
    %v3447 = vmul.f32 %v3330, 1.442695
    %v3448 = vpow.pop %v3447
    %v3449 = vmul.f32 %v3331, 1.442695
    %v3450 = vpow.pop %v3449
    %v3451 = vmul.f32 %v3332, 1.442695
    %v3452 = vpow.pop %v3451
    %v3453 = vmul.f32 %v3333, 1.442695
    %v3454 = vpow.pop %v3453
    %v3455 = vmul.f32 %v3334, 1.442695
    %v3456 = vpow.pop %v3455
    %v3457 = vmul.f32 %v3335, 1.442695
    %v3458 = vpow.pop %v3457
    %v3459 = vmul.f32 %v3336, 1.442695
    %v3460 = vpow.pop %v3459
    %v3461 = vmul.f32 %v3337, 1.442695
    %v3462 = vpow.pop %v3461
    %v3463 = vmul.f32 %v3338, 1.442695
    %v3464 = vpow.pop %v3463
    %v3465 = vmul.f32 %v3339, 1.442695
    %v3466 = vpow.pop %v3465
    %v3467 = vmul.f32 %v3340, 1.442695
    %v3468 = vpow.pop %v3467
    %vm3469 = vcmp.gt.f32.partialorder %v3213, 15.0
    %vm3470 = vcmp.gt.f32.partialorder %v3214, 15.0
    %vm3471 = vcmp.gt.f32.partialorder %v3215, 15.0
    %vm3472 = vcmp.gt.f32.partialorder %v3216, 15.0
    %vm3473 = vcmp.gt.f32.partialorder %v3217, 15.0
    %vm3474 = vcmp.gt.f32.partialorder %v3218, 15.0
    %vm3475 = vcmp.gt.f32.partialorder %v3219, 15.0
    %vm3476 = vcmp.gt.f32.partialorder %v3220, 15.0
    %vm3477 = vcmp.gt.f32.partialorder %v3221, 15.0
    %vm3478 = vcmp.gt.f32.partialorder %v3222, 15.0
    %vm3479 = vcmp.gt.f32.partialorder %v3223, 15.0
    %vm3480 = vcmp.gt.f32.partialorder %v3224, 15.0
    %vm3481 = vcmp.gt.f32.partialorder %v3225, 15.0
    %vm3482 = vcmp.gt.f32.partialorder %v3226, 15.0
    %vm3483 = vcmp.gt.f32.partialorder %v3227, 15.0
    %vm3484 = vcmp.gt.f32.partialorder %v3228, 15.0
    %vm3485 = vcmp.gt.f32.partialorder %v3229, 15.0
    %vm3486 = vcmp.gt.f32.partialorder %v3230, 15.0
    %vm3487 = vcmp.gt.f32.partialorder %v3231, 15.0
    %vm3488 = vcmp.gt.f32.partialorder %v3232, 15.0
    %vm3489 = vcmp.gt.f32.partialorder %v3233, 15.0
    %vm3490 = vcmp.gt.f32.partialorder %v3234, 15.0
    %vm3491 = vcmp.gt.f32.partialorder %v3235, 15.0
    %vm3492 = vcmp.gt.f32.partialorder %v3236, 15.0
    %vm3493 = vcmp.gt.f32.partialorder %v3237, 15.0
    %vm3494 = vcmp.gt.f32.partialorder %v3238, 15.0
    %vm3495 = vcmp.gt.f32.partialorder %v3239, 15.0
    %vm3496 = vcmp.gt.f32.partialorder %v3240, 15.0
    %vm3497 = vcmp.gt.f32.partialorder %v3241, 15.0
    %vm3498 = vcmp.gt.f32.partialorder %v3242, 15.0
    %vm3499 = vcmp.gt.f32.partialorder %v3243, 15.0
    %vm3500 = vcmp.gt.f32.partialorder %v3244, 15.0
    %vm3501 = vcmp.gt.f32.partialorder %v3245, 15.0
    %vm3502 = vcmp.gt.f32.partialorder %v3246, 15.0
    %vm3503 = vcmp.gt.f32.partialorder %v3247, 15.0
    %vm3504 = vcmp.gt.f32.partialorder %v3248, 15.0
    %vm3505 = vcmp.gt.f32.partialorder %v3249, 15.0
    %vm3506 = vcmp.gt.f32.partialorder %v3250, 15.0
    %vm3507 = vcmp.gt.f32.partialorder %v3251, 15.0
    %vm3508 = vcmp.gt.f32.partialorder %v3252, 15.0
    %vm3509 = vcmp.gt.f32.partialorder %v3253, 15.0
    %vm3510 = vcmp.gt.f32.partialorder %v3254, 15.0
    %vm3511 = vcmp.gt.f32.partialorder %v3255, 15.0
    %vm3512 = vcmp.gt.f32.partialorder %v3256, 15.0
    %vm3513 = vcmp.gt.f32.partialorder %v3257, 15.0
    %vm3514 = vcmp.gt.f32.partialorder %v3258, 15.0
    %vm3515 = vcmp.gt.f32.partialorder %v3259, 15.0
    %vm3516 = vcmp.gt.f32.partialorder %v3260, 15.0
    %vm3517 = vcmp.gt.f32.partialorder %v3261, 15.0
    %vm3518 = vcmp.gt.f32.partialorder %v3262, 15.0
    %vm3519 = vcmp.gt.f32.partialorder %v3263, 15.0
    %vm3520 = vcmp.gt.f32.partialorder %v3264, 15.0
    %vm3521 = vcmp.gt.f32.partialorder %v3265, 15.0
    %vm3522 = vcmp.gt.f32.partialorder %v3266, 15.0
    %vm3523 = vcmp.gt.f32.partialorder %v3267, 15.0
    %vm3524 = vcmp.gt.f32.partialorder %v3268, 15.0
    %vm3525 = vcmp.gt.f32.partialorder %v3269, 15.0
    %vm3526 = vcmp.gt.f32.partialorder %v3270, 15.0
    %vm3527 = vcmp.gt.f32.partialorder %v3271, 15.0
    %vm3528 = vcmp.gt.f32.partialorder %v3272, 15.0
    %vm3529 = vcmp.gt.f32.partialorder %v3273, 15.0
    %vm3530 = vcmp.gt.f32.partialorder %v3274, 15.0
    %vm3531 = vcmp.gt.f32.partialorder %v3275, 15.0
    %vm3532 = vcmp.gt.f32.partialorder %v3276, 15.0
    %v3533 = vadd.f32 %v3342, 1.0
    %v3534 = vadd.f32 %v3344, 1.0
    %v3535 = vadd.f32 %v3346, 1.0
    %v3536 = vadd.f32 %v3348, 1.0
    %v3537 = vadd.f32 %v3350, 1.0
    %v3538 = vadd.f32 %v3352, 1.0
    %v3539 = vadd.f32 %v3354, 1.0
    %v3540 = vadd.f32 %v3356, 1.0
    %v3541 = vadd.f32 %v3358, 1.0
    %v3542 = vadd.f32 %v3360, 1.0
    %v3543 = vadd.f32 %v3362, 1.0
    %v3544 = vadd.f32 %v3364, 1.0
    %v3545 = vadd.f32 %v3366, 1.0
    %v3546 = vadd.f32 %v3368, 1.0
    %v3547 = vadd.f32 %v3370, 1.0
    %v3548 = vadd.f32 %v3372, 1.0
    %v3549 = vadd.f32 %v3374, 1.0
    %v3550 = vadd.f32 %v3376, 1.0
    %v3551 = vadd.f32 %v3378, 1.0
    %v3552 = vadd.f32 %v3380, 1.0
    %v3553 = vadd.f32 %v3382, 1.0
    %v3554 = vadd.f32 %v3384, 1.0
    %v3555 = vadd.f32 %v3386, 1.0
    %v3556 = vadd.f32 %v3388, 1.0
    %v3557 = vadd.f32 %v3390, 1.0
    %v3558 = vadd.f32 %v3392, 1.0
    %v3559 = vadd.f32 %v3394, 1.0
    %v3560 = vadd.f32 %v3396, 1.0
    %v3561 = vadd.f32 %v3398, 1.0
    %v3562 = vadd.f32 %v3400, 1.0
    %v3563 = vadd.f32 %v3402, 1.0
    %v3564 = vadd.f32 %v3404, 1.0
    %v3565 = vadd.f32 %v3406, 1.0
    %v3566 = vadd.f32 %v3408, 1.0
    %v3567 = vadd.f32 %v3410, 1.0
    %v3568 = vadd.f32 %v3412, 1.0
    %v3569 = vadd.f32 %v3414, 1.0
    %v3570 = vadd.f32 %v3416, 1.0
    %v3571 = vadd.f32 %v3418, 1.0
    %v3572 = vadd.f32 %v3420, 1.0
    %v3573 = vadd.f32 %v3422, 1.0
    %v3574 = vadd.f32 %v3424, 1.0
    %v3575 = vadd.f32 %v3426, 1.0
    %v3576 = vadd.f32 %v3428, 1.0
    %v3577 = vadd.f32 %v3430, 1.0
    %v3578 = vadd.f32 %v3432, 1.0
    %v3579 = vadd.f32 %v3434, 1.0
    %v3580 = vadd.f32 %v3436, 1.0
    %v3581 = vadd.f32 %v3438, 1.0
    %v3582 = vadd.f32 %v3440, 1.0
    %v3583 = vadd.f32 %v3442, 1.0
    %v3584 = vadd.f32 %v3444, 1.0
    %v3585 = vadd.f32 %v3446, 1.0
    %v3586 = vadd.f32 %v3448, 1.0
    %v3587 = vadd.f32 %v3450, 1.0
    %v3588 = vadd.f32 %v3452, 1.0
    %v3589 = vadd.f32 %v3454, 1.0
    %v3590 = vadd.f32 %v3456, 1.0
    %v3591 = vadd.f32 %v3458, 1.0
    %v3592 = vadd.f32 %v3460, 1.0
    %v3593 = vadd.f32 %v3462, 1.0
    %v3594 = vadd.f32 %v3464, 1.0
    %v3595 = vadd.f32 %v3466, 1.0
    %v3596 = vadd.f32 %v3468, 1.0
    %v3597 = vlog2.pop %v3533
    %v3598 = vmul.f32 %v3597, 0.6931472
    %v3599 = vlog2.pop %v3534
    %v3600 = vmul.f32 %v3599, 0.6931472
    %v3601 = vlog2.pop %v3535
    %v3602 = vmul.f32 %v3601, 0.6931472
    %v3603 = vlog2.pop %v3536
    %v3604 = vmul.f32 %v3603, 0.6931472
    %v3605 = vlog2.pop %v3537
    %v3606 = vmul.f32 %v3605, 0.6931472
    %v3607 = vlog2.pop %v3538
    %v3608 = vmul.f32 %v3607, 0.6931472
    %v3609 = vlog2.pop %v3539
    %v3610 = vmul.f32 %v3609, 0.6931472
    %v3611 = vlog2.pop %v3540
    %v3612 = vmul.f32 %v3611, 0.6931472
    %v3613 = vlog2.pop %v3541
    %v3614 = vmul.f32 %v3613, 0.6931472
    %v3615 = vlog2.pop %v3542
    %v3616 = vmul.f32 %v3615, 0.6931472
    %v3617 = vlog2.pop %v3543
    %v3618 = vmul.f32 %v3617, 0.6931472
    %v3619 = vlog2.pop %v3544
    %v3620 = vmul.f32 %v3619, 0.6931472
    %v3621 = vlog2.pop %v3545
    %v3622 = vmul.f32 %v3621, 0.6931472
    %v3623 = vlog2.pop %v3546
    %v3624 = vmul.f32 %v3623, 0.6931472
    %v3625 = vlog2.pop %v3547
    %v3626 = vmul.f32 %v3625, 0.6931472
    %v3627 = vlog2.pop %v3548
    %v3628 = vmul.f32 %v3627, 0.6931472
    %v3629 = vlog2.pop %v3549
    %v3630 = vmul.f32 %v3629, 0.6931472
    %v3631 = vlog2.pop %v3550
    %v3632 = vmul.f32 %v3631, 0.6931472
    %v3633 = vlog2.pop %v3551
    %v3634 = vmul.f32 %v3633, 0.6931472
    %v3635 = vlog2.pop %v3552
    %v3636 = vmul.f32 %v3635, 0.6931472
    %v3637 = vlog2.pop %v3553
    %v3638 = vmul.f32 %v3637, 0.6931472
    %v3639 = vlog2.pop %v3554
    %v3640 = vmul.f32 %v3639, 0.6931472
    %v3641 = vlog2.pop %v3555
    %v3642 = vmul.f32 %v3641, 0.6931472
    %v3643 = vlog2.pop %v3556
    %v3644 = vmul.f32 %v3643, 0.6931472
    %v3645 = vlog2.pop %v3557
    %v3646 = vmul.f32 %v3645, 0.6931472
    %v3647 = vlog2.pop %v3558
    %v3648 = vmul.f32 %v3647, 0.6931472
    %v3649 = vlog2.pop %v3559
    %v3650 = vmul.f32 %v3649, 0.6931472
    %v3651 = vlog2.pop %v3560
    %v3652 = vmul.f32 %v3651, 0.6931472
    %v3653 = vlog2.pop %v3561
    %v3654 = vmul.f32 %v3653, 0.6931472
    %v3655 = vlog2.pop %v3562
    %v3656 = vmul.f32 %v3655, 0.6931472
    %v3657 = vlog2.pop %v3563
    %v3658 = vmul.f32 %v3657, 0.6931472
    %v3659 = vlog2.pop %v3564
    %v3660 = vmul.f32 %v3659, 0.6931472
    %v3661 = vlog2.pop %v3565
    %v3662 = vmul.f32 %v3661, 0.6931472
    %v3663 = vlog2.pop %v3566
    %v3664 = vmul.f32 %v3663, 0.6931472
    %v3665 = vlog2.pop %v3567
    %v3666 = vmul.f32 %v3665, 0.6931472
    %v3667 = vlog2.pop %v3568
    %v3668 = vmul.f32 %v3667, 0.6931472
    %v3669 = vlog2.pop %v3569
    %v3670 = vmul.f32 %v3669, 0.6931472
    %v3671 = vlog2.pop %v3570
    %v3672 = vmul.f32 %v3671, 0.6931472
    %v3673 = vlog2.pop %v3571
    %v3674 = vmul.f32 %v3673, 0.6931472
    %v3675 = vlog2.pop %v3572
    %v3676 = vmul.f32 %v3675, 0.6931472
    %v3677 = vlog2.pop %v3573
    %v3678 = vmul.f32 %v3677, 0.6931472
    %v3679 = vlog2.pop %v3574
    %v3680 = vmul.f32 %v3679, 0.6931472
    %v3681 = vlog2.pop %v3575
    %v3682 = vmul.f32 %v3681, 0.6931472
    %v3683 = vlog2.pop %v3576
    %v3684 = vmul.f32 %v3683, 0.6931472
    %v3685 = vlog2.pop %v3577
    %v3686 = vmul.f32 %v3685, 0.6931472
    %v3687 = vlog2.pop %v3578
    %v3688 = vmul.f32 %v3687, 0.6931472
    %v3689 = vlog2.pop %v3579
    %v3690 = vmul.f32 %v3689, 0.6931472
    %v3691 = vlog2.pop %v3580
    %v3692 = vmul.f32 %v3691, 0.6931472
    %v3693 = vlog2.pop %v3581
    %v3694 = vmul.f32 %v3693, 0.6931472
    %v3695 = vlog2.pop %v3582
    %v3696 = vmul.f32 %v3695, 0.6931472
    %v3697 = vlog2.pop %v3583
    %v3698 = vmul.f32 %v3697, 0.6931472
    %v3699 = vlog2.pop %v3584
    %v3700 = vmul.f32 %v3699, 0.6931472
    %v3701 = vlog2.pop %v3585
    %v3702 = vmul.f32 %v3701, 0.6931472
    %v3703 = vlog2.pop %v3586
    %v3704 = vmul.f32 %v3703, 0.6931472
    %v3705 = vlog2.pop %v3587
    %v3706 = vmul.f32 %v3705, 0.6931472
    %v3707 = vlog2.pop %v3588
    %v3708 = vmul.f32 %v3707, 0.6931472
    %v3709 = vlog2.pop %v3589
    %v3710 = vmul.f32 %v3709, 0.6931472
    %v3711 = vlog2.pop %v3590
    %v3712 = vmul.f32 %v3711, 0.6931472
    %v3713 = vlog2.pop %v3591
    %v3714 = vmul.f32 %v3713, 0.6931472
    %v3715 = vlog2.pop %v3592
    %v3716 = vmul.f32 %v3715, 0.6931472
    %v3717 = vlog2.pop %v3593
    %v3718 = vmul.f32 %v3717, 0.6931472
    %v3719 = vlog2.pop %v3594
    %v3720 = vmul.f32 %v3719, 0.6931472
    %v3721 = vlog2.pop %v3595
    %v3722 = vmul.f32 %v3721, 0.6931472
    %v3723 = vlog2.pop %v3596
    %v3724 = vmul.f32 %v3723, 0.6931472
    %v3725 = vsel %vm3469, %v3342, %v3598
    %v3726 = vsel %vm3470, %v3344, %v3600
    %v3727 = vsel %vm3471, %v3346, %v3602
    %v3728 = vsel %vm3472, %v3348, %v3604
    %v3729 = vsel %vm3473, %v3350, %v3606
    %v3730 = vsel %vm3474, %v3352, %v3608
    %v3731 = vsel %vm3475, %v3354, %v3610
    %v3732 = vsel %vm3476, %v3356, %v3612
    %v3733 = vsel %vm3477, %v3358, %v3614
    %v3734 = vsel %vm3478, %v3360, %v3616
    %v3735 = vsel %vm3479, %v3362, %v3618
    %v3736 = vsel %vm3480, %v3364, %v3620
    %v3737 = vsel %vm3481, %v3366, %v3622
    %v3738 = vsel %vm3482, %v3368, %v3624
    %v3739 = vsel %vm3483, %v3370, %v3626
    %v3740 = vsel %vm3484, %v3372, %v3628
    %v3741 = vsel %vm3485, %v3374, %v3630
    %v3742 = vsel %vm3486, %v3376, %v3632
    %v3743 = vsel %vm3487, %v3378, %v3634
    %v3744 = vsel %vm3488, %v3380, %v3636
    %v3745 = vsel %vm3489, %v3382, %v3638
    %v3746 = vsel %vm3490, %v3384, %v3640
    %v3747 = vsel %vm3491, %v3386, %v3642
    %v3748 = vsel %vm3492, %v3388, %v3644
    %v3749 = vsel %vm3493, %v3390, %v3646
    %v3750 = vsel %vm3494, %v3392, %v3648
    %v3751 = vsel %vm3495, %v3394, %v3650
    %v3752 = vsel %vm3496, %v3396, %v3652
    %v3753 = vsel %vm3497, %v3398, %v3654
    %v3754 = vsel %vm3498, %v3400, %v3656
    %v3755 = vsel %vm3499, %v3402, %v3658
    %v3756 = vsel %vm3500, %v3404, %v3660
    %v3757 = vsel %vm3501, %v3406, %v3662
    %v3758 = vsel %vm3502, %v3408, %v3664
    %v3759 = vsel %vm3503, %v3410, %v3666
    %v3760 = vsel %vm3504, %v3412, %v3668
    %v3761 = vsel %vm3505, %v3414, %v3670
    %v3762 = vsel %vm3506, %v3416, %v3672
    %v3763 = vsel %vm3507, %v3418, %v3674
    %v3764 = vsel %vm3508, %v3420, %v3676
    %v3765 = vsel %vm3509, %v3422, %v3678
    %v3766 = vsel %vm3510, %v3424, %v3680
    %v3767 = vsel %vm3511, %v3426, %v3682
    %v3768 = vsel %vm3512, %v3428, %v3684
    %v3769 = vsel %vm3513, %v3430, %v3686
    %v3770 = vsel %vm3514, %v3432, %v3688
    %v3771 = vsel %vm3515, %v3434, %v3690
    %v3772 = vsel %vm3516, %v3436, %v3692
    %v3773 = vsel %vm3517, %v3438, %v3694
    %v3774 = vsel %vm3518, %v3440, %v3696
    %v3775 = vsel %vm3519, %v3442, %v3698
    %v3776 = vsel %vm3520, %v3444, %v3700
    %v3777 = vsel %vm3521, %v3446, %v3702
    %v3778 = vsel %vm3522, %v3448, %v3704
    %v3779 = vsel %vm3523, %v3450, %v3706
    %v3780 = vsel %vm3524, %v3452, %v3708
    %v3781 = vsel %vm3525, %v3454, %v3710
    %v3782 = vsel %vm3526, %v3456, %v3712
    %v3783 = vsel %vm3527, %v3458, %v3714
    %v3784 = vsel %vm3528, %v3460, %v3716
    %v3785 = vsel %vm3529, %v3462, %v3718
    %v3786 = vsel %vm3530, %v3464, %v3720
    %v3787 = vsel %vm3531, %v3466, %v3722
    %v3788 = vsel %vm3532, %v3468, %v3724
    %v3789 = vmax.f32 %v2831, 0.0
    %v3790 = vmax.f32 %v2836, 0.0
    %v3791 = vmax.f32 %v2841, 0.0
    %v3792 = vmax.f32 %v2846, 0.0
    %v3793 = vmax.f32 %v2851, 0.0
    %v3794 = vmax.f32 %v2856, 0.0
    %v3795 = vmax.f32 %v2861, 0.0
    %v3796 = vmax.f32 %v2866, 0.0
    %v3797 = vmax.f32 %v2871, 0.0
    %v3798 = vmax.f32 %v2876, 0.0
    %v3799 = vmax.f32 %v2881, 0.0
    %v3800 = vmax.f32 %v2886, 0.0
    %v3801 = vmax.f32 %v2891, 0.0
    %v3802 = vmax.f32 %v2896, 0.0
    %v3803 = vmax.f32 %v2901, 0.0
    %v3804 = vmax.f32 %v2906, 0.0
    %v3805 = vmax.f32 %v2911, 0.0
    %v3806 = vmax.f32 %v2916, 0.0
    %v3807 = vmax.f32 %v2921, 0.0
    %v3808 = vmax.f32 %v2926, 0.0
    %v3809 = vmax.f32 %v2931, 0.0
    %v3810 = vmax.f32 %v2936, 0.0
    %v3811 = vmax.f32 %v2941, 0.0
    %v3812 = vmax.f32 %v2946, 0.0
    %v3813 = vmax.f32 %v2951, 0.0
    %v3814 = vmax.f32 %v2956, 0.0
    %v3815 = vmax.f32 %v2961, 0.0
    %v3816 = vmax.f32 %v2966, 0.0
    %v3817 = vmax.f32 %v2971, 0.0
    %v3818 = vmax.f32 %v2976, 0.0
    %v3819 = vmax.f32 %v2981, 0.0
    %v3820 = vmax.f32 %v2986, 0.0
    %v3821 = vmax.f32 %v2991, 0.0
    %v3822 = vmax.f32 %v2996, 0.0
    %v3823 = vmax.f32 %v3001, 0.0
    %v3824 = vmax.f32 %v3006, 0.0
    %v3825 = vmax.f32 %v3011, 0.0
    %v3826 = vmax.f32 %v3016, 0.0
    %v3827 = vmax.f32 %v3021, 0.0
    %v3828 = vmax.f32 %v3026, 0.0
    %v3829 = vmax.f32 %v3031, 0.0
    %v3830 = vmax.f32 %v3036, 0.0
    %v3831 = vmax.f32 %v3041, 0.0
    %v3832 = vmax.f32 %v3046, 0.0
    %v3833 = vmax.f32 %v3051, 0.0
    %v3834 = vmax.f32 %v3056, 0.0
    %v3835 = vmax.f32 %v3061, 0.0
    %v3836 = vmax.f32 %v3066, 0.0
    %v3837 = vmax.f32 %v3071, 0.0
    %v3838 = vmax.f32 %v3076, 0.0
    %v3839 = vmax.f32 %v3081, 0.0
    %v3840 = vmax.f32 %v3086, 0.0
    %v3841 = vmax.f32 %v3091, 0.0
    %v3842 = vmax.f32 %v3096, 0.0
    %v3843 = vmax.f32 %v3101, 0.0
    %v3844 = vmax.f32 %v3106, 0.0
    %v3845 = vmax.f32 %v3111, 0.0
    %v3846 = vmax.f32 %v3116, 0.0
    %v3847 = vmax.f32 %v3121, 0.0
    %v3848 = vmax.f32 %v3126, 0.0
    %v3849 = vmax.f32 %v3131, 0.0
    %v3850 = vmax.f32 %v3136, 0.0
    %v3851 = vmax.f32 %v3141, 0.0
    %v3852 = vmax.f32 %v3146, 0.0
    %v3853 = vmul.f32 %v2831, %v3149
    %v3854 = vmul.f32 %v2836, %v3150
    %v3855 = vmul.f32 %v2841, %v3151
    %v3856 = vmul.f32 %v2846, %v3152
    %v3857 = vmul.f32 %v2851, %v3153
    %v3858 = vmul.f32 %v2856, %v3154
    %v3859 = vmul.f32 %v2861, %v3155
    %v3860 = vmul.f32 %v2866, %v3156
    %v3861 = vmul.f32 %v2871, %v3157
    %v3862 = vmul.f32 %v2876, %v3158
    %v3863 = vmul.f32 %v2881, %v3159
    %v3864 = vmul.f32 %v2886, %v3160
    %v3865 = vmul.f32 %v2891, %v3161
    %v3866 = vmul.f32 %v2896, %v3162
    %v3867 = vmul.f32 %v2901, %v3163
    %v3868 = vmul.f32 %v2906, %v3164
    %v3869 = vmul.f32 %v2911, %v3165
    %v3870 = vmul.f32 %v2916, %v3166
    %v3871 = vmul.f32 %v2921, %v3167
    %v3872 = vmul.f32 %v2926, %v3168
    %v3873 = vmul.f32 %v2931, %v3169
    %v3874 = vmul.f32 %v2936, %v3170
    %v3875 = vmul.f32 %v2941, %v3171
    %v3876 = vmul.f32 %v2946, %v3172
    %v3877 = vmul.f32 %v2951, %v3173
    %v3878 = vmul.f32 %v2956, %v3174
    %v3879 = vmul.f32 %v2961, %v3175
    %v3880 = vmul.f32 %v2966, %v3176
    %v3881 = vmul.f32 %v2971, %v3177
    %v3882 = vmul.f32 %v2976, %v3178
    %v3883 = vmul.f32 %v2981, %v3179
    %v3884 = vmul.f32 %v2986, %v3180
    %v3885 = vmul.f32 %v2991, %v3181
    %v3886 = vmul.f32 %v2996, %v3182
    %v3887 = vmul.f32 %v3001, %v3183
    %v3888 = vmul.f32 %v3006, %v3184
    %v3889 = vmul.f32 %v3011, %v3185
    %v3890 = vmul.f32 %v3016, %v3186
    %v3891 = vmul.f32 %v3021, %v3187
    %v3892 = vmul.f32 %v3026, %v3188
    %v3893 = vmul.f32 %v3031, %v3189
    %v3894 = vmul.f32 %v3036, %v3190
    %v3895 = vmul.f32 %v3041, %v3191
    %v3896 = vmul.f32 %v3046, %v3192
    %v3897 = vmul.f32 %v3051, %v3193
    %v3898 = vmul.f32 %v3056, %v3194
    %v3899 = vmul.f32 %v3061, %v3195
    %v3900 = vmul.f32 %v3066, %v3196
    %v3901 = vmul.f32 %v3071, %v3197
    %v3902 = vmul.f32 %v3076, %v3198
    %v3903 = vmul.f32 %v3081, %v3199
    %v3904 = vmul.f32 %v3086, %v3200
    %v3905 = vmul.f32 %v3091, %v3201
    %v3906 = vmul.f32 %v3096, %v3202
    %v3907 = vmul.f32 %v3101, %v3203
    %v3908 = vmul.f32 %v3106, %v3204
    %v3909 = vmul.f32 %v3111, %v3205
    %v3910 = vmul.f32 %v3116, %v3206
    %v3911 = vmul.f32 %v3121, %v3207
    %v3912 = vmul.f32 %v3126, %v3208
    %v3913 = vmul.f32 %v3131, %v3209
    %v3914 = vmul.f32 %v3136, %v3210
    %v3915 = vmul.f32 %v3141, %v3211
    %v3916 = vmul.f32 %v3146, %v3212
    %v3917 = vsub.f32 %v3789, %v3853
    %v3918 = vsub.f32 %v3790, %v3854
    %v3919 = vsub.f32 %v3791, %v3855
    %v3920 = vsub.f32 %v3792, %v3856
    %v3921 = vsub.f32 %v3793, %v3857
    %v3922 = vsub.f32 %v3794, %v3858
    %v3923 = vsub.f32 %v3795, %v3859
    %v3924 = vsub.f32 %v3796, %v3860
    %v3925 = vsub.f32 %v3797, %v3861
    %v3926 = vsub.f32 %v3798, %v3862
    %v3927 = vsub.f32 %v3799, %v3863
    %v3928 = vsub.f32 %v3800, %v3864
    %v3929 = vsub.f32 %v3801, %v3865
    %v3930 = vsub.f32 %v3802, %v3866
    %v3931 = vsub.f32 %v3803, %v3867
    %v3932 = vsub.f32 %v3804, %v3868
    %v3933 = vsub.f32 %v3805, %v3869
    %v3934 = vsub.f32 %v3806, %v3870
    %v3935 = vsub.f32 %v3807, %v3871
    %v3936 = vsub.f32 %v3808, %v3872
    %v3937 = vsub.f32 %v3809, %v3873
    %v3938 = vsub.f32 %v3810, %v3874
    %v3939 = vsub.f32 %v3811, %v3875
    %v3940 = vsub.f32 %v3812, %v3876
    %v3941 = vsub.f32 %v3813, %v3877
    %v3942 = vsub.f32 %v3814, %v3878
    %v3943 = vsub.f32 %v3815, %v3879
    %v3944 = vsub.f32 %v3816, %v3880
    %v3945 = vsub.f32 %v3817, %v3881
    %v3946 = vsub.f32 %v3818, %v3882
    %v3947 = vsub.f32 %v3819, %v3883
    %v3948 = vsub.f32 %v3820, %v3884
    %v3949 = vsub.f32 %v3821, %v3885
    %v3950 = vsub.f32 %v3822, %v3886
    %v3951 = vsub.f32 %v3823, %v3887
    %v3952 = vsub.f32 %v3824, %v3888
    %v3953 = vsub.f32 %v3825, %v3889
    %v3954 = vsub.f32 %v3826, %v3890
    %v3955 = vsub.f32 %v3827, %v3891
    %v3956 = vsub.f32 %v3828, %v3892
    %v3957 = vsub.f32 %v3829, %v3893
    %v3958 = vsub.f32 %v3830, %v3894
    %v3959 = vsub.f32 %v3831, %v3895
    %v3960 = vsub.f32 %v3832, %v3896
    %v3961 = vsub.f32 %v3833, %v3897
    %v3962 = vsub.f32 %v3834, %v3898
    %v3963 = vsub.f32 %v3835, %v3899
    %v3964 = vsub.f32 %v3836, %v3900
    %v3965 = vsub.f32 %v3837, %v3901
    %v3966 = vsub.f32 %v3838, %v3902
    %v3967 = vsub.f32 %v3839, %v3903
    %v3968 = vsub.f32 %v3840, %v3904
    %v3969 = vsub.f32 %v3841, %v3905
    %v3970 = vsub.f32 %v3842, %v3906
    %v3971 = vsub.f32 %v3843, %v3907
    %v3972 = vsub.f32 %v3844, %v3908
    %v3973 = vsub.f32 %v3845, %v3909
    %v3974 = vsub.f32 %v3846, %v3910
    %v3975 = vsub.f32 %v3847, %v3911
    %v3976 = vsub.f32 %v3848, %v3912
    %v3977 = vsub.f32 %v3849, %v3913
    %v3978 = vsub.f32 %v3850, %v3914
    %v3979 = vsub.f32 %v3851, %v3915
    %v3980 = vsub.f32 %v3852, %v3916
    %v3981 = vadd.f32 %v3917, %v3725
    %v3982 = vadd.f32 %v3918, %v3726
    %v3983 = vadd.f32 %v3919, %v3727
    %v3984 = vadd.f32 %v3920, %v3728
    %v3985 = vadd.f32 %v3921, %v3729
    %v3986 = vadd.f32 %v3922, %v3730
    %v3987 = vadd.f32 %v3923, %v3731
    %v3988 = vadd.f32 %v3924, %v3732
    %v3989 = vadd.f32 %v3925, %v3733
    %v3990 = vadd.f32 %v3926, %v3734
    %v3991 = vadd.f32 %v3927, %v3735
    %v3992 = vadd.f32 %v3928, %v3736
    %v3993 = vadd.f32 %v3929, %v3737
    %v3994 = vadd.f32 %v3930, %v3738
    %v3995 = vadd.f32 %v3931, %v3739
    %v3996 = vadd.f32 %v3932, %v3740
    %v3997 = vadd.f32 %v3933, %v3741
    %v3998 = vadd.f32 %v3934, %v3742
    %v3999 = vadd.f32 %v3935, %v3743
    %v4000 = vadd.f32 %v3936, %v3744
    %v4001 = vadd.f32 %v3937, %v3745
    %v4002 = vadd.f32 %v3938, %v3746
    %v4003 = vadd.f32 %v3939, %v3747
    %v4004 = vadd.f32 %v3940, %v3748
    %v4005 = vadd.f32 %v3941, %v3749
    %v4006 = vadd.f32 %v3942, %v3750
    %v4007 = vadd.f32 %v3943, %v3751
    %v4008 = vadd.f32 %v3944, %v3752
    %v4009 = vadd.f32 %v3945, %v3753
    %v4010 = vadd.f32 %v3946, %v3754
    %v4011 = vadd.f32 %v3947, %v3755
    %v4012 = vadd.f32 %v3948, %v3756
    %v4013 = vadd.f32 %v3949, %v3757
    %v4014 = vadd.f32 %v3950, %v3758
    %v4015 = vadd.f32 %v3951, %v3759
    %v4016 = vadd.f32 %v3952, %v3760
    %v4017 = vadd.f32 %v3953, %v3761
    %v4018 = vadd.f32 %v3954, %v3762
    %v4019 = vadd.f32 %v3955, %v3763
    %v4020 = vadd.f32 %v3956, %v3764
    %v4021 = vadd.f32 %v3957, %v3765
    %v4022 = vadd.f32 %v3958, %v3766
    %v4023 = vadd.f32 %v3959, %v3767
    %v4024 = vadd.f32 %v3960, %v3768
    %v4025 = vadd.f32 %v3961, %v3769
    %v4026 = vadd.f32 %v3962, %v3770
    %v4027 = vadd.f32 %v3963, %v3771
    %v4028 = vadd.f32 %v3964, %v3772
    %v4029 = vadd.f32 %v3965, %v3773
    %v4030 = vadd.f32 %v3966, %v3774
    %v4031 = vadd.f32 %v3967, %v3775
    %v4032 = vadd.f32 %v3968, %v3776
    %v4033 = vadd.f32 %v3969, %v3777
    %v4034 = vadd.f32 %v3970, %v3778
    %v4035 = vadd.f32 %v3971, %v3779
    %v4036 = vadd.f32 %v3972, %v3780
    %v4037 = vadd.f32 %v3973, %v3781
    %v4038 = vadd.f32 %v3974, %v3782
    %v4039 = vadd.f32 %v3975, %v3783
    %v4040 = vadd.f32 %v3976, %v3784
    %v4041 = vadd.f32 %v3977, %v3785
    %v4042 = vadd.f32 %v3978, %v3786
    %v4043 = vadd.f32 %v3979, %v3787
    %v4044 = vadd.f32 %v3980, %v3788
    %vm4045 = vcmask 31744
    %4046 = vst.msk [vmem:[%s10] sm:$0xff] %vm4045, %v2831
    %4047 = vst.msk [vmem:[%s10 + $0x8] sm:$0xff] %vm4045, %v2836
    %4048 = vst.msk [vmem:[%s10 + $0x10] sm:$0xff] %vm4045, %v2841
    %4049 = vst.msk [vmem:[%s10 + $0x18] sm:$0xff] %vm4045, %v2846
    %4050 = vst.msk [vmem:[%s10 + $0x20] sm:$0xff] %vm4045, %v2851
    %4051 = vst.msk [vmem:[%s10 + $0x28] sm:$0xff] %vm4045, %v2856
    %4052 = vst.msk [vmem:[%s10 + $0x30] sm:$0xff] %vm4045, %v2861
    %4053 = vst.msk [vmem:[%s10 + $0x38] sm:$0xff] %vm4045, %v2866
    %4054 = vst.msk [vmem:[%s10 + $0x40] sm:$0xff] %vm4045, %v2871
    %4055 = vst.msk [vmem:[%s10 + $0x48] sm:$0xff] %vm4045, %v2876
    %4056 = vst.msk [vmem:[%s10 + $0x50] sm:$0xff] %vm4045, %v2881
    %4057 = vst.msk [vmem:[%s10 + $0x58] sm:$0xff] %vm4045, %v2886
    %4058 = vst.msk [vmem:[%s10 + $0x60] sm:$0xff] %vm4045, %v2891
    %4059 = vst.msk [vmem:[%s10 + $0x68] sm:$0xff] %vm4045, %v2896
    %4060 = vst.msk [vmem:[%s10 + $0x70] sm:$0xff] %vm4045, %v2901
    %4061 = vst.msk [vmem:[%s10 + $0x78] sm:$0xff] %vm4045, %v2906
    %4062 = vst.msk [vmem:[%s10 + $0x80] sm:$0xff] %vm4045, %v2911
    %4063 = vst.msk [vmem:[%s10 + $0x88] sm:$0xff] %vm4045, %v2916
    %4064 = vst.msk [vmem:[%s10 + $0x90] sm:$0xff] %vm4045, %v2921
    %4065 = vst.msk [vmem:[%s10 + $0x98] sm:$0xff] %vm4045, %v2926
    %4066 = vst.msk [vmem:[%s10 + $0xa0] sm:$0xff] %vm4045, %v2931
    %4067 = vst.msk [vmem:[%s10 + $0xa8] sm:$0xff] %vm4045, %v2936
    %4068 = vst.msk [vmem:[%s10 + $0xb0] sm:$0xff] %vm4045, %v2941
    %4069 = vst.msk [vmem:[%s10 + $0xb8] sm:$0xff] %vm4045, %v2946
    %4070 = vst.msk [vmem:[%s10 + $0xc0] sm:$0xff] %vm4045, %v2951
    %4071 = vst.msk [vmem:[%s10 + $0xc8] sm:$0xff] %vm4045, %v2956
    %4072 = vst.msk [vmem:[%s10 + $0xd0] sm:$0xff] %vm4045, %v2961
    %4073 = vst.msk [vmem:[%s10 + $0xd8] sm:$0xff] %vm4045, %v2966
    %4074 = vst.msk [vmem:[%s10 + $0xe0] sm:$0xff] %vm4045, %v2971
    %4075 = vst.msk [vmem:[%s10 + $0xe8] sm:$0xff] %vm4045, %v2976
    %4076 = vst.msk [vmem:[%s10 + $0xf0] sm:$0xff] %vm4045, %v2981
    %4077 = vst.msk [vmem:[%s10 + $0xf8] sm:$0xff] %vm4045, %v2986
    %4078 = vst.msk [vmem:[%s10 + $0x100] sm:$0xff] %vm4045, %v2991
    %4079 = vst.msk [vmem:[%s10 + $0x108] sm:$0xff] %vm4045, %v2996
    %4080 = vst.msk [vmem:[%s10 + $0x110] sm:$0xff] %vm4045, %v3001
    %4081 = vst.msk [vmem:[%s10 + $0x118] sm:$0xff] %vm4045, %v3006
    %4082 = vst.msk [vmem:[%s10 + $0x120] sm:$0xff] %vm4045, %v3011
    %4083 = vst.msk [vmem:[%s10 + $0x128] sm:$0xff] %vm4045, %v3016
    %4084 = vst.msk [vmem:[%s10 + $0x130] sm:$0xff] %vm4045, %v3021
    %4085 = vst.msk [vmem:[%s10 + $0x138] sm:$0xff] %vm4045, %v3026
    %4086 = vst.msk [vmem:[%s10 + $0x140] sm:$0xff] %vm4045, %v3031
    %4087 = vst.msk [vmem:[%s10 + $0x148] sm:$0xff] %vm4045, %v3036
    %4088 = vst.msk [vmem:[%s10 + $0x150] sm:$0xff] %vm4045, %v3041
    %4089 = vst.msk [vmem:[%s10 + $0x158] sm:$0xff] %vm4045, %v3046
    %4090 = vst.msk [vmem:[%s10 + $0x160] sm:$0xff] %vm4045, %v3051
    %4091 = vst.msk [vmem:[%s10 + $0x168] sm:$0xff] %vm4045, %v3056
    %4092 = vst.msk [vmem:[%s10 + $0x170] sm:$0xff] %vm4045, %v3061
    %4093 = vst.msk [vmem:[%s10 + $0x178] sm:$0xff] %vm4045, %v3066
    %4094 = vst.msk [vmem:[%s10 + $0x180] sm:$0xff] %vm4045, %v3071
    %4095 = vst.msk [vmem:[%s10 + $0x188] sm:$0xff] %vm4045, %v3076
    %4096 = vst.msk [vmem:[%s10 + $0x190] sm:$0xff] %vm4045, %v3081
    %4097 = vst.msk [vmem:[%s10 + $0x198] sm:$0xff] %vm4045, %v3086
    %4098 = vst.msk [vmem:[%s10 + $0x1a0] sm:$0xff] %vm4045, %v3091
    %4099 = vst.msk [vmem:[%s10 + $0x1a8] sm:$0xff] %vm4045, %v3096
    %4100 = vst.msk [vmem:[%s10 + $0x1b0] sm:$0xff] %vm4045, %v3101
    %4101 = vst.msk [vmem:[%s10 + $0x1b8] sm:$0xff] %vm4045, %v3106
    %4102 = vst.msk [vmem:[%s10 + $0x1c0] sm:$0xff] %vm4045, %v3111
    %4103 = vst.msk [vmem:[%s10 + $0x1c8] sm:$0xff] %vm4045, %v3116
    %4104 = vst.msk [vmem:[%s10 + $0x1d0] sm:$0xff] %vm4045, %v3121
    %4105 = vst.msk [vmem:[%s10 + $0x1d8] sm:$0xff] %vm4045, %v3126
    %4106 = vst.msk [vmem:[%s10 + $0x1e0] sm:$0xff] %vm4045, %v3131
    %4107 = vst.msk [vmem:[%s10 + $0x1e8] sm:$0xff] %vm4045, %v3136
    %4108 = vst.msk [vmem:[%s10 + $0x1f0] sm:$0xff] %vm4045, %v3141
    %4109 = vst.msk [vmem:[%s10 + $0x1f8] sm:$0xff] %vm4045, %v3146
    %v4110 = vsel %vm4045, %v3981, 0.0
    %4111 = vadd.xlane.f32.xlu0 %v4110
    %v4112 = vpop.xlane.xlu0 %4111
    %v4113 = vsel %vm4045, %v3982, 0.0
    %4114 = vadd.xlane.f32.xlu0 %v4113
    %v4115 = vpop.xlane.xlu0 %4114
    %v4116 = vsel %vm4045, %v3983, 0.0
    %4117 = vadd.xlane.f32.xlu0 %v4116
    %v4118 = vpop.xlane.xlu0 %4117
    %v4119 = vsel %vm4045, %v3984, 0.0
    %4120 = vadd.xlane.f32.xlu0 %v4119
    %v4121 = vpop.xlane.xlu0 %4120
    %v4122 = vsel %vm4045, %v3985, 0.0
    %4123 = vadd.xlane.f32.xlu0 %v4122
    %v4124 = vpop.xlane.xlu0 %4123
    %v4125 = vsel %vm4045, %v3986, 0.0
    %4126 = vadd.xlane.f32.xlu0 %v4125
    %v4127 = vpop.xlane.xlu0 %4126
    %v4128 = vsel %vm4045, %v3987, 0.0
    %4129 = vadd.xlane.f32.xlu0 %v4128
    %v4130 = vpop.xlane.xlu0 %4129
    %v4131 = vsel %vm4045, %v3988, 0.0
    %4132 = vadd.xlane.f32.xlu0 %v4131
    %v4133 = vpop.xlane.xlu0 %4132
    %v4134 = vsel %vm4045, %v3989, 0.0
    %4135 = vadd.xlane.f32.xlu0 %v4134
    %v4136 = vpop.xlane.xlu0 %4135
    %v4137 = vsel %vm4045, %v3990, 0.0
    %4138 = vadd.xlane.f32.xlu0 %v4137
    %v4139 = vpop.xlane.xlu0 %4138
    %v4140 = vsel %vm4045, %v3991, 0.0
    %4141 = vadd.xlane.f32.xlu0 %v4140
    %v4142 = vpop.xlane.xlu0 %4141
    %v4143 = vsel %vm4045, %v3992, 0.0
    %4144 = vadd.xlane.f32.xlu0 %v4143
    %v4145 = vpop.xlane.xlu0 %4144
    %v4146 = vsel %vm4045, %v3993, 0.0
    %4147 = vadd.xlane.f32.xlu0 %v4146
    %v4148 = vpop.xlane.xlu0 %4147
    %v4149 = vsel %vm4045, %v3994, 0.0
    %4150 = vadd.xlane.f32.xlu0 %v4149
    %v4151 = vpop.xlane.xlu0 %4150
    %v4152 = vsel %vm4045, %v3995, 0.0
    %4153 = vadd.xlane.f32.xlu0 %v4152
    %v4154 = vpop.xlane.xlu0 %4153
    %v4155 = vsel %vm4045, %v3996, 0.0
    %4156 = vadd.xlane.f32.xlu0 %v4155
    %v4157 = vpop.xlane.xlu0 %4156
    %v4158 = vsel %vm4045, %v3997, 0.0
    %4159 = vadd.xlane.f32.xlu0 %v4158
    %v4160 = vpop.xlane.xlu0 %4159
    %v4161 = vsel %vm4045, %v3998, 0.0
    %4162 = vadd.xlane.f32.xlu0 %v4161
    %v4163 = vpop.xlane.xlu0 %4162
    %v4164 = vsel %vm4045, %v3999, 0.0
    %4165 = vadd.xlane.f32.xlu0 %v4164
    %v4166 = vpop.xlane.xlu0 %4165
    %v4167 = vsel %vm4045, %v4000, 0.0
    %4168 = vadd.xlane.f32.xlu0 %v4167
    %v4169 = vpop.xlane.xlu0 %4168
    %v4170 = vsel %vm4045, %v4001, 0.0
    %4171 = vadd.xlane.f32.xlu0 %v4170
    %v4172 = vpop.xlane.xlu0 %4171
    %v4173 = vsel %vm4045, %v4002, 0.0
    %4174 = vadd.xlane.f32.xlu0 %v4173
    %v4175 = vpop.xlane.xlu0 %4174
    %v4176 = vsel %vm4045, %v4003, 0.0
    %4177 = vadd.xlane.f32.xlu0 %v4176
    %v4178 = vpop.xlane.xlu0 %4177
    %v4179 = vsel %vm4045, %v4004, 0.0
    %4180 = vadd.xlane.f32.xlu0 %v4179
    %v4181 = vpop.xlane.xlu0 %4180
    %v4182 = vsel %vm4045, %v4005, 0.0
    %4183 = vadd.xlane.f32.xlu0 %v4182
    %v4184 = vpop.xlane.xlu0 %4183
    %v4185 = vsel %vm4045, %v4006, 0.0
    %4186 = vadd.xlane.f32.xlu0 %v4185
    %v4187 = vpop.xlane.xlu0 %4186
    %v4188 = vsel %vm4045, %v4007, 0.0
    %4189 = vadd.xlane.f32.xlu0 %v4188
    %v4190 = vpop.xlane.xlu0 %4189
    %v4191 = vsel %vm4045, %v4008, 0.0
    %4192 = vadd.xlane.f32.xlu0 %v4191
    %v4193 = vpop.xlane.xlu0 %4192
    %v4194 = vsel %vm4045, %v4009, 0.0
    %4195 = vadd.xlane.f32.xlu0 %v4194
    %v4196 = vpop.xlane.xlu0 %4195
    %v4197 = vsel %vm4045, %v4010, 0.0
    %4198 = vadd.xlane.f32.xlu0 %v4197
    %v4199 = vpop.xlane.xlu0 %4198
    %v4200 = vsel %vm4045, %v4011, 0.0
    %4201 = vadd.xlane.f32.xlu0 %v4200
    %v4202 = vpop.xlane.xlu0 %4201
    %v4203 = vsel %vm4045, %v4012, 0.0
    %4204 = vadd.xlane.f32.xlu0 %v4203
    %v4205 = vpop.xlane.xlu0 %4204
    %v4206 = vsel %vm4045, %v4013, 0.0
    %4207 = vadd.xlane.f32.xlu0 %v4206
    %v4208 = vpop.xlane.xlu0 %4207
    %v4209 = vsel %vm4045, %v4014, 0.0
    %4210 = vadd.xlane.f32.xlu0 %v4209
    %v4211 = vpop.xlane.xlu0 %4210
    %v4212 = vsel %vm4045, %v4015, 0.0
    %4213 = vadd.xlane.f32.xlu0 %v4212
    %v4214 = vpop.xlane.xlu0 %4213
    %v4215 = vsel %vm4045, %v4016, 0.0
    %4216 = vadd.xlane.f32.xlu0 %v4215
    %v4217 = vpop.xlane.xlu0 %4216
    %v4218 = vsel %vm4045, %v4017, 0.0
    %4219 = vadd.xlane.f32.xlu0 %v4218
    %v4220 = vpop.xlane.xlu0 %4219
    %v4221 = vsel %vm4045, %v4018, 0.0
    %4222 = vadd.xlane.f32.xlu0 %v4221
    %v4223 = vpop.xlane.xlu0 %4222
    %v4224 = vsel %vm4045, %v4019, 0.0
    %4225 = vadd.xlane.f32.xlu0 %v4224
    %v4226 = vpop.xlane.xlu0 %4225
    %v4227 = vsel %vm4045, %v4020, 0.0
    %4228 = vadd.xlane.f32.xlu0 %v4227
    %v4229 = vpop.xlane.xlu0 %4228
    %v4230 = vsel %vm4045, %v4021, 0.0
    %4231 = vadd.xlane.f32.xlu0 %v4230
    %v4232 = vpop.xlane.xlu0 %4231
    %v4233 = vsel %vm4045, %v4022, 0.0
    %4234 = vadd.xlane.f32.xlu0 %v4233
    %v4235 = vpop.xlane.xlu0 %4234
    %v4236 = vsel %vm4045, %v4023, 0.0
    %4237 = vadd.xlane.f32.xlu0 %v4236
    %v4238 = vpop.xlane.xlu0 %4237
    %v4239 = vsel %vm4045, %v4024, 0.0
    %4240 = vadd.xlane.f32.xlu0 %v4239
    %v4241 = vpop.xlane.xlu0 %4240
    %v4242 = vsel %vm4045, %v4025, 0.0
    %4243 = vadd.xlane.f32.xlu0 %v4242
    %v4244 = vpop.xlane.xlu0 %4243
    %v4245 = vsel %vm4045, %v4026, 0.0
    %4246 = vadd.xlane.f32.xlu0 %v4245
    %v4247 = vpop.xlane.xlu0 %4246
    %v4248 = vsel %vm4045, %v4027, 0.0
    %4249 = vadd.xlane.f32.xlu0 %v4248
    %v4250 = vpop.xlane.xlu0 %4249
    %v4251 = vsel %vm4045, %v4028, 0.0
    %4252 = vadd.xlane.f32.xlu0 %v4251
    %v4253 = vpop.xlane.xlu0 %4252
    %v4254 = vsel %vm4045, %v4029, 0.0
    %4255 = vadd.xlane.f32.xlu0 %v4254
    %v4256 = vpop.xlane.xlu0 %4255
    %v4257 = vsel %vm4045, %v4030, 0.0
    %4258 = vadd.xlane.f32.xlu0 %v4257
    %v4259 = vpop.xlane.xlu0 %4258
    %v4260 = vsel %vm4045, %v4031, 0.0
    %4261 = vadd.xlane.f32.xlu0 %v4260
    %v4262 = vpop.xlane.xlu0 %4261
    %v4263 = vsel %vm4045, %v4032, 0.0
    %4264 = vadd.xlane.f32.xlu0 %v4263
    %v4265 = vpop.xlane.xlu0 %4264
    %v4266 = vsel %vm4045, %v4033, 0.0
    %4267 = vadd.xlane.f32.xlu0 %v4266
    %v4268 = vpop.xlane.xlu0 %4267
    %v4269 = vsel %vm4045, %v4034, 0.0
    %4270 = vadd.xlane.f32.xlu0 %v4269
    %v4271 = vpop.xlane.xlu0 %4270
    %v4272 = vsel %vm4045, %v4035, 0.0
    %4273 = vadd.xlane.f32.xlu0 %v4272
    %v4274 = vpop.xlane.xlu0 %4273
    %v4275 = vsel %vm4045, %v4036, 0.0
    %4276 = vadd.xlane.f32.xlu0 %v4275
    %v4277 = vpop.xlane.xlu0 %4276
    %v4278 = vsel %vm4045, %v4037, 0.0
    %4279 = vadd.xlane.f32.xlu0 %v4278
    %v4280 = vpop.xlane.xlu0 %4279
    %v4281 = vsel %vm4045, %v4038, 0.0
    %4282 = vadd.xlane.f32.xlu0 %v4281
    %v4283 = vpop.xlane.xlu0 %4282
    %v4284 = vsel %vm4045, %v4039, 0.0
    %4285 = vadd.xlane.f32.xlu0 %v4284
    %v4286 = vpop.xlane.xlu0 %4285
    %v4287 = vsel %vm4045, %v4040, 0.0
    %4288 = vadd.xlane.f32.xlu0 %v4287
    %v4289 = vpop.xlane.xlu0 %4288
    %v4290 = vsel %vm4045, %v4041, 0.0
    %4291 = vadd.xlane.f32.xlu0 %v4290
    %v4292 = vpop.xlane.xlu0 %4291
    %v4293 = vsel %vm4045, %v4042, 0.0
    %4294 = vadd.xlane.f32.xlu0 %v4293
    %v4295 = vpop.xlane.xlu0 %4294
    %v4296 = vsel %vm4045, %v4043, 0.0
    %4297 = vadd.xlane.f32.xlu0 %v4296
    %v4298 = vpop.xlane.xlu0 %4297
    %v4299 = vsel %vm4045, %v4044, 0.0
    %4300 = vadd.xlane.f32.xlu0 %v4299
    %v4301 = vpop.xlane.xlu0 %4300
    %v4302 = vadd.f32 %v4112, %v4115
    %v4303 = vadd.f32 %v4302, %v4118
    %v4304 = vadd.f32 %v4303, %v4121
    %v4305 = vadd.f32 %v4304, %v4124
    %v4306 = vadd.f32 %v4305, %v4127
    %v4307 = vadd.f32 %v4306, %v4130
    %v4308 = vadd.f32 %v4307, %v4133
    %v4309 = vadd.f32 %v4308, %v4136
    %v4310 = vadd.f32 %v4309, %v4139
    %v4311 = vadd.f32 %v4310, %v4142
    %v4312 = vadd.f32 %v4311, %v4145
    %v4313 = vadd.f32 %v4312, %v4148
    %v4314 = vadd.f32 %v4313, %v4151
    %v4315 = vadd.f32 %v4314, %v4154
    %v4316 = vadd.f32 %v4315, %v4157
    %v4317 = vadd.f32 %v4316, %v4160
    %v4318 = vadd.f32 %v4317, %v4163
    %v4319 = vadd.f32 %v4318, %v4166
    %v4320 = vadd.f32 %v4319, %v4169
    %v4321 = vadd.f32 %v4320, %v4172
    %v4322 = vadd.f32 %v4321, %v4175
    %v4323 = vadd.f32 %v4322, %v4178
    %v4324 = vadd.f32 %v4323, %v4181
    %v4325 = vadd.f32 %v4324, %v4184
    %v4326 = vadd.f32 %v4325, %v4187
    %v4327 = vadd.f32 %v4326, %v4190
    %v4328 = vadd.f32 %v4327, %v4193
    %v4329 = vadd.f32 %v4328, %v4196
    %v4330 = vadd.f32 %v4329, %v4199
    %v4331 = vadd.f32 %v4330, %v4202
    %v4332 = vadd.f32 %v4331, %v4205
    %v4333 = vadd.f32 %v4332, %v4208
    %v4334 = vadd.f32 %v4333, %v4211
    %v4335 = vadd.f32 %v4334, %v4214
    %v4336 = vadd.f32 %v4335, %v4217
    %v4337 = vadd.f32 %v4336, %v4220
    %v4338 = vadd.f32 %v4337, %v4223
    %v4339 = vadd.f32 %v4338, %v4226
    %v4340 = vadd.f32 %v4339, %v4229
    %v4341 = vadd.f32 %v4340, %v4232
    %v4342 = vadd.f32 %v4341, %v4235
    %v4343 = vadd.f32 %v4342, %v4238
    %v4344 = vadd.f32 %v4343, %v4241
    %v4345 = vadd.f32 %v4344, %v4244
    %v4346 = vadd.f32 %v4345, %v4247
    %v4347 = vadd.f32 %v4346, %v4250
    %v4348 = vadd.f32 %v4347, %v4253
    %v4349 = vadd.f32 %v4348, %v4256
    %v4350 = vadd.f32 %v4349, %v4259
    %v4351 = vadd.f32 %v4350, %v4262
    %v4352 = vadd.f32 %v4351, %v4265
    %v4353 = vadd.f32 %v4352, %v4268
    %v4354 = vadd.f32 %v4353, %v4271
    %v4355 = vadd.f32 %v4354, %v4274
    %v4356 = vadd.f32 %v4355, %v4277
    %v4357 = vadd.f32 %v4356, %v4280
    %v4358 = vadd.f32 %v4357, %v4283
    %v4359 = vadd.f32 %v4358, %v4286
    %v4360 = vadd.f32 %v4359, %v4289
    %v4361 = vadd.f32 %v4360, %v4292
    %v4362 = vadd.f32 %v4361, %v4295
    %v4363 = vadd.f32 %v4362, %v4298
    %v4364 = vadd.f32 %v4363, %v4301
    %v4365 = vrot.slane %v4364, 4
    %v4366 = vadd.f32 %v4364, %v4365
    %v4367 = vrot.slane %v4366, 2
    %v4368 = vadd.f32 %v4366, %v4367
    %v4369 = vrot.slane %v4368, 1
    %v4370 = vadd.f32 %v4368, %v4369
    %v4371 = vmul.f32 %v4370, 0.00048828125
    %vm4372 = vcmask 0
    %4373 = vst.msk [vmem:[#allocation3] sm:$0x1] %vm4372, %v4371
    // Predicated region
    $region42: #{mask_head_forward.1} parent=1 // pred_check
      _
    $region43: #{mask_head_forward.1} parent=1 // pred_check_branch
      %4375 = sbr.rel (0) target = $region45
    $region44: #{mask_head_forward.1} parent=1 // pred_region
      _
    $region45: #{mask_head_forward.1} parent=1 // pred_fallthru
      _
    // Predicated region
    $region46: #{mask_head_forward.1} parent=1 // pred_check
      _
    $region47: #{mask_head_forward.1} parent=1 // pred_check_branch
      %4377 = sbr.rel (0) target = $region49
    $region48: #{mask_head_forward.1} parent=1 // pred_region
      %s4379 = ssub.s32 16, 16
      %4380 = vsyncadd [#allocation4], %s4379
      %s4382 = sshll.u32 [#allocation3], 4
      %s4383 = int_to_ptr.vmem [resolvable:$true] %s4382
      %4385 = dma.vmem_to_hbm [thread:$0]  %s4383, 16, %s11, [#allocation4]
    $region49: #{mask_head_forward.1} parent=1 // pred_fallthru
      _
    // Predicated region
    $region50: #{mask_head_forward.1} parent=1 // pred_check
      _
    $region51: #{mask_head_forward.1} parent=1 // pred_check_branch
      %4387 = sbr.rel (0) target = $region53
    $region52: #{mask_head_forward.1} parent=1 // pred_region
      _
    $region53: #{mask_head_forward.1} parent=1 // pred_fallthru
      _
    // Predicated region
    $region54: #{mask_head_forward.1} parent=1 // pred_check
      _
    $region55: #{mask_head_forward.1} parent=1 // pred_check_branch
      %4389 = sbr.rel (0) target = $region57
    $region56: #{mask_head_forward.1} parent=1 // pred_region
      %4390 = dma.done [#allocation4], 16
    $region57: #{mask_head_forward.1} parent=1 // pred_fallthru
      _
    %4391 = vsyncpa [#allocation4], 1

</llo_original>
